<compile_context>
chip_gen: v6e
topology: v6e:2x2x1
jax: 0.10.0
libtpu: 0.0.40
codegen_flags: <defaults>
</compile_context>

<pallas_src>
import functools
import math

import jax
import jax.numpy as jnp
import numpy as np
from jax import lax
from jax.experimental import pallas as pl
from jax.experimental.pallas import tpu as pltpu


# ----------------------------------------------------------------------------
# Fused kernel: one grid step == one batch element, everything VMEM-resident.
# ----------------------------------------------------------------------------
def _fused_kernel(
    tgt_ref, enc_ref,
    wdec_ref, bdec_ref,
    wc_ref, bc_ref,
    wr_ref, br_ref,
    wsf_ref, bsf_ref,
    wtf_ref, btf_ref,
    dec_corr_ref, dec_feat_ref,
    ctx_ref, refined_ref, sf_ref, tf_ref,
    ta_w_ref, sa_w_ref, sf_w_ref, tf_w_ref,
    *, cc, scale_t, scale_s, mxu_dtype,
):
    f32 = jnp.float32

    def conv1x1(w_ref, b_ref, x):
        # w: (Cout, Cin) channels-first weight, x: (Cin, L) -> (Cout, L)
        return (
            jnp.dot(w_ref[...].astype(mxu_dtype), x.astype(mxu_dtype),
                    preferred_element_type=f32)
            + b_ref[...]
        )

    def spatial_attn(q, k, v):
        # q, k, v channels-first: (C, Lq) / (C, Lk) / (C, Lk)
        # scores contract the channel axis directly (no k / q transpose in VMEM).
        s = lax.dot_general(
            q.astype(mxu_dtype), k.astype(mxu_dtype),
            (((0,), (0,)), ((), ())),
            preferred_element_type=f32,
        ) * scale_s                                           # (Lq, Lk)
        m = jnp.max(s, axis=-1, keepdims=True)
        e = jnp.exp(s - m)
        p = e * pl.reciprocal(jnp.sum(e, axis=-1, keepdims=True), approx=True)
        out = lax.dot_general(
            v.astype(mxu_dtype), p.astype(mxu_dtype),
            (((1,), (1,)), ((), ())),
            preferred_element_type=f32,
        )                                                     # (C, Lq)
        return out, p

    x = tgt_ref[0]                       # (Cin, L)   f32
    enc = enc_ref[0]                     # (T, Cc, L) f32
    n_frames = enc.shape[0]

    # --- dec_sc: the two 1x1 convs fused into one (2*Cc, Cin) matmul ---------
    dec_both = conv1x1(wdec_ref, bdec_ref, x)        # (2*Cc, L)
    dec_corr = dec_both[:cc]                         # (Cc, L)  (Cc multiple of 8)
    dec_feat = dec_both[cc:]
    dec_corr_ref[0] = dec_corr
    dec_feat_ref[0] = dec_feat

    # --- ta: per-pixel temporal attention over T memory frames ---------------
    # Channel reduction stays on sublanes; T is small & static -> unrolled.
    scores = [jnp.sum(dec_corr * enc[t], axis=0, keepdims=True)
              for t in range(n_frames)]                       # T x (1, L)
    s_t = jnp.concatenate(scores, axis=0) * scale_t           # (T, L)
    m_t = jnp.max(s_t, axis=0, keepdims=True)                 # (1, L)
    e_t = jnp.exp(s_t - m_t)
    p_t = e_t * pl.reciprocal(jnp.sum(e_t, axis=0, keepdims=True), approx=True)
    ta_w_ref[0] = p_t.astype(ta_w_ref.dtype)

    ctx = p_t[0:1, :] * enc[0]
    for t in range(1, n_frames):
        ctx = ctx + p_t[t:t + 1, :] * enc[t]                  # (Cc, L)
    context = conv1x1(wc_ref, bc_ref, ctx)                    # (Cc, L)
    ctx_ref[0] = context

    # --- sa: spatial self-attention on dec_corr ------------------------------
    sa_out, sa_p = spatial_attn(dec_corr, dec_corr, dec_corr)
    sa_w_ref[0] = sa_p.astype(sa_w_ref.dtype)
    refined = conv1x1(wr_ref, br_ref, sa_out)
    refined_ref[0] = refined

    # --- ta_to_sa(context, refined, refined) ---------------------------------
    sf_out, sf_p = spatial_attn(context, refined, refined)
    sf_w_ref[0] = sf_p.astype(sf_w_ref.dtype)
    sf_ref[0] = conv1x1(wsf_ref, bsf_ref, sf_out)

    # --- sa_to_ta(refined, context, context) ---------------------------------
    tf_out, tf_p = spatial_attn(refined, context, context)
    tf_w_ref[0] = tf_p.astype(tf_w_ref.dtype)
    tf_ref[0] = conv1x1(wtf_ref, btf_ref, tf_out)


# ----------------------------------------------------------------------------
# Wrapper
# ----------------------------------------------------------------------------
def _vmem_estimate_bytes(L, cin, cc, t, w_bytes):
    """Rough per-grid-step VMEM need (double-buffered I/O + live intermediates)."""
    in_b = (cin * L + t * cc * L) * 4 + (2 * cc * cin + 4 * cc * cc + 10 * cc) * 4
    out_b = (6 * cc * L + t * L) * 4 + 3 * L * L * w_bytes
    scratch = 4 * L * L * 4 + 12 * cc * L * 4 + 6 * t * L * 4
    return 2 * (in_b + out_b) + scratch


def self_corr_attention_forward(enc_corr, target, params, *,
                                mxu_dtype=jnp.bfloat16,
                                weights_dtype=jnp.bfloat16):
    """enc_corr: (B, T, Cc, H, W); target: (B, C, H, W)  (PyTorch NCHW layouts)."""
    B, Cin, H, W = target.shape
    _, T, Cc, _, _ = enc_corr.shape
    L = H * W

    # NCHW -> channels-first flattened spatial: pure reshapes, no XLA transposes.
    tgt = target.reshape(B, Cin, L)                  # (B, Cin, L)
    enc = enc_corr.reshape(B, T, Cc, L)              # (B, T, Cc, L)

    # Fuse the two dec_sc 1x1 convs into one (2*Cc, Cin) weight.
    w_dec = jnp.concatenate([params["dec_sc_corr_w"], params["dec_sc_feat_w"]], axis=0)
    b_dec = jnp.concatenate([params["dec_sc_corr_b"], params["dec_sc_feat_b"]], axis=0)

    kernel = functools.partial(
        _fused_kernel,
        cc=Cc,
        scale_t=1.0 / math.sqrt(Cc),
        scale_s=1.0 / math.sqrt(Cc),
        mxu_dtype=mxu_dtype,
    )

    def batch_spec(shape):
        nd = len(shape)
        return pl.BlockSpec((1,) + tuple(shape[1:]),
                            lambda i, _nd=nd: (i,) + (0,) * (_nd - 1))

    def shared_spec(shape):
        nd = len(shape)
        return pl.BlockSpec(tuple(shape), lambda i, _nd=nd: (0,) * _nd)

    out_shape = (
        jax.ShapeDtypeStruct((B, Cc, L), jnp.float32),   # dec_corr
        jax.ShapeDtypeStruct((B, Cc, L), jnp.float32),   # dec_feature_st
        jax.ShapeDtypeStruct((B, Cc, L), jnp.float32),   # context
        jax.ShapeDtypeStruct((B, Cc, L), jnp.float32),   # refined
        jax.ShapeDtypeStruct((B, Cc, L), jnp.float32),   # spatialfused
        jax.ShapeDtypeStruct((B, Cc, L), jnp.float32),   # temporalfused
        jax.ShapeDtypeStruct((B, T, L), weights_dtype),  # ta_weights
        jax.ShapeDtypeStruct((B, L, L), weights_dtype),  # sa_weights
        jax.ShapeDtypeStruct((B, L, L), weights_dtype),  # sf_weights
        jax.ShapeDtypeStruct((B, L, L), weights_dtype),  # tf_weights
    )
    out_specs = tuple(batch_spec(s.shape) for s in out_shape)

    w_bytes = jnp.dtype(weights_dtype).itemsize
    vmem_need = _vmem_estimate_bytes(L, Cin, Cc, T, w_bytes)
    vmem_limit = int(min(max(vmem_need, 32 * 1024 * 1024), 64 * 1024 * 1024))

    cparams = pltpu.CompilerParams(
        dimension_semantics=("parallel",),
        vmem_limit_bytes=vmem_limit,
    )

    outs = pl.pallas_call(
        kernel,
        out_shape=out_shape,
        grid=(B,),
        in_specs=[
            batch_spec(tgt.shape),
            batch_spec(enc.shape),
            shared_spec(w_dec.shape), shared_spec(b_dec.shape),
            shared_spec(params["c_conv_w"].shape), shared_spec(params["c_conv_b"].shape),
            shared_spec(params["r_conv_w"].shape), shared_spec(params["r_conv_b"].shape),
            shared_spec(params["sf_conv_w"].shape), shared_spec(params["sf_conv_b"].shape),
            shared_spec(params["tf_conv_w"].shape), shared_spec(params["tf_conv_b"].shape),
        ],
        out_specs=out_specs,
        compiler_params=cparams,
    )(
        tgt, enc, w_dec, b_dec,
        params["c_conv_w"], params["c_conv_b"],
        params["r_conv_w"], params["r_conv_b"],
        params["sf_conv_w"], params["sf_conv_b"],
        params["tf_conv_w"], params["tf_conv_b"],
    )

    (dec_corr, dec_feature_st, context, refined, spatialfused, temporalfused,
     ta_w, sa_w, sf_w, tf_w) = outs

    def to_nchw(x):  # (B, Cout, L) -> (B, Cout, H, W): pure reshape, no transpose
        return x.reshape(B, x.shape[1], H, W)

    return (
        [to_nchw(dec_corr), to_nchw(dec_feature_st)],
        [to_nchw(context), to_nchw(refined), to_nchw(spatialfused), to_nchw(temporalfused)],
        [ta_w, sa_w, sf_w, tf_w],
    )


def make_params(key, c_in, c_corr):
    """Deterministic synthetic parameters for all 1x1 convs (channels-first weights)."""
    names = [
        ("dec_sc_corr", c_in, c_corr),
        ("dec_sc_feat", c_in, c_corr),
        ("c_conv", c_corr, c_corr),
        ("r_conv", c_corr, c_corr),
        ("sf_conv", c_corr, c_corr),
        ("tf_conv", c_corr, c_corr),
    ]
    params = {}
    keys = jax.random.split(key, len(names))
    for k, (name, cin, cout) in zip(keys, names):
        kw, kb = jax.random.split(k)
        params[f"{name}_w"] = (
            jax.random.normal(kw, (cout, cin), jnp.float32) * (1.0 / math.sqrt(cin))
        )
        params[f"{name}_b"] = jax.random.normal(kb, (cout, 1), jnp.float32) * 0.01
    return params


if __name__ == "__main__":
    # Small shapes, but spatial 16x16 so L = 256 (multiple of 128) -> every output
    # store in the kernel is lane-dense (no masked partial stores).
    B, C, H, W = 2, 4, 16, 16     # target frame: (B, C, H, W)
    T, Cc = 4, 32                 # T memory frames, Cc correlation channels

    key = jax.random.PRNGKey(0)
    k_tgt, k_enc = jax.random.split(key)
    target = jax.random.normal(k_tgt, (B, C, H, W), jnp.float32)
    enc_corr = jax.random.normal(k_enc, (B, T, Cc, H, W), jnp.float32)

    params = make_params(jax.random.PRNGKey(1), C, Cc)

    fwd = jax.jit(self_corr_attention_forward)
    dec_out, feat_out, weights_out = fwd(enc_corr, target, params)
    jax.block_until_ready((dec_out, feat_out, weights_out))

    # Basic sanity: shapes and finiteness of everything the kernel produced.
    assert dec_out[0].shape == (B, Cc, H, W) and dec_out[1].shape == (B, Cc, H, W)
    assert all(f.shape == (B, Cc, H, W) for f in feat_out)
    assert weights_out[0].shape == (B, T, H * W)
    assert all(w.shape == (B, H * W, H * W) for w in weights_out[1:])
    for arr in dec_out + feat_out + weights_out:
        assert np.all(np.isfinite(np.asarray(arr, dtype=np.float32)))

    print("KERNEL_OK")
</pallas_src>

<mosaic_0001>
module attributes {stable_mosaic.version = 11 : i64} {
  func.func @_fused_kernel(%arg0: i32, %arg1: memref<1x4x256xf32, #tpu.memory_space<vmem>>, %arg2: memref<1x4x32x256xf32, #tpu.memory_space<vmem>>, %arg3: memref<64x4xf32, #tpu.memory_space<vmem>>, %arg4: memref<64x1xf32, #tpu.memory_space<vmem>>, %arg5: memref<32x32xf32, #tpu.memory_space<vmem>>, %arg6: memref<32x1xf32, #tpu.memory_space<vmem>>, %arg7: memref<32x32xf32, #tpu.memory_space<vmem>>, %arg8: memref<32x1xf32, #tpu.memory_space<vmem>>, %arg9: memref<32x32xf32, #tpu.memory_space<vmem>>, %arg10: memref<32x1xf32, #tpu.memory_space<vmem>>, %arg11: memref<32x32xf32, #tpu.memory_space<vmem>>, %arg12: memref<32x1xf32, #tpu.memory_space<vmem>>, %arg13: memref<1x32x256xf32, #tpu.memory_space<vmem>>, %arg14: memref<1x32x256xf32, #tpu.memory_space<vmem>>, %arg15: memref<1x32x256xf32, #tpu.memory_space<vmem>>, %arg16: memref<1x32x256xf32, #tpu.memory_space<vmem>>, %arg17: memref<1x32x256xf32, #tpu.memory_space<vmem>>, %arg18: memref<1x32x256xf32, #tpu.memory_space<vmem>>, %arg19: memref<1x4x256xbf16, #tpu.memory_space<vmem>>, %arg20: memref<1x256x256xbf16, #tpu.memory_space<vmem>>, %arg21: memref<1x256x256xbf16, #tpu.memory_space<vmem>>, %arg22: memref<1x256x256xbf16, #tpu.memory_space<vmem>>) attributes {dimension_semantics = [#tpu.dimension_semantics<parallel>], iteration_bounds = array<i64: 2>, scalar_prefetch = 0 : i64, scratch_operands = 0 : i64, tpu.core_type = #tpu.core_type<tc>, window_params = [{transform_indices = @transform_0, window_bounds = array<i64: 1, 4, 256>}, {transform_indices = @transform_1, window_bounds = array<i64: 1, 4, 32, 256>}, {pipeline_mode = #tpu.pipeline_mode<synchronous>, transform_indices = @transform_2, window_bounds = array<i64: 64, 4>}, {pipeline_mode = #tpu.pipeline_mode<synchronous>, transform_indices = @transform_3, window_bounds = array<i64: 64, 1>}, {pipeline_mode = #tpu.pipeline_mode<synchronous>, transform_indices = @transform_4, window_bounds = array<i64: 32, 32>}, {pipeline_mode = #tpu.pipeline_mode<synchronous>, transform_indices = @transform_5, window_bounds = array<i64: 32, 1>}, {pipeline_mode = #tpu.pipeline_mode<synchronous>, transform_indices = @transform_6, window_bounds = array<i64: 32, 32>}, {pipeline_mode = #tpu.pipeline_mode<synchronous>, transform_indices = @transform_7, window_bounds = array<i64: 32, 1>}, {pipeline_mode = #tpu.pipeline_mode<synchronous>, transform_indices = @transform_8, window_bounds = array<i64: 32, 32>}, {pipeline_mode = #tpu.pipeline_mode<synchronous>, transform_indices = @transform_9, window_bounds = array<i64: 32, 1>}, {pipeline_mode = #tpu.pipeline_mode<synchronous>, transform_indices = @transform_10, window_bounds = array<i64: 32, 32>}, {pipeline_mode = #tpu.pipeline_mode<synchronous>, transform_indices = @transform_11, window_bounds = array<i64: 32, 1>}, {transform_indices = @transform_12, window_bounds = array<i64: 1, 32, 256>}, {transform_indices = @transform_13, window_bounds = array<i64: 1, 32, 256>}, {transform_indices = @transform_14, window_bounds = array<i64: 1, 32, 256>}, {transform_indices = @transform_15, window_bounds = array<i64: 1, 32, 256>}, {transform_indices = @transform_16, window_bounds = array<i64: 1, 32, 256>}, {transform_indices = @transform_17, window_bounds = array<i64: 1, 32, 256>}, {transform_indices = @transform_18, window_bounds = array<i64: 1, 4, 256>}, {transform_indices = @transform_19, window_bounds = array<i64: 1, 256, 256>}, {transform_indices = @transform_20, window_bounds = array<i64: 1, 256, 256>}, {transform_indices = @transform_21, window_bounds = array<i64: 1, 256, 256>}]} {
    %c0 = arith.constant 0 : index
    %c0_0 = arith.constant 0 : index
    %c0_1 = arith.constant 0 : index
    %0 = vector.load %arg1[%c0, %c0_0, %c0_1] : memref<1x4x256xf32, #tpu.memory_space<vmem>>, vector<1x4x256xf32>
    %1 = vector.shape_cast %0 : vector<1x4x256xf32> to vector<4x256xf32>
    %c0_2 = arith.constant 0 : index
    %c0_3 = arith.constant 0 : index
    %c0_4 = arith.constant 0 : index
    %c0_5 = arith.constant 0 : index
    %2 = vector.load %arg2[%c0_2, %c0_3, %c0_4, %c0_5] : memref<1x4x32x256xf32, #tpu.memory_space<vmem>>, vector<1x4x32x256xf32>
    %3 = vector.shape_cast %2 : vector<1x4x32x256xf32> to vector<4x32x256xf32>
    %c0_6 = arith.constant 0 : index
    %c0_7 = arith.constant 0 : index
    %4 = vector.load %arg3[%c0_6, %c0_7] : memref<64x4xf32, #tpu.memory_space<vmem>>, vector<64x4xf32>
    %5 = arith.truncf %4 : vector<64x4xf32> to vector<64x4xbf16>
    %6 = arith.truncf %1 : vector<4x256xf32> to vector<4x256xbf16>
    %cst = arith.constant dense<0.000000e+00> : vector<64x256xf32>
    %7 = tpu.matmul %5, %6, %cst {dimension_numbers = #tpu.dot_dimension_numbers<[1], [0], [0], [1], [0, 0, 1, 1], [], []>} : vector<64x4xbf16>, vector<4x256xbf16>, vector<64x256xf32> -> vector<64x256xf32>
    %c0_8 = arith.constant 0 : index
    %c0_9 = arith.constant 0 : index
    %8 = vector.load %arg4[%c0_8, %c0_9] : memref<64x1xf32, #tpu.memory_space<vmem>>, vector<64x1xf32>
    %9 = vector.broadcast %8 : vector<64x1xf32> to vector<64x256xf32>
    %10 = arith.addf %7, %9 : vector<64x256xf32>
    %11 = vector.extract_strided_slice %10 {offsets = [0, 0], sizes = [32, 256], strides = [1, 1]} : vector<64x256xf32> to vector<32x256xf32>
    %12 = vector.extract_strided_slice %10 {offsets = [32, 0], sizes = [32, 256], strides = [1, 1]} : vector<64x256xf32> to vector<32x256xf32>
    %c0_10 = arith.constant 0 : index
    %c0_11 = arith.constant 0 : index
    %c0_12 = arith.constant 0 : index
    %13 = vector.load %arg13[%c0_10, %c0_11, %c0_12] : memref<1x32x256xf32, #tpu.memory_space<vmem>>, vector<1x32x256xf32>
    %14 = vector.shape_cast %13 : vector<1x32x256xf32> to vector<32x256xf32>
    %15 = vector.shape_cast %11 : vector<32x256xf32> to vector<1x32x256xf32>
    tpu.vector_store %arg13[%c0_10, %c0_11, %c0_12], %15 {strides = array<i32>} : memref<1x32x256xf32, #tpu.memory_space<vmem>>, vector<1x32x256xf32>,
    %c0_13 = arith.constant 0 : index
    %c0_14 = arith.constant 0 : index
    %c0_15 = arith.constant 0 : index
    %16 = vector.load %arg14[%c0_13, %c0_14, %c0_15] : memref<1x32x256xf32, #tpu.memory_space<vmem>>, vector<1x32x256xf32>
    %17 = vector.shape_cast %16 : vector<1x32x256xf32> to vector<32x256xf32>
    %18 = vector.shape_cast %12 : vector<32x256xf32> to vector<1x32x256xf32>
    tpu.vector_store %arg14[%c0_13, %c0_14, %c0_15], %18 {strides = array<i32>} : memref<1x32x256xf32, #tpu.memory_space<vmem>>, vector<1x32x256xf32>,
    %19 = vector.extract_strided_slice %3 {offsets = [0, 0, 0], sizes = [1, 32, 256], strides = [1, 1, 1]} : vector<4x32x256xf32> to vector<1x32x256xf32>
    %20 = vector.shape_cast %19 : vector<1x32x256xf32> to vector<32x256xf32>
    %21 = arith.mulf %11, %20 : vector<32x256xf32>
    %cst_16 = arith.constant dense<0.000000e+00> : vector<256xf32>
    %22 = vector.multi_reduction <add>, %21, %cst_16 [0] : vector<32x256xf32> to vector<256xf32>
    %23 = vector.shape_cast %22 : vector<256xf32> to vector<1x256xf32>
    %24 = vector.extract_strided_slice %3 {offsets = [1, 0, 0], sizes = [1, 32, 256], strides = [1, 1, 1]} : vector<4x32x256xf32> to vector<1x32x256xf32>
    %25 = vector.shape_cast %24 : vector<1x32x256xf32> to vector<32x256xf32>
    %26 = arith.mulf %11, %25 : vector<32x256xf32>
    %cst_17 = arith.constant dense<0.000000e+00> : vector<256xf32>
    %27 = vector.multi_reduction <add>, %26, %cst_17 [0] : vector<32x256xf32> to vector<256xf32>
    %28 = vector.shape_cast %27 : vector<256xf32> to vector<1x256xf32>
    %29 = vector.extract_strided_slice %3 {offsets = [2, 0, 0], sizes = [1, 32, 256], strides = [1, 1, 1]} : vector<4x32x256xf32> to vector<1x32x256xf32>
    %30 = vector.shape_cast %29 : vector<1x32x256xf32> to vector<32x256xf32>
    %31 = arith.mulf %11, %30 : vector<32x256xf32>
    %cst_18 = arith.constant dense<0.000000e+00> : vector<256xf32>
    %32 = vector.multi_reduction <add>, %31, %cst_18 [0] : vector<32x256xf32> to vector<256xf32>
    %33 = vector.shape_cast %32 : vector<256xf32> to vector<1x256xf32>
    %34 = vector.extract_strided_slice %3 {offsets = [3, 0, 0], sizes = [1, 32, 256], strides = [1, 1, 1]} : vector<4x32x256xf32> to vector<1x32x256xf32>
    %35 = vector.shape_cast %34 : vector<1x32x256xf32> to vector<32x256xf32>
    %36 = arith.mulf %11, %35 : vector<32x256xf32>
    %cst_19 = arith.constant dense<0.000000e+00> : vector<256xf32>
    %37 = vector.multi_reduction <add>, %36, %cst_19 [0] : vector<32x256xf32> to vector<256xf32>
    %38 = vector.shape_cast %37 : vector<256xf32> to vector<1x256xf32>
    %39 = tpu.concatenate %23, %28, %33, %38 in 0 : vector<1x256xf32>, vector<1x256xf32>, vector<1x256xf32>, vector<1x256xf32> -> vector<4x256xf32>
    %cst_20 = arith.constant 0.176776692 : f32
    %40 = vector.broadcast %cst_20 : f32 to vector<4x256xf32>
    %41 = arith.mulf %39, %40 : vector<4x256xf32>
    %cst_21 = arith.constant dense<0xFF800000> : vector<256xf32>
    %42 = vector.multi_reduction <maximumf>, %41, %cst_21 [0] : vector<4x256xf32> to vector<256xf32>
    %43 = vector.shape_cast %42 : vector<256xf32> to vector<1x256xf32>
    %44 = vector.broadcast %43 : vector<1x256xf32> to vector<4x256xf32>
    %45 = arith.subf %41, %44 : vector<4x256xf32>
    %46 = math.exp %45 : vector<4x256xf32>
    %cst_22 = arith.constant dense<0.000000e+00> : vector<256xf32>
    %47 = vector.multi_reduction <add>, %46, %cst_22 [0] : vector<4x256xf32> to vector<256xf32>
    %48 = vector.shape_cast %47 : vector<256xf32> to vector<1x256xf32>
    %49 = tpu.reciprocal %48 {approx = true} : vector<1x256xf32> -> vector<1x256xf32>
    %50 = vector.broadcast %49 : vector<1x256xf32> to vector<4x256xf32>
    %51 = arith.mulf %46, %50 : vector<4x256xf32>
    %52 = arith.truncf %51 : vector<4x256xf32> to vector<4x256xbf16>
    %c0_23 = arith.constant 0 : index
    %c0_24 = arith.constant 0 : index
    %c0_25 = arith.constant 0 : index
    %53 = vector.load %arg19[%c0_23, %c0_24, %c0_25] : memref<1x4x256xbf16, #tpu.memory_space<vmem>>, vector<1x4x256xbf16>
    %54 = vector.shape_cast %53 : vector<1x4x256xbf16> to vector<4x256xbf16>
    %55 = vector.shape_cast %52 : vector<4x256xbf16> to vector<1x4x256xbf16>
    tpu.vector_store %arg19[%c0_23, %c0_24, %c0_25], %55 {strides = array<i32>} : memref<1x4x256xbf16, #tpu.memory_space<vmem>>, vector<1x4x256xbf16>,
    %56 = vector.extract_strided_slice %51 {offsets = [0, 0], sizes = [1, 256], strides = [1, 1]} : vector<4x256xf32> to vector<1x256xf32>
    %57 = vector.extract_strided_slice %3 {offsets = [0, 0, 0], sizes = [1, 32, 256], strides = [1, 1, 1]} : vector<4x32x256xf32> to vector<1x32x256xf32>
    %58 = vector.shape_cast %57 : vector<1x32x256xf32> to vector<32x256xf32>
    %59 = vector.broadcast %56 : vector<1x256xf32> to vector<32x256xf32>
    %60 = arith.mulf %59, %58 : vector<32x256xf32>
    %61 = vector.extract_strided_slice %51 {offsets = [1, 0], sizes = [1, 256], strides = [1, 1]} : vector<4x256xf32> to vector<1x256xf32>
    %62 = vector.extract_strided_slice %3 {offsets = [1, 0, 0], sizes = [1, 32, 256], strides = [1, 1, 1]} : vector<4x32x256xf32> to vector<1x32x256xf32>
    %63 = vector.shape_cast %62 : vector<1x32x256xf32> to vector<32x256xf32>
    %64 = vector.broadcast %61 : vector<1x256xf32> to vector<32x256xf32>
    %65 = arith.mulf %64, %63 : vector<32x256xf32>
    %66 = arith.addf %60, %65 : vector<32x256xf32>
    %67 = vector.extract_strided_slice %51 {offsets = [2, 0], sizes = [1, 256], strides = [1, 1]} : vector<4x256xf32> to vector<1x256xf32>
    %68 = vector.extract_strided_slice %3 {offsets = [2, 0, 0], sizes = [1, 32, 256], strides = [1, 1, 1]} : vector<4x32x256xf32> to vector<1x32x256xf32>
    %69 = vector.shape_cast %68 : vector<1x32x256xf32> to vector<32x256xf32>
    %70 = vector.broadcast %67 : vector<1x256xf32> to vector<32x256xf32>
    %71 = arith.mulf %70, %69 : vector<32x256xf32>
    %72 = arith.addf %66, %71 : vector<32x256xf32>
    %73 = vector.extract_strided_slice %51 {offsets = [3, 0], sizes = [1, 256], strides = [1, 1]} : vector<4x256xf32> to vector<1x256xf32>
    %74 = vector.extract_strided_slice %3 {offsets = [3, 0, 0], sizes = [1, 32, 256], strides = [1, 1, 1]} : vector<4x32x256xf32> to vector<1x32x256xf32>
    %75 = vector.shape_cast %74 : vector<1x32x256xf32> to vector<32x256xf32>
    %76 = vector.broadcast %73 : vector<1x256xf32> to vector<32x256xf32>
    %77 = arith.mulf %76, %75 : vector<32x256xf32>
    %78 = arith.addf %72, %77 : vector<32x256xf32>
    %c0_26 = arith.constant 0 : index
    %c0_27 = arith.constant 0 : index
    %79 = vector.load %arg5[%c0_26, %c0_27] : memref<32x32xf32, #tpu.memory_space<vmem>>, vector<32x32xf32>
    %80 = arith.truncf %79 : vector<32x32xf32> to vector<32x32xbf16>
    %81 = arith.truncf %78 : vector<32x256xf32> to vector<32x256xbf16>
    %cst_28 = arith.constant dense<0.000000e+00> : vector<32x256xf32>
    %82 = tpu.matmul %80, %81, %cst_28 {dimension_numbers = #tpu.dot_dimension_numbers<[1], [0], [0], [1], [0, 0, 1, 1], [], []>} : vector<32x32xbf16>, vector<32x256xbf16>, vector<32x256xf32> -> vector<32x256xf32>
    %c0_29 = arith.constant 0 : index
    %c0_30 = arith.constant 0 : index
    %83 = vector.load %arg6[%c0_29, %c0_30] : memref<32x1xf32, #tpu.memory_space<vmem>>, vector<32x1xf32>
    %84 = vector.broadcast %83 : vector<32x1xf32> to vector<32x256xf32>
    %85 = arith.addf %82, %84 : vector<32x256xf32>
    %c0_31 = arith.constant 0 : index
    %c0_32 = arith.constant 0 : index
    %c0_33 = arith.constant 0 : index
    %86 = vector.load %arg15[%c0_31, %c0_32, %c0_33] : memref<1x32x256xf32, #tpu.memory_space<vmem>>, vector<1x32x256xf32>
    %87 = vector.shape_cast %86 : vector<1x32x256xf32> to vector<32x256xf32>
    %88 = vector.shape_cast %85 : vector<32x256xf32> to vector<1x32x256xf32>
    tpu.vector_store %arg15[%c0_31, %c0_32, %c0_33], %88 {strides = array<i32>} : memref<1x32x256xf32, #tpu.memory_space<vmem>>, vector<1x32x256xf32>,
    %89 = arith.truncf %11 : vector<32x256xf32> to vector<32x256xbf16>
    %90 = arith.truncf %11 : vector<32x256xf32> to vector<32x256xbf16>
    %cst_34 = arith.constant dense<0.000000e+00> : vector<256x256xf32>
    %91 = tpu.matmul %89, %90, %cst_34 {dimension_numbers = #tpu.dot_dimension_numbers<[0], [0], [1], [1], [0, 1, 1, 1], [], []>} : vector<32x256xbf16>, vector<32x256xbf16>, vector<256x256xf32> -> vector<256x256xf32>
    %cst_35 = arith.constant 0.176776692 : f32
    %92 = vector.broadcast %cst_35 : f32 to vector<256x256xf32>
    %93 = arith.mulf %91, %92 : vector<256x256xf32>
    %cst_36 = arith.constant dense<0xFF800000> : vector<256xf32>
    %94 = vector.multi_reduction <maximumf>, %93, %cst_36 [1] : vector<256x256xf32> to vector<256xf32>
    %95 = vector.shape_cast %94 : vector<256xf32> to vector<256x1xf32>
    %96 = vector.broadcast %95 : vector<256x1xf32> to vector<256x256xf32>
    %97 = arith.subf %93, %96 : vector<256x256xf32>
    %98 = math.exp %97 : vector<256x256xf32>
    %cst_37 = arith.constant dense<0.000000e+00> : vector<256xf32>
    %99 = vector.multi_reduction <add>, %98, %cst_37 [1] : vector<256x256xf32> to vector<256xf32>
    %100 = vector.shape_cast %99 : vector<256xf32> to vector<256x1xf32>
    %101 = tpu.reciprocal %100 {approx = true} : vector<256x1xf32> -> vector<256x1xf32>
    %102 = vector.broadcast %101 : vector<256x1xf32> to vector<256x256xf32>
    %103 = arith.mulf %98, %102 : vector<256x256xf32>
    %104 = arith.truncf %11 : vector<32x256xf32> to vector<32x256xbf16>
    %105 = arith.truncf %103 : vector<256x256xf32> to vector<256x256xbf16>
    %cst_38 = arith.constant dense<0.000000e+00> : vector<32x256xf32>
    %106 = tpu.matmul %104, %105, %cst_38 {dimension_numbers = #tpu.dot_dimension_numbers<[1], [1], [0], [0], [0, 0, 1, 0], [], []>} : vector<32x256xbf16>, vector<256x256xbf16>, vector<32x256xf32> -> vector<32x256xf32>
    %107 = arith.truncf %103 : vector<256x256xf32> to vector<256x256xbf16>
    %c0_39 = arith.constant 0 : index
    %c0_40 = arith.constant 0 : index
    %c0_41 = arith.constant 0 : index
    %108 = vector.load %arg20[%c0_39, %c0_40, %c0_41] : memref<1x256x256xbf16, #tpu.memory_space<vmem>>, vector<1x256x256xbf16>
    %109 = vector.shape_cast %108 : vector<1x256x256xbf16> to vector<256x256xbf16>
    %110 = vector.shape_cast %107 : vector<256x256xbf16> to vector<1x256x256xbf16>
    tpu.vector_store %arg20[%c0_39, %c0_40, %c0_41], %110 {strides = array<i32>} : memref<1x256x256xbf16, #tpu.memory_space<vmem>>, vector<1x256x256xbf16>,
    %c0_42 = arith.constant 0 : index
    %c0_43 = arith.constant 0 : index
    %111 = vector.load %arg7[%c0_42, %c0_43] : memref<32x32xf32, #tpu.memory_space<vmem>>, vector<32x32xf32>
    %112 = arith.truncf %111 : vector<32x32xf32> to vector<32x32xbf16>
    %113 = arith.truncf %106 : vector<32x256xf32> to vector<32x256xbf16>
    %cst_44 = arith.constant dense<0.000000e+00> : vector<32x256xf32>
    %114 = tpu.matmul %112, %113, %cst_44 {dimension_numbers = #tpu.dot_dimension_numbers<[1], [0], [0], [1], [0, 0, 1, 1], [], []>} : vector<32x32xbf16>, vector<32x256xbf16>, vector<32x256xf32> -> vector<32x256xf32>
    %c0_45 = arith.constant 0 : index
    %c0_46 = arith.constant 0 : index
    %115 = vector.load %arg8[%c0_45, %c0_46] : memref<32x1xf32, #tpu.memory_space<vmem>>, vector<32x1xf32>
    %116 = vector.broadcast %115 : vector<32x1xf32> to vector<32x256xf32>
    %117 = arith.addf %114, %116 : vector<32x256xf32>
    %c0_47 = arith.constant 0 : index
    %c0_48 = arith.constant 0 : index
    %c0_49 = arith.constant 0 : index
    %118 = vector.load %arg16[%c0_47, %c0_48, %c0_49] : memref<1x32x256xf32, #tpu.memory_space<vmem>>, vector<1x32x256xf32>
    %119 = vector.shape_cast %118 : vector<1x32x256xf32> to vector<32x256xf32>
    %120 = vector.shape_cast %117 : vector<32x256xf32> to vector<1x32x256xf32>
    tpu.vector_store %arg16[%c0_47, %c0_48, %c0_49], %120 {strides = array<i32>} : memref<1x32x256xf32, #tpu.memory_space<vmem>>, vector<1x32x256xf32>,
    %121 = arith.truncf %85 : vector<32x256xf32> to vector<32x256xbf16>
    %122 = arith.truncf %117 : vector<32x256xf32> to vector<32x256xbf16>
    %cst_50 = arith.constant dense<0.000000e+00> : vector<256x256xf32>
    %123 = tpu.matmul %121, %122, %cst_50 {dimension_numbers = #tpu.dot_dimension_numbers<[0], [0], [1], [1], [0, 1, 1, 1], [], []>} : vector<32x256xbf16>, vector<32x256xbf16>, vector<256x256xf32> -> vector<256x256xf32>
    %cst_51 = arith.constant 0.176776692 : f32
    %124 = vector.broadcast %cst_51 : f32 to vector<256x256xf32>
    %125 = arith.mulf %123, %124 : vector<256x256xf32>
    %cst_52 = arith.constant dense<0xFF800000> : vector<256xf32>
    %126 = vector.multi_reduction <maximumf>, %125, %cst_52 [1] : vector<256x256xf32> to vector<256xf32>
    %127 = vector.shape_cast %126 : vector<256xf32> to vector<256x1xf32>
    %128 = vector.broadcast %127 : vector<256x1xf32> to vector<256x256xf32>
    %129 = arith.subf %125, %128 : vector<256x256xf32>
    %130 = math.exp %129 : vector<256x256xf32>
    %cst_53 = arith.constant dense<0.000000e+00> : vector<256xf32>
    %131 = vector.multi_reduction <add>, %130, %cst_53 [1] : vector<256x256xf32> to vector<256xf32>
    %132 = vector.shape_cast %131 : vector<256xf32> to vector<256x1xf32>
    %133 = tpu.reciprocal %132 {approx = true} : vector<256x1xf32> -> vector<256x1xf32>
    %134 = vector.broadcast %133 : vector<256x1xf32> to vector<256x256xf32>
    %135 = arith.mulf %130, %134 : vector<256x256xf32>
    %136 = arith.truncf %117 : vector<32x256xf32> to vector<32x256xbf16>
    %137 = arith.truncf %135 : vector<256x256xf32> to vector<256x256xbf16>
    %cst_54 = arith.constant dense<0.000000e+00> : vector<32x256xf32>
    %138 = tpu.matmul %136, %137, %cst_54 {dimension_numbers = #tpu.dot_dimension_numbers<[1], [1], [0], [0], [0, 0, 1, 0], [], []>} : vector<32x256xbf16>, vector<256x256xbf16>, vector<32x256xf32> -> vector<32x256xf32>
    %139 = arith.truncf %135 : vector<256x256xf32> to vector<256x256xbf16>
    %c0_55 = arith.constant 0 : index
    %c0_56 = arith.constant 0 : index
    %c0_57 = arith.constant 0 : index
    %140 = vector.load %arg21[%c0_55, %c0_56, %c0_57] : memref<1x256x256xbf16, #tpu.memory_space<vmem>>, vector<1x256x256xbf16>
    %141 = vector.shape_cast %140 : vector<1x256x256xbf16> to vector<256x256xbf16>
    %142 = vector.shape_cast %139 : vector<256x256xbf16> to vector<1x256x256xbf16>
    tpu.vector_store %arg21[%c0_55, %c0_56, %c0_57], %142 {strides = array<i32>} : memref<1x256x256xbf16, #tpu.memory_space<vmem>>, vector<1x256x256xbf16>,
    %c0_58 = arith.constant 0 : index
    %c0_59 = arith.constant 0 : index
    %143 = vector.load %arg9[%c0_58, %c0_59] : memref<32x32xf32, #tpu.memory_space<vmem>>, vector<32x32xf32>
    %144 = arith.truncf %143 : vector<32x32xf32> to vector<32x32xbf16>
    %145 = arith.truncf %138 : vector<32x256xf32> to vector<32x256xbf16>
    %cst_60 = arith.constant dense<0.000000e+00> : vector<32x256xf32>
    %146 = tpu.matmul %144, %145, %cst_60 {dimension_numbers = #tpu.dot_dimension_numbers<[1], [0], [0], [1], [0, 0, 1, 1], [], []>} : vector<32x32xbf16>, vector<32x256xbf16>, vector<32x256xf32> -> vector<32x256xf32>
    %c0_61 = arith.constant 0 : index
    %c0_62 = arith.constant 0 : index
    %147 = vector.load %arg10[%c0_61, %c0_62] : memref<32x1xf32, #tpu.memory_space<vmem>>, vector<32x1xf32>
    %148 = vector.broadcast %147 : vector<32x1xf32> to vector<32x256xf32>
    %149 = arith.addf %146, %148 : vector<32x256xf32>
    %c0_63 = arith.constant 0 : index
    %c0_64 = arith.constant 0 : index
    %c0_65 = arith.constant 0 : index
    %150 = vector.load %arg17[%c0_63, %c0_64, %c0_65] : memref<1x32x256xf32, #tpu.memory_space<vmem>>, vector<1x32x256xf32>
    %151 = vector.shape_cast %150 : vector<1x32x256xf32> to vector<32x256xf32>
    %152 = vector.shape_cast %149 : vector<32x256xf32> to vector<1x32x256xf32>
    tpu.vector_store %arg17[%c0_63, %c0_64, %c0_65], %152 {strides = array<i32>} : memref<1x32x256xf32, #tpu.memory_space<vmem>>, vector<1x32x256xf32>,
    %153 = arith.truncf %117 : vector<32x256xf32> to vector<32x256xbf16>
    %154 = arith.truncf %85 : vector<32x256xf32> to vector<32x256xbf16>
    %cst_66 = arith.constant dense<0.000000e+00> : vector<256x256xf32>
    %155 = tpu.matmul %153, %154, %cst_66 {dimension_numbers = #tpu.dot_dimension_numbers<[0], [0], [1], [1], [0, 1, 1, 1], [], []>} : vector<32x256xbf16>, vector<32x256xbf16>, vector<256x256xf32> -> vector<256x256xf32>
    %cst_67 = arith.constant 0.176776692 : f32
    %156 = vector.broadcast %cst_67 : f32 to vector<256x256xf32>
    %157 = arith.mulf %155, %156 : vector<256x256xf32>
    %cst_68 = arith.constant dense<0xFF800000> : vector<256xf32>
    %158 = vector.multi_reduction <maximumf>, %157, %cst_68 [1] : vector<256x256xf32> to vector<256xf32>
    %159 = vector.shape_cast %158 : vector<256xf32> to vector<256x1xf32>
    %160 = vector.broadcast %159 : vector<256x1xf32> to vector<256x256xf32>
    %161 = arith.subf %157, %160 : vector<256x256xf32>
    %162 = math.exp %161 : vector<256x256xf32>
    %cst_69 = arith.constant dense<0.000000e+00> : vector<256xf32>
    %163 = vector.multi_reduction <add>, %162, %cst_69 [1] : vector<256x256xf32> to vector<256xf32>
    %164 = vector.shape_cast %163 : vector<256xf32> to vector<256x1xf32>
    %165 = tpu.reciprocal %164 {approx = true} : vector<256x1xf32> -> vector<256x1xf32>
    %166 = vector.broadcast %165 : vector<256x1xf32> to vector<256x256xf32>
    %167 = arith.mulf %162, %166 : vector<256x256xf32>
    %168 = arith.truncf %85 : vector<32x256xf32> to vector<32x256xbf16>
    %169 = arith.truncf %167 : vector<256x256xf32> to vector<256x256xbf16>
    %cst_70 = arith.constant dense<0.000000e+00> : vector<32x256xf32>
    %170 = tpu.matmul %168, %169, %cst_70 {dimension_numbers = #tpu.dot_dimension_numbers<[1], [1], [0], [0], [0, 0, 1, 0], [], []>} : vector<32x256xbf16>, vector<256x256xbf16>, vector<32x256xf32> -> vector<32x256xf32>
    %171 = arith.truncf %167 : vector<256x256xf32> to vector<256x256xbf16>
    %c0_71 = arith.constant 0 : index
    %c0_72 = arith.constant 0 : index
    %c0_73 = arith.constant 0 : index
    %172 = vector.load %arg22[%c0_71, %c0_72, %c0_73] : memref<1x256x256xbf16, #tpu.memory_space<vmem>>, vector<1x256x256xbf16>
    %173 = vector.shape_cast %172 : vector<1x256x256xbf16> to vector<256x256xbf16>
    %174 = vector.shape_cast %171 : vector<256x256xbf16> to vector<1x256x256xbf16>
    tpu.vector_store %arg22[%c0_71, %c0_72, %c0_73], %174 {strides = array<i32>} : memref<1x256x256xbf16, #tpu.memory_space<vmem>>, vector<1x256x256xbf16>,
    %c0_74 = arith.constant 0 : index
    %c0_75 = arith.constant 0 : index
    %175 = vector.load %arg11[%c0_74, %c0_75] : memref<32x32xf32, #tpu.memory_space<vmem>>, vector<32x32xf32>
    %176 = arith.truncf %175 : vector<32x32xf32> to vector<32x32xbf16>
    %177 = arith.truncf %170 : vector<32x256xf32> to vector<32x256xbf16>
    %cst_76 = arith.constant dense<0.000000e+00> : vector<32x256xf32>
    %178 = tpu.matmul %176, %177, %cst_76 {dimension_numbers = #tpu.dot_dimension_numbers<[1], [0], [0], [1], [0, 0, 1, 1], [], []>} : vector<32x32xbf16>, vector<32x256xbf16>, vector<32x256xf32> -> vector<32x256xf32>
    %c0_77 = arith.constant 0 : index
    %c0_78 = arith.constant 0 : index
    %179 = vector.load %arg12[%c0_77, %c0_78] : memref<32x1xf32, #tpu.memory_space<vmem>>, vector<32x1xf32>
    %180 = vector.broadcast %179 : vector<32x1xf32> to vector<32x256xf32>
    %181 = arith.addf %178, %180 : vector<32x256xf32>
    %c0_79 = arith.constant 0 : index
    %c0_80 = arith.constant 0 : index
    %c0_81 = arith.constant 0 : index
    %182 = vector.load %arg18[%c0_79, %c0_80, %c0_81] : memref<1x32x256xf32, #tpu.memory_space<vmem>>, vector<1x32x256xf32>
    %183 = vector.shape_cast %182 : vector<1x32x256xf32> to vector<32x256xf32>
    %184 = vector.shape_cast %181 : vector<32x256xf32> to vector<1x32x256xf32>
    tpu.vector_store %arg18[%c0_79, %c0_80, %c0_81], %184 {strides = array<i32>} : memref<1x32x256xf32, #tpu.memory_space<vmem>>, vector<1x32x256xf32>,
    return
  }
  func.func @transform_0(%arg0: i32) -> (i32, i32, i32) {
    %c0_i32 = arith.constant 0 : i32
    %c0_i32_0 = arith.constant 0 : i32
    %c0_i32_1 = arith.constant 0 : i32
    return %arg0, %c0_i32, %c0_i32_0 : i32, i32, i32
  }
  func.func @transform_1(%arg0: i32) -> (i32, i32, i32, i32) {
    %c0_i32 = arith.constant 0 : i32
    %c0_i32_0 = arith.constant 0 : i32
    %c0_i32_1 = arith.constant 0 : i32
    %c0_i32_2 = arith.constant 0 : i32
    return %arg0, %c0_i32, %c0_i32_0, %c0_i32_1 : i32, i32, i32, i32
  }
  func.func @transform_2(%arg0: i32) -> (i32, i32) {
    %c0_i32 = arith.constant 0 : i32
    %c0_i32_0 = arith.constant 0 : i32
    %c0_i32_1 = arith.constant 0 : i32
    return %c0_i32, %c0_i32_0 : i32, i32
  }
  func.func @transform_3(%arg0: i32) -> (i32, i32) {
    %c0_i32 = arith.constant 0 : i32
    %c0_i32_0 = arith.constant 0 : i32
    %c0_i32_1 = arith.constant 0 : i32
    return %c0_i32, %c0_i32_0 : i32, i32
  }
  func.func @transform_4(%arg0: i32) -> (i32, i32) {
    %c0_i32 = arith.constant 0 : i32
    %c0_i32_0 = arith.constant 0 : i32
    %c0_i32_1 = arith.constant 0 : i32
    return %c0_i32, %c0_i32_0 : i32, i32
  }
  func.func @transform_5(%arg0: i32) -> (i32, i32) {
    %c0_i32 = arith.constant 0 : i32
    %c0_i32_0 = arith.constant 0 : i32
    %c0_i32_1 = arith.constant 0 : i32
    return %c0_i32, %c0_i32_0 : i32, i32
  }
  func.func @transform_6(%arg0: i32) -> (i32, i32) {
    %c0_i32 = arith.constant 0 : i32
    %c0_i32_0 = arith.constant 0 : i32
    %c0_i32_1 = arith.constant 0 : i32
    return %c0_i32, %c0_i32_0 : i32, i32
  }
  func.func @transform_7(%arg0: i32) -> (i32, i32) {
    %c0_i32 = arith.constant 0 : i32
    %c0_i32_0 = arith.constant 0 : i32
    %c0_i32_1 = arith.constant 0 : i32
    return %c0_i32, %c0_i32_0 : i32, i32
  }
  func.func @transform_8(%arg0: i32) -> (i32, i32) {
    %c0_i32 = arith.constant 0 : i32
    %c0_i32_0 = arith.constant 0 : i32
    %c0_i32_1 = arith.constant 0 : i32
    return %c0_i32, %c0_i32_0 : i32, i32
  }
  func.func @transform_9(%arg0: i32) -> (i32, i32) {
    %c0_i32 = arith.constant 0 : i32
    %c0_i32_0 = arith.constant 0 : i32
    %c0_i32_1 = arith.constant 0 : i32
    return %c0_i32, %c0_i32_0 : i32, i32
  }
  func.func @transform_10(%arg0: i32) -> (i32, i32) {
    %c0_i32 = arith.constant 0 : i32
    %c0_i32_0 = arith.constant 0 : i32
    %c0_i32_1 = arith.constant 0 : i32
    return %c0_i32, %c0_i32_0 : i32, i32
  }
  func.func @transform_11(%arg0: i32) -> (i32, i32) {
    %c0_i32 = arith.constant 0 : i32
    %c0_i32_0 = arith.constant 0 : i32
    %c0_i32_1 = arith.constant 0 : i32
    return %c0_i32, %c0_i32_0 : i32, i32
  }
  func.func @transform_12(%arg0: i32) -> (i32, i32, i32) {
    %c0_i32 = arith.constant 0 : i32
    %c0_i32_0 = arith.constant 0 : i32
    %c0_i32_1 = arith.constant 0 : i32
    return %arg0, %c0_i32, %c0_i32_0 : i32, i32, i32
  }
  func.func @transform_13(%arg0: i32) -> (i32, i32, i32) {
    %c0_i32 = arith.constant 0 : i32
    %c0_i32_0 = arith.constant 0 : i32
    %c0_i32_1 = arith.constant 0 : i32
    return %arg0, %c0_i32, %c0_i32_0 : i32, i32, i32
  }
  func.func @transform_14(%arg0: i32) -> (i32, i32, i32) {
    %c0_i32 = arith.constant 0 : i32
    %c0_i32_0 = arith.constant 0 : i32
    %c0_i32_1 = arith.constant 0 : i32
    return %arg0, %c0_i32, %c0_i32_0 : i32, i32, i32
  }
  func.func @transform_15(%arg0: i32) -> (i32, i32, i32) {
    %c0_i32 = arith.constant 0 : i32
    %c0_i32_0 = arith.constant 0 : i32
    %c0_i32_1 = arith.constant 0 : i32
    return %arg0, %c0_i32, %c0_i32_0 : i32, i32, i32
  }
  func.func @transform_16(%arg0: i32) -> (i32, i32, i32) {
    %c0_i32 = arith.constant 0 : i32
    %c0_i32_0 = arith.constant 0 : i32
    %c0_i32_1 = arith.constant 0 : i32
    return %arg0, %c0_i32, %c0_i32_0 : i32, i32, i32
  }
  func.func @transform_17(%arg0: i32) -> (i32, i32, i32) {
    %c0_i32 = arith.constant 0 : i32
    %c0_i32_0 = arith.constant 0 : i32
    %c0_i32_1 = arith.constant 0 : i32
    return %arg0, %c0_i32, %c0_i32_0 : i32, i32, i32
  }
  func.func @transform_18(%arg0: i32) -> (i32, i32, i32) {
    %c0_i32 = arith.constant 0 : i32
    %c0_i32_0 = arith.constant 0 : i32
    %c0_i32_1 = arith.constant 0 : i32
    return %arg0, %c0_i32, %c0_i32_0 : i32, i32, i32
  }
  func.func @transform_19(%arg0: i32) -> (i32, i32, i32) {
    %c0_i32 = arith.constant 0 : i32
    %c0_i32_0 = arith.constant 0 : i32
    %c0_i32_1 = arith.constant 0 : i32
    return %arg0, %c0_i32, %c0_i32_0 : i32, i32, i32
  }
  func.func @transform_20(%arg0: i32) -> (i32, i32, i32) {
    %c0_i32 = arith.constant 0 : i32
    %c0_i32_0 = arith.constant 0 : i32
    %c0_i32_1 = arith.constant 0 : i32
    return %arg0, %c0_i32, %c0_i32_0 : i32, i32, i32
  }
  func.func @transform_21(%arg0: i32) -> (i32, i32, i32) {
    %c0_i32 = arith.constant 0 : i32
    %c0_i32_0 = arith.constant 0 : i32
    %c0_i32_1 = arith.constant 0 : i32
    return %arg0, %c0_i32, %c0_i32_0 : i32, i32, i32
  }
}

</mosaic_0001>

<llo_original>
// kernel: self_corr_attention_forward.1
$region0: #{self_corr_attention_forward.1}
  #allocation0 [shape = 'u32[]', space=smem, size = 0x4, offset = 0x4, fixed_abs, tag = 'smem constant byte address 0x4 - core index']
  #allocation1 [shape = 'u32[144,128]{1,0:T(1,128)}', space=vmem, size = 0x12000, scoped, tag = 'internal scratch']
  %s0 = inlined_call_operand.vmem [shape: f32[2,4,256], index: 0, kind: input, shape index: {}]
  %s1 = inlined_call_operand.vmem [shape: f32[2,4,32,256], index: 1, kind: input, shape index: {}]
  %s2 = inlined_call_operand.vmem [shape: f32[64,4], index: 2, kind: input, shape index: {}]
  %s3 = inlined_call_operand.vmem [shape: f32[64,1], index: 3, kind: input, shape index: {}]
  %s4 = inlined_call_operand.vmem [shape: f32[32,32], index: 4, kind: input, shape index: {}]
  %s5 = inlined_call_operand.vmem [shape: f32[32,1], index: 5, kind: input, shape index: {}]
  %s6 = inlined_call_operand.vmem [shape: f32[32,32], index: 6, kind: input, shape index: {}]
  %s7 = inlined_call_operand.vmem [shape: f32[32,1], index: 7, kind: input, shape index: {}]
  %s8 = inlined_call_operand.vmem [shape: f32[32,32], index: 8, kind: input, shape index: {}]
  %s9 = inlined_call_operand.vmem [shape: f32[32,1], index: 9, kind: input, shape index: {}]
  %s10 = inlined_call_operand.vmem [shape: f32[32,32], index: 10, kind: input, shape index: {}]
  %s11 = inlined_call_operand.vmem [shape: f32[32,1], index: 11, kind: input, shape index: {}]
  %s12 = inlined_call_operand.vmem [shape: f32[2,32,256], index: 12, kind: output, shape index: {0}]
  %s13 = inlined_call_operand.vmem [shape: f32[2,32,256], index: 13, kind: output, shape index: {1}]
  %s14 = inlined_call_operand.vmem [shape: f32[2,32,256], index: 14, kind: output, shape index: {2}]
  %s15 = inlined_call_operand.vmem [shape: f32[2,32,256], index: 15, kind: output, shape index: {3}]
  %s16 = inlined_call_operand.vmem [shape: f32[2,32,256], index: 16, kind: output, shape index: {4}]
  %s17 = inlined_call_operand.vmem [shape: f32[2,32,256], index: 17, kind: output, shape index: {5}]
  %s18 = inlined_call_operand.hbm [shape: bf16[2,4,256], index: 18, kind: output, shape index: {6}]
  %s19 = inlined_call_operand.hbm [shape: bf16[2,256,256], index: 19, kind: output, shape index: {7}]
  %s20 = inlined_call_operand.hbm [shape: bf16[2,256,256], index: 20, kind: output, shape index: {8}]
  %s21 = inlined_call_operand.hbm [shape: bf16[2,256,256], index: 21, kind: output, shape index: {9}]
  %22 = xla_tuple %s12, %s13, %s14, %s15, %s16, %s17, %s18, %s19, %s20, %s21
  %s23 = sld [smem:[#allocation0]]
  $region153: #{self_corr_attention_forward.1} parent=0
    _
  %s25 = ssub.s32 1, %s23
  %s26 = scalar_select 0, %s25, %s23
  $region1: #{self_corr_attention_forward.1} parent=0
    #allocation2 [shape = 'u8[4096]{0}', space=vmem, size = 0x1000, scoped, tag = 'output window, operand 6']
    #allocation3 [shape = 's32[2]{0}', space=sflag, size = 0x8, scoped, tag = 'scoped memory for self_corr_attention_forward.1']
    #allocation4 [shape = 'u8[262144]{0}', space=vmem, size = 0x40000, scoped, tag = 'output window, operand 7']
    #allocation5 [shape = 's32[2]{0}', space=sflag, size = 0x8, scoped, tag = 'scoped memory for self_corr_attention_forward.1']
    #allocation6 [shape = 'u8[262144]{0}', space=vmem, size = 0x40000, scoped, tag = 'output window, operand 8']
    #allocation7 [shape = 'u8[262144]{0}', space=vmem, size = 0x40000, scoped, tag = 'output window, operand 9']
    #allocation8 [shape = 's32[2]{0}', space=sflag, size = 0x8, scoped, tag = 'scoped memory for self_corr_attention_forward.1']
    %27 = vsyncpa [#allocation3], 0
    %s28 = scalar_lea.sflag [#allocation3], 1
    %29 = vsyncpa %s28, 0
    %30 = vsyncpa [#allocation5], 0
    %s31 = scalar_lea.sflag [#allocation5], 1
    %32 = vsyncpa %s31, 0
    %33 = vsyncpa [#allocation8], 0
    %s34 = scalar_lea.sflag [#allocation8], 1
    %35 = vsyncpa %s34, 0
    loop: start=0, step=1, limit=4
    $region2: #{self_corr_attention_forward.1} parent=1 // loop_pre_header
      _
    $region3: #{self_corr_attention_forward.1} parent=1 // loop_header
      %s37 = sphi 0, %s41
      %p38 = scmp.ge.s32.totalorder %s37, 4
      %s47 = sphi 0, %s49
      %s50 = sphi 0, %s47
      %s51 = sphi 0, %s50
      %s67 = sphi 0, %s51
      %s73 = sphi 0, %s75
      %s76 = sphi 0, %s73
      %s77 = sphi 0, %s76
      %s93 = sphi 0, %s77
      %s97 = sphi 0, %s97
      %s99 = sphi 0, %s97
      %s100 = sphi 0, %s99
      %s114 = sphi 0, %s100
      %s118 = sphi 0, %s118
      %s120 = sphi 0, %s118
      %s121 = sphi 0, %s120
      %s135 = sphi 0, %s121
      %s139 = sphi 0, %s139
      %s141 = sphi 0, %s139
      %s142 = sphi 0, %s141
      %s156 = sphi 0, %s142
      %s160 = sphi 0, %s160
      %s162 = sphi 0, %s160
      %s163 = sphi 0, %s162
      %s177 = sphi 0, %s163
      %s181 = sphi 0, %s181
      %s183 = sphi 0, %s181
      %s184 = sphi 0, %s183
      %s198 = sphi 0, %s184
      %s202 = sphi 0, %s202
      %s204 = sphi 0, %s202
      %s205 = sphi 0, %s204
      %s219 = sphi 0, %s205
      %s223 = sphi 0, %s223
      %s225 = sphi 0, %s223
      %s226 = sphi 0, %s225
      %s240 = sphi 0, %s226
      %s244 = sphi 0, %s244
      %s246 = sphi 0, %s244
      %s247 = sphi 0, %s246
      %s261 = sphi 0, %s247
      %s265 = sphi 0, %s265
      %s267 = sphi 0, %s265
      %s268 = sphi 0, %s267
      %s282 = sphi 0, %s268
      %s286 = sphi 0, %s286
      %s288 = sphi 0, %s286
      %s289 = sphi 0, %s288
      %s303 = sphi 0, %s289
      %s309 = sphi 0, %s311
      %s312 = sphi 0, %s309
      %s313 = sphi 0, %s312
      %s329 = sphi 0, %s313
      %s335 = sphi 0, %s337
      %s338 = sphi 0, %s335
      %s339 = sphi 0, %s338
      %s355 = sphi 0, %s339
      %s361 = sphi 0, %s363
      %s364 = sphi 0, %s361
      %s365 = sphi 0, %s364
      %s381 = sphi 0, %s365
      %s387 = sphi 0, %s389
      %s390 = sphi 0, %s387
      %s391 = sphi 0, %s390
      %s407 = sphi 0, %s391
      %s413 = sphi 0, %s415
      %s416 = sphi 0, %s413
      %s417 = sphi 0, %s416
      %s433 = sphi 0, %s417
      %s439 = sphi 0, %s441
      %s442 = sphi 0, %s439
      %s443 = sphi 0, %s442
      %s459 = sphi 0, %s443
      %s465 = sphi 0, %s467
      %s468 = sphi 0, %s465
      %s469 = sphi 0, %s468
      %s485 = sphi 0, %s469
      %s491 = sphi 0, %s493
      %s494 = sphi 0, %s491
      %s495 = sphi 0, %s494
      %s511 = sphi 0, %s495
      %s517 = sphi 0, %s519
      %s520 = sphi 0, %s517
      %s521 = sphi 0, %s520
      %s537 = sphi 0, %s521
      %s543 = sphi 0, %s545
      %s546 = sphi 0, %s543
      %s547 = sphi 0, %s546
      %s563 = sphi 0, %s547
    $region4: #{self_corr_attention_forward.1} parent=1 // loop_header_branch
      %40 = sbr.rel (%p38) target = $region8
    $region5: #{self_corr_attention_forward.1} parent=1 // loop_body
      %s42 = ssub.s32 %s37, 1
      %s43 = ssub.s32 %s37, 2
      %s44 = sadd.s32 %s37, 1
      %s45 = ssub.s32 %s37, %s44
      %p46 = scmp.eq.s32.totalorder %s45, 0
      %s48 = sadd.s32 %s47, 1
      %s49 = scalar_select %p46, %s47, %s48
      %p52 = pneg %p46
      %p53 = scmp.eq.s32.totalorder %s37, 1
      %p54 = por %p52, %p53
      %p55 = scmp.ne.s32.totalorder %s47, %s50
      %p56 = scmp.eq.s32.totalorder %s37, 0
      %p57 = por %p55, %p56
      %p58 = scmp.ne.s32.totalorder %s47, %s50
      %p59 = scmp.eq.s32.totalorder %s42, 1
      %p60 = por %p58, %p59
      %p61 = scmp.ne.s32.totalorder %s50, %s51
      %p62 = scmp.eq.s32.totalorder %s42, 0
      %p63 = por %p61, %p62
      %p64 = scmp.ne.s32.totalorder %s50, %s51
      %p65 = scmp.eq.s32.totalorder %s43, 1
      %p66 = por %p64, %p65
      %p68 = scmp.ne.s32.totalorder %s51, %s67
      %p69 = scmp.eq.s32.totalorder %s43, 0
      %p70 = por %p68, %p69
      %s71 = ssub.s32 %s37, %s44
      %p72 = scmp.eq.s32.totalorder %s71, 0
      %s74 = sadd.s32 %s73, 1
      %s75 = scalar_select %p72, %s73, %s74
      %p78 = pneg %p72
      %p79 = scmp.eq.s32.totalorder %s37, 1
      %p80 = por %p78, %p79
      %p81 = scmp.ne.s32.totalorder %s73, %s76
      %p82 = scmp.eq.s32.totalorder %s37, 0
      %p83 = por %p81, %p82
      %p84 = scmp.ne.s32.totalorder %s73, %s76
      %p85 = scmp.eq.s32.totalorder %s42, 1
      %p86 = por %p84, %p85
      %p87 = scmp.ne.s32.totalorder %s76, %s77
      %p88 = scmp.eq.s32.totalorder %s42, 0
      %p89 = por %p87, %p88
      %p90 = scmp.ne.s32.totalorder %s76, %s77
      %p91 = scmp.eq.s32.totalorder %s43, 1
      %p92 = por %p90, %p91
      %p94 = scmp.ne.s32.totalorder %s77, %s93
      %p95 = scmp.eq.s32.totalorder %s43, 0
      %p96 = por %p94, %p95
      %s98 = sadd.s32 %s97, 1
      %p101 = scmp.eq.s32.totalorder %s37, 1
      %p102 = scmp.ne.s32.totalorder %s97, %s99
      %p103 = scmp.eq.s32.totalorder %s37, 0
      %p104 = por %p102, %p103
      %p105 = scmp.ne.s32.totalorder %s97, %s99
      %p106 = scmp.eq.s32.totalorder %s42, 1
      %p107 = por %p105, %p106
      %p108 = scmp.ne.s32.totalorder %s99, %s100
      %p109 = scmp.eq.s32.totalorder %s42, 0
      %p110 = por %p108, %p109
      %p111 = scmp.ne.s32.totalorder %s99, %s100
      %p112 = scmp.eq.s32.totalorder %s43, 1
      %p113 = por %p111, %p112
      %p115 = scmp.ne.s32.totalorder %s100, %s114
      %p116 = scmp.eq.s32.totalorder %s43, 0
      %p117 = por %p115, %p116
      %s119 = sadd.s32 %s118, 1
      %p122 = scmp.eq.s32.totalorder %s37, 1
      %p123 = scmp.ne.s32.totalorder %s118, %s120
      %p124 = scmp.eq.s32.totalorder %s37, 0
      %p125 = por %p123, %p124
      %p126 = scmp.ne.s32.totalorder %s118, %s120
      %p127 = scmp.eq.s32.totalorder %s42, 1
      %p128 = por %p126, %p127
      %p129 = scmp.ne.s32.totalorder %s120, %s121
      %p130 = scmp.eq.s32.totalorder %s42, 0
      %p131 = por %p129, %p130
      %p132 = scmp.ne.s32.totalorder %s120, %s121
      %p133 = scmp.eq.s32.totalorder %s43, 1
      %p134 = por %p132, %p133
      %p136 = scmp.ne.s32.totalorder %s121, %s135
      %p137 = scmp.eq.s32.totalorder %s43, 0
      %p138 = por %p136, %p137
      %s140 = sadd.s32 %s139, 1
      %p143 = scmp.eq.s32.totalorder %s37, 1
      %p144 = scmp.ne.s32.totalorder %s139, %s141
      %p145 = scmp.eq.s32.totalorder %s37, 0
      %p146 = por %p144, %p145
      %p147 = scmp.ne.s32.totalorder %s139, %s141
      %p148 = scmp.eq.s32.totalorder %s42, 1
      %p149 = por %p147, %p148
      %p150 = scmp.ne.s32.totalorder %s141, %s142
      %p151 = scmp.eq.s32.totalorder %s42, 0
      %p152 = por %p150, %p151
      %p153 = scmp.ne.s32.totalorder %s141, %s142
      %p154 = scmp.eq.s32.totalorder %s43, 1
      %p155 = por %p153, %p154
      %p157 = scmp.ne.s32.totalorder %s142, %s156
      %p158 = scmp.eq.s32.totalorder %s43, 0
      %p159 = por %p157, %p158
      %s161 = sadd.s32 %s160, 1
      %p164 = scmp.eq.s32.totalorder %s37, 1
      %p165 = scmp.ne.s32.totalorder %s160, %s162
      %p166 = scmp.eq.s32.totalorder %s37, 0
      %p167 = por %p165, %p166
      %p168 = scmp.ne.s32.totalorder %s160, %s162
      %p169 = scmp.eq.s32.totalorder %s42, 1
      %p170 = por %p168, %p169
      %p171 = scmp.ne.s32.totalorder %s162, %s163
      %p172 = scmp.eq.s32.totalorder %s42, 0
      %p173 = por %p171, %p172
      %p174 = scmp.ne.s32.totalorder %s162, %s163
      %p175 = scmp.eq.s32.totalorder %s43, 1
      %p176 = por %p174, %p175
      %p178 = scmp.ne.s32.totalorder %s163, %s177
      %p179 = scmp.eq.s32.totalorder %s43, 0
      %p180 = por %p178, %p179
      %s182 = sadd.s32 %s181, 1
      %p185 = scmp.eq.s32.totalorder %s37, 1
      %p186 = scmp.ne.s32.totalorder %s181, %s183
      %p187 = scmp.eq.s32.totalorder %s37, 0
      %p188 = por %p186, %p187
      %p189 = scmp.ne.s32.totalorder %s181, %s183
      %p190 = scmp.eq.s32.totalorder %s42, 1
      %p191 = por %p189, %p190
      %p192 = scmp.ne.s32.totalorder %s183, %s184
      %p193 = scmp.eq.s32.totalorder %s42, 0
      %p194 = por %p192, %p193
      %p195 = scmp.ne.s32.totalorder %s183, %s184
      %p196 = scmp.eq.s32.totalorder %s43, 1
      %p197 = por %p195, %p196
      %p199 = scmp.ne.s32.totalorder %s184, %s198
      %p200 = scmp.eq.s32.totalorder %s43, 0
      %p201 = por %p199, %p200
      %s203 = sadd.s32 %s202, 1
      %p206 = scmp.eq.s32.totalorder %s37, 1
      %p207 = scmp.ne.s32.totalorder %s202, %s204
      %p208 = scmp.eq.s32.totalorder %s37, 0
      %p209 = por %p207, %p208
      %p210 = scmp.ne.s32.totalorder %s202, %s204
      %p211 = scmp.eq.s32.totalorder %s42, 1
      %p212 = por %p210, %p211
      %p213 = scmp.ne.s32.totalorder %s204, %s205
      %p214 = scmp.eq.s32.totalorder %s42, 0
      %p215 = por %p213, %p214
      %p216 = scmp.ne.s32.totalorder %s204, %s205
      %p217 = scmp.eq.s32.totalorder %s43, 1
      %p218 = por %p216, %p217
      %p220 = scmp.ne.s32.totalorder %s205, %s219
      %p221 = scmp.eq.s32.totalorder %s43, 0
      %p222 = por %p220, %p221
      %s224 = sadd.s32 %s223, 1
      %p227 = scmp.eq.s32.totalorder %s37, 1
      %p228 = scmp.ne.s32.totalorder %s223, %s225
      %p229 = scmp.eq.s32.totalorder %s37, 0
      %p230 = por %p228, %p229
      %p231 = scmp.ne.s32.totalorder %s223, %s225
      %p232 = scmp.eq.s32.totalorder %s42, 1
      %p233 = por %p231, %p232
      %p234 = scmp.ne.s32.totalorder %s225, %s226
      %p235 = scmp.eq.s32.totalorder %s42, 0
      %p236 = por %p234, %p235
      %p237 = scmp.ne.s32.totalorder %s225, %s226
      %p238 = scmp.eq.s32.totalorder %s43, 1
      %p239 = por %p237, %p238
      %p241 = scmp.ne.s32.totalorder %s226, %s240
      %p242 = scmp.eq.s32.totalorder %s43, 0
      %p243 = por %p241, %p242
      %s245 = sadd.s32 %s244, 1
      %p248 = scmp.eq.s32.totalorder %s37, 1
      %p249 = scmp.ne.s32.totalorder %s244, %s246
      %p250 = scmp.eq.s32.totalorder %s37, 0
      %p251 = por %p249, %p250
      %p252 = scmp.ne.s32.totalorder %s244, %s246
      %p253 = scmp.eq.s32.totalorder %s42, 1
      %p254 = por %p252, %p253
      %p255 = scmp.ne.s32.totalorder %s246, %s247
      %p256 = scmp.eq.s32.totalorder %s42, 0
      %p257 = por %p255, %p256
      %p258 = scmp.ne.s32.totalorder %s246, %s247
      %p259 = scmp.eq.s32.totalorder %s43, 1
      %p260 = por %p258, %p259
      %p262 = scmp.ne.s32.totalorder %s247, %s261
      %p263 = scmp.eq.s32.totalorder %s43, 0
      %p264 = por %p262, %p263
      %s266 = sadd.s32 %s265, 1
      %p269 = scmp.eq.s32.totalorder %s37, 1
      %p270 = scmp.ne.s32.totalorder %s265, %s267
      %p271 = scmp.eq.s32.totalorder %s37, 0
      %p272 = por %p270, %p271
      %p273 = scmp.ne.s32.totalorder %s265, %s267
      %p274 = scmp.eq.s32.totalorder %s42, 1
      %p275 = por %p273, %p274
      %p276 = scmp.ne.s32.totalorder %s267, %s268
      %p277 = scmp.eq.s32.totalorder %s42, 0
      %p278 = por %p276, %p277
      %p279 = scmp.ne.s32.totalorder %s267, %s268
      %p280 = scmp.eq.s32.totalorder %s43, 1
      %p281 = por %p279, %p280
      %p283 = scmp.ne.s32.totalorder %s268, %s282
      %p284 = scmp.eq.s32.totalorder %s43, 0
      %p285 = por %p283, %p284
      %s287 = sadd.s32 %s286, 1
      %p290 = scmp.eq.s32.totalorder %s37, 1
      %p291 = scmp.ne.s32.totalorder %s286, %s288
      %p292 = scmp.eq.s32.totalorder %s37, 0
      %p293 = por %p291, %p292
      %p294 = scmp.ne.s32.totalorder %s286, %s288
      %p295 = scmp.eq.s32.totalorder %s42, 1
      %p296 = por %p294, %p295
      %p297 = scmp.ne.s32.totalorder %s288, %s289
      %p298 = scmp.eq.s32.totalorder %s42, 0
      %p299 = por %p297, %p298
      %p300 = scmp.ne.s32.totalorder %s288, %s289
      %p301 = scmp.eq.s32.totalorder %s43, 1
      %p302 = por %p300, %p301
      %p304 = scmp.ne.s32.totalorder %s289, %s303
      %p305 = scmp.eq.s32.totalorder %s43, 0
      %p306 = por %p304, %p305
      %s307 = ssub.s32 %s37, %s44
      %p308 = scmp.eq.s32.totalorder %s307, 0
      %s310 = sadd.s32 %s309, 1
      %s311 = scalar_select %p308, %s309, %s310
      %p314 = pneg %p308
      %p315 = scmp.eq.s32.totalorder %s37, 1
      %p316 = por %p314, %p315
      %p317 = scmp.ne.s32.totalorder %s309, %s312
      %p318 = scmp.eq.s32.totalorder %s37, 0
      %p319 = por %p317, %p318
      %p320 = scmp.ne.s32.totalorder %s309, %s312
      %p321 = scmp.eq.s32.totalorder %s42, 1
      %p322 = por %p320, %p321
      %p323 = scmp.ne.s32.totalorder %s312, %s313
      %p324 = scmp.eq.s32.totalorder %s42, 0
      %p325 = por %p323, %p324
      %p326 = scmp.ne.s32.totalorder %s312, %s313
      %p327 = scmp.eq.s32.totalorder %s43, 1
      %p328 = por %p326, %p327
      %p330 = scmp.ne.s32.totalorder %s313, %s329
      %p331 = scmp.eq.s32.totalorder %s43, 0
      %p332 = por %p330, %p331
      %s333 = ssub.s32 %s37, %s44
      %p334 = scmp.eq.s32.totalorder %s333, 0
      %s336 = sadd.s32 %s335, 1
      %s337 = scalar_select %p334, %s335, %s336
      %p340 = pneg %p334
      %p341 = scmp.eq.s32.totalorder %s37, 1
      %p342 = por %p340, %p341
      %p343 = scmp.ne.s32.totalorder %s335, %s338
      %p344 = scmp.eq.s32.totalorder %s37, 0
      %p345 = por %p343, %p344
      %p346 = scmp.ne.s32.totalorder %s335, %s338
      %p347 = scmp.eq.s32.totalorder %s42, 1
      %p348 = por %p346, %p347
      %p349 = scmp.ne.s32.totalorder %s338, %s339
      %p350 = scmp.eq.s32.totalorder %s42, 0
      %p351 = por %p349, %p350
      %p352 = scmp.ne.s32.totalorder %s338, %s339
      %p353 = scmp.eq.s32.totalorder %s43, 1
      %p354 = por %p352, %p353
      %p356 = scmp.ne.s32.totalorder %s339, %s355
      %p357 = scmp.eq.s32.totalorder %s43, 0
      %p358 = por %p356, %p357
      %s359 = ssub.s32 %s37, %s44
      %p360 = scmp.eq.s32.totalorder %s359, 0
      %s362 = sadd.s32 %s361, 1
      %s363 = scalar_select %p360, %s361, %s362
      %p366 = pneg %p360
      %p367 = scmp.eq.s32.totalorder %s37, 1
      %p368 = por %p366, %p367
      %p369 = scmp.ne.s32.totalorder %s361, %s364
      %p370 = scmp.eq.s32.totalorder %s37, 0
      %p371 = por %p369, %p370
      %p372 = scmp.ne.s32.totalorder %s361, %s364
      %p373 = scmp.eq.s32.totalorder %s42, 1
      %p374 = por %p372, %p373
      %p375 = scmp.ne.s32.totalorder %s364, %s365
      %p376 = scmp.eq.s32.totalorder %s42, 0
      %p377 = por %p375, %p376
      %p378 = scmp.ne.s32.totalorder %s364, %s365
      %p379 = scmp.eq.s32.totalorder %s43, 1
      %p380 = por %p378, %p379
      %p382 = scmp.ne.s32.totalorder %s365, %s381
      %p383 = scmp.eq.s32.totalorder %s43, 0
      %p384 = por %p382, %p383
      %s385 = ssub.s32 %s37, %s44
      %p386 = scmp.eq.s32.totalorder %s385, 0
      %s388 = sadd.s32 %s387, 1
      %s389 = scalar_select %p386, %s387, %s388
      %p392 = pneg %p386
      %p393 = scmp.eq.s32.totalorder %s37, 1
      %p394 = por %p392, %p393
      %p395 = scmp.ne.s32.totalorder %s387, %s390
      %p396 = scmp.eq.s32.totalorder %s37, 0
      %p397 = por %p395, %p396
      %p398 = scmp.ne.s32.totalorder %s387, %s390
      %p399 = scmp.eq.s32.totalorder %s42, 1
      %p400 = por %p398, %p399
      %p401 = scmp.ne.s32.totalorder %s390, %s391
      %p402 = scmp.eq.s32.totalorder %s42, 0
      %p403 = por %p401, %p402
      %p404 = scmp.ne.s32.totalorder %s390, %s391
      %p405 = scmp.eq.s32.totalorder %s43, 1
      %p406 = por %p404, %p405
      %p408 = scmp.ne.s32.totalorder %s391, %s407
      %p409 = scmp.eq.s32.totalorder %s43, 0
      %p410 = por %p408, %p409
      %s411 = ssub.s32 %s37, %s44
      %p412 = scmp.eq.s32.totalorder %s411, 0
      %s414 = sadd.s32 %s413, 1
      %s415 = scalar_select %p412, %s413, %s414
      %p418 = pneg %p412
      %p419 = scmp.eq.s32.totalorder %s37, 1
      %p420 = por %p418, %p419
      %p421 = scmp.ne.s32.totalorder %s413, %s416
      %p422 = scmp.eq.s32.totalorder %s37, 0
      %p423 = por %p421, %p422
      %p424 = scmp.ne.s32.totalorder %s413, %s416
      %p425 = scmp.eq.s32.totalorder %s42, 1
      %p426 = por %p424, %p425
      %p427 = scmp.ne.s32.totalorder %s416, %s417
      %p428 = scmp.eq.s32.totalorder %s42, 0
      %p429 = por %p427, %p428
      %p430 = scmp.ne.s32.totalorder %s416, %s417
      %p431 = scmp.eq.s32.totalorder %s43, 1
      %p432 = por %p430, %p431
      %p434 = scmp.ne.s32.totalorder %s417, %s433
      %p435 = scmp.eq.s32.totalorder %s43, 0
      %p436 = por %p434, %p435
      %s437 = ssub.s32 %s37, %s44
      %p438 = scmp.eq.s32.totalorder %s437, 0
      %s440 = sadd.s32 %s439, 1
      %s441 = scalar_select %p438, %s439, %s440
      %p444 = pneg %p438
      %p445 = scmp.eq.s32.totalorder %s37, 1
      %p446 = por %p444, %p445
      %p447 = scmp.ne.s32.totalorder %s439, %s442
      %p448 = scmp.eq.s32.totalorder %s37, 0
      %p449 = por %p447, %p448
      %p450 = scmp.ne.s32.totalorder %s439, %s442
      %p451 = scmp.eq.s32.totalorder %s42, 1
      %p452 = por %p450, %p451
      %p453 = scmp.ne.s32.totalorder %s442, %s443
      %p454 = scmp.eq.s32.totalorder %s42, 0
      %p455 = por %p453, %p454
      %p456 = scmp.ne.s32.totalorder %s442, %s443
      %p457 = scmp.eq.s32.totalorder %s43, 1
      %p458 = por %p456, %p457
      %p460 = scmp.ne.s32.totalorder %s443, %s459
      %p461 = scmp.eq.s32.totalorder %s43, 0
      %p462 = por %p460, %p461
      %s463 = ssub.s32 %s37, %s44
      %p464 = scmp.eq.s32.totalorder %s463, 0
      %s466 = sadd.s32 %s465, 1
      %s467 = scalar_select %p464, %s465, %s466
      %p470 = pneg %p464
      %p471 = scmp.eq.s32.totalorder %s37, 1
      %p472 = por %p470, %p471
      %p473 = scmp.ne.s32.totalorder %s465, %s468
      %p474 = scmp.eq.s32.totalorder %s37, 0
      %p475 = por %p473, %p474
      %p476 = scmp.ne.s32.totalorder %s465, %s468
      %p477 = scmp.eq.s32.totalorder %s42, 1
      %p478 = por %p476, %p477
      %p479 = scmp.ne.s32.totalorder %s468, %s469
      %p480 = scmp.eq.s32.totalorder %s42, 0
      %p481 = por %p479, %p480
      %p482 = scmp.ne.s32.totalorder %s468, %s469
      %p483 = scmp.eq.s32.totalorder %s43, 1
      %p484 = por %p482, %p483
      %p486 = scmp.ne.s32.totalorder %s469, %s485
      %p487 = scmp.eq.s32.totalorder %s43, 0
      %p488 = por %p486, %p487
      %s489 = ssub.s32 %s37, %s44
      %p490 = scmp.eq.s32.totalorder %s489, 0
      %s492 = sadd.s32 %s491, 1
      %s493 = scalar_select %p490, %s491, %s492
      %p496 = pneg %p490
      %p497 = scmp.eq.s32.totalorder %s37, 1
      %p498 = por %p496, %p497
      %p499 = scmp.ne.s32.totalorder %s491, %s494
      %p500 = scmp.eq.s32.totalorder %s37, 0
      %p501 = por %p499, %p500
      %p502 = scmp.ne.s32.totalorder %s491, %s494
      %p503 = scmp.eq.s32.totalorder %s42, 1
      %p504 = por %p502, %p503
      %p505 = scmp.ne.s32.totalorder %s494, %s495
      %p506 = scmp.eq.s32.totalorder %s42, 0
      %p507 = por %p505, %p506
      %p508 = scmp.ne.s32.totalorder %s494, %s495
      %p509 = scmp.eq.s32.totalorder %s43, 1
      %p510 = por %p508, %p509
      %p512 = scmp.ne.s32.totalorder %s495, %s511
      %p513 = scmp.eq.s32.totalorder %s43, 0
      %p514 = por %p512, %p513
      %s515 = ssub.s32 %s37, %s44
      %p516 = scmp.eq.s32.totalorder %s515, 0
      %s518 = sadd.s32 %s517, 1
      %s519 = scalar_select %p516, %s517, %s518
      %p522 = pneg %p516
      %p523 = scmp.eq.s32.totalorder %s37, 1
      %p524 = por %p522, %p523
      %p525 = scmp.ne.s32.totalorder %s517, %s520
      %p526 = scmp.eq.s32.totalorder %s37, 0
      %p527 = por %p525, %p526
      %p528 = scmp.ne.s32.totalorder %s517, %s520
      %p529 = scmp.eq.s32.totalorder %s42, 1
      %p530 = por %p528, %p529
      %p531 = scmp.ne.s32.totalorder %s520, %s521
      %p532 = scmp.eq.s32.totalorder %s42, 0
      %p533 = por %p531, %p532
      %p534 = scmp.ne.s32.totalorder %s520, %s521
      %p535 = scmp.eq.s32.totalorder %s43, 1
      %p536 = por %p534, %p535
      %p538 = scmp.ne.s32.totalorder %s521, %s537
      %p539 = scmp.eq.s32.totalorder %s43, 0
      %p540 = por %p538, %p539
      %s541 = ssub.s32 %s37, %s44
      %p542 = scmp.eq.s32.totalorder %s541, 0
      %s544 = sadd.s32 %s543, 1
      %s545 = scalar_select %p542, %s543, %s544
      %p548 = pneg %p542
      %p549 = scmp.eq.s32.totalorder %s37, 1
      %p550 = por %p548, %p549
      %p551 = scmp.ne.s32.totalorder %s543, %s546
      %p552 = scmp.eq.s32.totalorder %s37, 0
      %p553 = por %p551, %p552
      %p554 = scmp.ne.s32.totalorder %s543, %s546
      %p555 = scmp.eq.s32.totalorder %s42, 1
      %p556 = por %p554, %p555
      %p557 = scmp.ne.s32.totalorder %s546, %s547
      %p558 = scmp.eq.s32.totalorder %s42, 0
      %p559 = por %p557, %p558
      %p560 = scmp.ne.s32.totalorder %s546, %s547
      %p561 = scmp.eq.s32.totalorder %s43, 1
      %p562 = por %p560, %p561
      %p564 = scmp.ne.s32.totalorder %s547, %s563
      %p565 = scmp.eq.s32.totalorder %s43, 0
      %p566 = por %p564, %p565
      %p567 = scmp.le.s32.totalorder 1, %s37
      %p568 = scmp.lt.s32.totalorder %s37, 3
      %p569 = pnand %p567, %p568
      %p570 = pneg %p569
      // Predicated region
      $region9: #{self_corr_attention_forward.1} parent=5 // pred_check
        _
      $region10: #{self_corr_attention_forward.1} parent=5 // pred_check_branch
        %572 = sbr.rel (%p569) target = $region12
      $region11: #{self_corr_attention_forward.1} parent=5 // pred_region
        %s573 = ssub.s32 %s37, 1
        // Predicated region
        $region13: #{self_corr_attention_forward.1} parent=11 // pred_check
          %p574 = pneg %p110
        $region14: #{self_corr_attention_forward.1} parent=11 // pred_check_branch
          %576 = sbr.rel (%p574) target = $region16
        $region15: #{self_corr_attention_forward.1} parent=11 // pred_region
          _
        $region16: #{self_corr_attention_forward.1} parent=11 // pred_fallthru
          _
        // Predicated region
        $region17: #{self_corr_attention_forward.1} parent=11 // pred_check
          %p577 = pneg %p131
        $region18: #{self_corr_attention_forward.1} parent=11 // pred_check_branch
          %579 = sbr.rel (%p577) target = $region20
        $region19: #{self_corr_attention_forward.1} parent=11 // pred_region
          _
        $region20: #{self_corr_attention_forward.1} parent=11 // pred_fallthru
          _
        // Predicated region
        $region21: #{self_corr_attention_forward.1} parent=11 // pred_check
          %p580 = pneg %p152
        $region22: #{self_corr_attention_forward.1} parent=11 // pred_check_branch
          %582 = sbr.rel (%p580) target = $region24
        $region23: #{self_corr_attention_forward.1} parent=11 // pred_region
          _
        $region24: #{self_corr_attention_forward.1} parent=11 // pred_fallthru
          _
        // Predicated region
        $region25: #{self_corr_attention_forward.1} parent=11 // pred_check
          %p583 = pneg %p173
        $region26: #{self_corr_attention_forward.1} parent=11 // pred_check_branch
          %585 = sbr.rel (%p583) target = $region28
        $region27: #{self_corr_attention_forward.1} parent=11 // pred_region
          _
        $region28: #{self_corr_attention_forward.1} parent=11 // pred_fallthru
          _
        // Predicated region
        $region29: #{self_corr_attention_forward.1} parent=11 // pred_check
          %p586 = pneg %p194
        $region30: #{self_corr_attention_forward.1} parent=11 // pred_check_branch
          %588 = sbr.rel (%p586) target = $region32
        $region31: #{self_corr_attention_forward.1} parent=11 // pred_region
          _
        $region32: #{self_corr_attention_forward.1} parent=11 // pred_fallthru
          _
        // Predicated region
        $region33: #{self_corr_attention_forward.1} parent=11 // pred_check
          %p589 = pneg %p215
        $region34: #{self_corr_attention_forward.1} parent=11 // pred_check_branch
          %591 = sbr.rel (%p589) target = $region36
        $region35: #{self_corr_attention_forward.1} parent=11 // pred_region
          _
        $region36: #{self_corr_attention_forward.1} parent=11 // pred_fallthru
          _
        // Predicated region
        $region37: #{self_corr_attention_forward.1} parent=11 // pred_check
          %p592 = pneg %p236
        $region38: #{self_corr_attention_forward.1} parent=11 // pred_check_branch
          %594 = sbr.rel (%p592) target = $region40
        $region39: #{self_corr_attention_forward.1} parent=11 // pred_region
          _
        $region40: #{self_corr_attention_forward.1} parent=11 // pred_fallthru
          _
        // Predicated region
        $region41: #{self_corr_attention_forward.1} parent=11 // pred_check
          %p595 = pneg %p257
        $region42: #{self_corr_attention_forward.1} parent=11 // pred_check_branch
          %597 = sbr.rel (%p595) target = $region44
        $region43: #{self_corr_attention_forward.1} parent=11 // pred_region
          _
        $region44: #{self_corr_attention_forward.1} parent=11 // pred_fallthru
          _
        // Predicated region
        $region45: #{self_corr_attention_forward.1} parent=11 // pred_check
          %p598 = pneg %p278
        $region46: #{self_corr_attention_forward.1} parent=11 // pred_check_branch
          %600 = sbr.rel (%p598) target = $region48
        $region47: #{self_corr_attention_forward.1} parent=11 // pred_region
          _
        $region48: #{self_corr_attention_forward.1} parent=11 // pred_fallthru
          _
        // Predicated region
        $region49: #{self_corr_attention_forward.1} parent=11 // pred_check
          %p601 = pneg %p299
        $region50: #{self_corr_attention_forward.1} parent=11 // pred_check_branch
          %603 = sbr.rel (%p601) target = $region52
        $region51: #{self_corr_attention_forward.1} parent=11 // pred_region
          _
        $region52: #{self_corr_attention_forward.1} parent=11 // pred_fallthru
          _
      $region12: #{self_corr_attention_forward.1} parent=5 // pred_fallthru
        _
      %p604 = scmp.lt.s32.totalorder %s37, 2
      // Predicated region
      $region53: #{self_corr_attention_forward.1} parent=5 // pred_check
        %p605 = pneg %p604
      $region54: #{self_corr_attention_forward.1} parent=5 // pred_check_branch
        %607 = sbr.rel (%p605) target = $region56
      $region55: #{self_corr_attention_forward.1} parent=5 // pred_region
        // Predicated region
        $region57: #{self_corr_attention_forward.1} parent=55 // pred_check
          %p608 = pneg %p57
        $region58: #{self_corr_attention_forward.1} parent=55 // pred_check_branch
          %610 = sbr.rel (%p608) target = $region60
        $region59: #{self_corr_attention_forward.1} parent=55 // pred_region
          %p611 = scmp.lt.s32.totalorder %s37, 1
          %s612 = scalar_select %p611, %s37, 1
          %s613 = smul.addr %s612, 2
          %s614 = smul.addr %s613, 4
          %s615 = scalar_lea.vmem %s0, %s614
        $region60: #{self_corr_attention_forward.1} parent=55 // pred_fallthru
          _
        // Predicated region
        $region61: #{self_corr_attention_forward.1} parent=55 // pred_check
          %p616 = pneg %p83
        $region62: #{self_corr_attention_forward.1} parent=55 // pred_check_branch
          %618 = sbr.rel (%p616) target = $region64
        $region63: #{self_corr_attention_forward.1} parent=55 // pred_region
          %p619 = scmp.lt.s32.totalorder %s37, 1
          %s620 = scalar_select %p619, %s37, 1
          %s621 = smul.addr %s620, 32
          %s622 = smul.addr %s621, 8
          %s623 = scalar_lea.vmem %s1, %s622
        $region64: #{self_corr_attention_forward.1} parent=55 // pred_fallthru
          _
      $region56: #{self_corr_attention_forward.1} parent=5 // pred_fallthru
        _
      %p624 = scmp.le.s32.totalorder 1, %s37
      %p625 = scmp.lt.s32.totalorder %s37, 3
      %p626 = pnand %p624, %p625
      %p627 = pneg %p626
      // Predicated region
      $region65: #{self_corr_attention_forward.1} parent=5 // pred_check
        _
      $region66: #{self_corr_attention_forward.1} parent=5 // pred_check_branch
        %629 = sbr.rel (%p626) target = $region68
      $region67: #{self_corr_attention_forward.1} parent=5 // pred_region
        %s630 = ssub.s32 %s37, 1
        %p631 = scmp.lt.s32.totalorder %s42, 1
        %s632 = scalar_select %p631, %s42, 1
        %s633 = smul.addr %s632, 2
        %s634 = smul.addr %s633, 4
        %s635 = scalar_lea.vmem %s0, %s634
        %p636 = pneg %p63
        %p637 = pneg %p60
        %p638 = scmp.lt.s32.totalorder %s42, 1
        %s639 = scalar_select %p638, %s42, 1
        %s640 = smul.addr %s639, 32
        %s641 = smul.addr %s640, 8
        %s642 = scalar_lea.vmem %s1, %s641
        %p643 = pneg %p89
        %p644 = pneg %p86
        %p645 = pneg %p110
        %p646 = pneg %p107
        %p647 = pneg %p131
        %p648 = pneg %p128
        %p649 = pneg %p152
        %p650 = pneg %p149
        %p651 = pneg %p173
        %p652 = pneg %p170
        %p653 = pneg %p194
        %p654 = pneg %p191
        %p655 = pneg %p215
        %p656 = pneg %p212
        %p657 = pneg %p236
        %p658 = pneg %p233
        %p659 = pneg %p257
        %p660 = pneg %p254
        %p661 = pneg %p278
        %p662 = pneg %p275
        %p663 = pneg %p299
        %p664 = pneg %p296
        %p665 = pneg %p325
        %p666 = pneg %p322
        %p667 = scmp.lt.s32.totalorder %s42, 1
        %s668 = scalar_select %p667, %s42, 1
        %s669 = smul.addr %s668, 8
        %s670 = smul.addr %s669, 8
        %s671 = scalar_lea.vmem %s12, %s670
        %p672 = pneg %p351
        %p673 = pneg %p348
        %p674 = scmp.lt.s32.totalorder %s42, 1
        %s675 = scalar_select %p674, %s42, 1
        %s676 = smul.addr %s675, 8
        %s677 = smul.addr %s676, 8
        %s678 = scalar_lea.vmem %s13, %s677
        %p679 = pneg %p377
        %p680 = pneg %p374
        %p681 = scmp.lt.s32.totalorder %s42, 1
        %s682 = scalar_select %p681, %s42, 1
        %s683 = smul.addr %s682, 8
        %s684 = smul.addr %s683, 8
        %s685 = scalar_lea.vmem %s14, %s684
        %p686 = pneg %p403
        %p687 = pneg %p400
        %p688 = scmp.lt.s32.totalorder %s42, 1
        %s689 = scalar_select %p688, %s42, 1
        %s690 = smul.addr %s689, 8
        %s691 = smul.addr %s690, 8
        %s692 = scalar_lea.vmem %s15, %s691
        %p693 = pneg %p429
        %p694 = pneg %p426
        %p695 = scmp.lt.s32.totalorder %s42, 1
        %s696 = scalar_select %p695, %s42, 1
        %s697 = smul.addr %s696, 8
        %s698 = smul.addr %s697, 8
        %s699 = scalar_lea.vmem %s16, %s698
        %p700 = pneg %p455
        %p701 = pneg %p452
        %p702 = scmp.lt.s32.totalorder %s42, 1
        %s703 = scalar_select %p702, %s42, 1
        %s704 = smul.addr %s703, 8
        %s705 = smul.addr %s704, 8
        %s706 = scalar_lea.vmem %s17, %s705
        %p707 = pneg %p481
        %p708 = pneg %p478
        %s709 = sand.u32 %s468, 1
        %s710 = scalar_lea.sflag [#allocation3], %s709
        %s711 = sand.u32 %s468, 1
        %s712 = smul.addr %s711, 4
        %s713 = scalar_lea.vmem [#allocation2], %s712
        %p714 = pneg %p507
        %p715 = pneg %p504
        %s716 = sand.u32 %s42, 1
        %s717 = scalar_lea.sflag [#allocation5], %s716
        %s718 = sand.u32 %s494, 1
        %s719 = smul.addr %s718, 256
        %s720 = scalar_lea.vmem [#allocation4], %s719
        %p721 = pneg %p533
        %p722 = pneg %p530
        %s723 = sand.u32 %s42, 1
        %s724 = scalar_lea.sflag [#allocation5], %s723
        %s725 = sand.u32 %s520, 1
        %s726 = smul.addr %s725, 256
        %s727 = scalar_lea.vmem [#allocation6], %s726
        %p728 = pneg %p559
        %p729 = pneg %p556
        %s730 = sand.u32 %s546, 1
        %s731 = scalar_lea.sflag [#allocation8], %s730
        %s732 = sand.u32 %s546, 1
        %s733 = smul.addr %s732, 256
        %s734 = scalar_lea.vmem [#allocation7], %s733
        %p735 = scmp.lt.s32.totalorder %s42, 1
        %s736 = scalar_select %p735, %s42, 1
        %s737 = smul.addr %s736, 2
        %s738 = smul.addr %s737, 4
        %s739 = scalar_lea.vmem %s0, %s738
        %p740 = scmp.lt.s32.totalorder %s42, 1
        %s741 = scalar_select %p740, %s42, 1
        %s742 = smul.addr %s741, 32
        %s743 = smul.addr %s742, 8
        %s744 = scalar_lea.vmem %s1, %s743
        %p745 = scmp.lt.s32.totalorder %s42, 1
        %s746 = scalar_select %p745, %s42, 1
        %s747 = smul.addr %s746, 8
        %s748 = smul.addr %s747, 8
        %s749 = scalar_lea.vmem %s12, %s748
        %p750 = scmp.lt.s32.totalorder %s42, 1
        %s751 = scalar_select %p750, %s42, 1
        %s752 = smul.addr %s751, 8
        %s753 = smul.addr %s752, 8
        %s754 = scalar_lea.vmem %s13, %s753
        %p755 = scmp.lt.s32.totalorder %s42, 1
        %s756 = scalar_select %p755, %s42, 1
        %s757 = smul.addr %s756, 8
        %s758 = smul.addr %s757, 8
        %s759 = scalar_lea.vmem %s14, %s758
        %p760 = scmp.lt.s32.totalorder %s42, 1
        %s761 = scalar_select %p760, %s42, 1
        %s762 = smul.addr %s761, 8
        %s763 = smul.addr %s762, 8
        %s764 = scalar_lea.vmem %s15, %s763
        %p765 = scmp.lt.s32.totalorder %s42, 1
        %s766 = scalar_select %p765, %s42, 1
        %s767 = smul.addr %s766, 8
        %s768 = smul.addr %s767, 8
        %s769 = scalar_lea.vmem %s16, %s768
        %p770 = scmp.lt.s32.totalorder %s42, 1
        %s771 = scalar_select %p770, %s42, 1
        %s772 = smul.addr %s771, 8
        %s773 = smul.addr %s772, 8
        %s774 = scalar_lea.vmem %s17, %s773
        %v776 = vld [vmem:[%s739] sm:$0xff]
        %v777 = vld [vmem:[%s744] sm:$0xff]
        %v778 = vld [vmem:[%s744 + $0x8] sm:$0xff]
        %v779 = vld [vmem:[%s744 + $0x10] sm:$0xff]
        %v780 = vld [vmem:[%s744 + $0x18] sm:$0xff]
        %v781 = vld [vmem:[%s744 + $0x20] sm:$0xff]
        %v782 = vld [vmem:[%s744 + $0x28] sm:$0xff]
        %v783 = vld [vmem:[%s744 + $0x30] sm:$0xff]
        %v784 = vld [vmem:[%s744 + $0x38] sm:$0xff]
        %v785 = vld [vmem:[%s744 + $0x40] sm:$0xff]
        %v786 = vld [vmem:[%s744 + $0x48] sm:$0xff]
        %v787 = vld [vmem:[%s744 + $0x50] sm:$0xff]
        %v788 = vld [vmem:[%s744 + $0x58] sm:$0xff]
        %v789 = vld [vmem:[%s744 + $0x60] sm:$0xff]
        %v790 = vld [vmem:[%s744 + $0x68] sm:$0xff]
        %v791 = vld [vmem:[%s744 + $0x70] sm:$0xff]
        %v792 = vld [vmem:[%s744 + $0x78] sm:$0xff]
        %v793 = vld [vmem:[%s744 + $0x80] sm:$0xff]
        %v794 = vld [vmem:[%s744 + $0x88] sm:$0xff]
        %v795 = vld [vmem:[%s744 + $0x90] sm:$0xff]
        %v796 = vld [vmem:[%s744 + $0x98] sm:$0xff]
        %v797 = vld [vmem:[%s744 + $0xa0] sm:$0xff]
        %v798 = vld [vmem:[%s744 + $0xa8] sm:$0xff]
        %v799 = vld [vmem:[%s744 + $0xb0] sm:$0xff]
        %v800 = vld [vmem:[%s744 + $0xb8] sm:$0xff]
        %v801 = vld [vmem:[%s744 + $0xc0] sm:$0xff]
        %v802 = vld [vmem:[%s744 + $0xc8] sm:$0xff]
        %v803 = vld [vmem:[%s744 + $0xd0] sm:$0xff]
        %v804 = vld [vmem:[%s744 + $0xd8] sm:$0xff]
        %v805 = vld [vmem:[%s744 + $0xe0] sm:$0xff]
        %v806 = vld [vmem:[%s744 + $0xe8] sm:$0xff]
        %v807 = vld [vmem:[%s744 + $0xf0] sm:$0xff]
        %v808 = vld [vmem:[%s744 + $0xf8] sm:$0xff]
        %v809 = vld [vmem:[%s2] sm:$0xff]
        %v810 = vld [vmem:[%s2 + $0x8] sm:$0xff]
        %v811 = vld [vmem:[%s2 + $0x10] sm:$0xff]
        %v812 = vld [vmem:[%s2 + $0x18] sm:$0xff]
        %v813 = vld [vmem:[%s2 + $0x20] sm:$0xff]
        %v814 = vld [vmem:[%s2 + $0x28] sm:$0xff]
        %v815 = vld [vmem:[%s2 + $0x30] sm:$0xff]
        %v816 = vld [vmem:[%s2 + $0x38] sm:$0xff]
        %v817 = vpack.c.bf16 %v810, %v809
        %v818 = vpack.c.bf16 %v812, %v811
        %v819 = vpack.c.bf16 %v814, %v813
        %v820 = vpack.c.bf16 %v816, %v815
        %v822 = vcombine.high %v776, %v776
        %v824 = vpack.c.bf16 %v776, %v776
        %v825 = vpack.c.bf16 %v822, %v822
        %v826 = vld [vmem:[%s3] sm:$0xff]
        %v827 = vld [vmem:[%s3 + $0x8] sm:$0xff]
        %v828 = vld [vmem:[%s3 + $0x10] sm:$0xff]
        %v829 = vld [vmem:[%s3 + $0x18] sm:$0xff]
        %v830 = vld [vmem:[%s3 + $0x20] sm:$0xff]
        %v831 = vld [vmem:[%s3 + $0x28] sm:$0xff]
        %v832 = vld [vmem:[%s3 + $0x30] sm:$0xff]
        %v833 = vld [vmem:[%s3 + $0x38] sm:$0xff]
        %835 = vset.pattern.permute.xlu0 0
        %836 = vperm.xlu0 %835, %v826
        %v837 = vpop.permute.xlu0 %836
        %840 = vset.pattern.permute.xlu0 0
        %841 = vperm.xlu0 %840, %v827
        %v842 = vpop.permute.xlu0 %841
        %845 = vset.pattern.permute.xlu0 0
        %846 = vperm.xlu0 %845, %v828
        %v847 = vpop.permute.xlu0 %846
        %850 = vset.pattern.permute.xlu0 0
        %851 = vperm.xlu0 %850, %v829
        %v852 = vpop.permute.xlu0 %851
        %855 = vset.pattern.permute.xlu0 0
        %856 = vperm.xlu0 %855, %v830
        %v857 = vpop.permute.xlu0 %856
        %860 = vset.pattern.permute.xlu0 0
        %861 = vperm.xlu0 %860, %v831
        %v862 = vpop.permute.xlu0 %861
        %865 = vset.pattern.permute.xlu0 0
        %866 = vperm.xlu0 %865, %v832
        %v867 = vpop.permute.xlu0 %866
        %870 = vset.pattern.permute.xlu0 0
        %871 = vperm.xlu0 %870, %v833
        %v872 = vpop.permute.xlu0 %871
        %vm874 = vcmask 31744
        %v876 = vsel %vm874, %v817, 0
        %v879 = vsel %vm874, %v818, 0
        %v882 = vsel %vm874, %v819, 0
        %v885 = vsel %vm874, %v820, 0
        %vm887 = vcmask 1041408
        %v889 = vsel %vm887, %v824, 0
        %v892 = vsel %vm887, %v825, 0
        %894 = vmatprep.subr.bf16.mxu0 0
        %895 = vmatpush1.bf16.msra.mxu0 0
        %896 = vmatprep.subr.bf16.mxu0 0
        %897 = vmatpush1.bf16.msra.mxu0 0
        %898 = vmatprep.subr.bf16.mxu0 0
        %899 = vmatpush1.bf16.msra.mxu0 0
        %900 = vmatprep.subr.bf16.mxu0 0
        %901 = vmatpush1.bf16.msra.mxu0 0
        %902 = vmatprep.subr.bf16.mxu0 0
        %903 = vmatpush1.bf16.msra.mxu0 0
        %904 = vmatprep.subr.bf16.mxu0 0
        %905 = vmatpush1.bf16.msra.mxu0 0
        %906 = vmatprep.subr.bf16.mxu0 0
        %907 = vmatpush1.bf16.msra.mxu0 0
        %908 = vmatprep.subr.bf16.mxu0 %v892
        %909 = vmatpush1.bf16.msra.mxu0 %v889
        %910 = vmatprep.subr.bf16.mxu0 0
        %911 = vmatpush2.bf16.msra.mxu0 0
        %912 = vmatprep.subr.bf16.mxu0 0
        %913 = vmatpush2.bf16.msra.mxu0 0
        %914 = vmatprep.subr.bf16.mxu0 0
        %915 = vmatpush2.bf16.msra.mxu0 0
        %916 = vmatprep.subr.bf16.mxu0 0
        %917 = vmatpush2.bf16.msra.mxu0 0
        %918 = vmatprep.subr.bf16.mxu0 0
        %919 = vmatpush2.bf16.msra.mxu0 0
        %920 = vmatprep.subr.bf16.mxu0 0
        %921 = vmatpush2.bf16.msra.mxu0 0
        %922 = vmatprep.subr.bf16.mxu0 0
        %923 = vmatpush2.bf16.msra.mxu0 0
        %924 = vmatprep.subr.bf16.mxu0 0
        %925 = vmatpush2.bf16.msra.mxu0 0
        %926 = vmatprep.mubr.bf16.mxu0 0
        %927 = vmatmul.mubr.bf16.gmra.mxu0 %v876
        %v928 = vpop.f32.mrf.mxu0
        %v929 = vadd.f32 %v837, %v928
        %v930 = vpop.f32.mrf.mxu0
        %v931 = vadd.f32 %v837, %v930
        %v932 = vpop.f32.mrf.mxu0
        %v933 = vadd.f32 %v842, %v932
        %v934 = vpop.f32.mrf.mxu0
        %v935 = vadd.f32 %v842, %v934
        %936 = vmatprep.mubr.bf16.mxu0 0
        %937 = vmatmul.mubr.bf16.gmra.mxu0 %v879
        %v938 = vpop.f32.mrf.mxu0
        %v939 = vadd.f32 %v847, %v938
        %v940 = vpop.f32.mrf.mxu0
        %v941 = vadd.f32 %v847, %v940
        %v942 = vpop.f32.mrf.mxu0
        %v943 = vadd.f32 %v852, %v942
        %v944 = vpop.f32.mrf.mxu0
        %v945 = vadd.f32 %v852, %v944
        %946 = vmatprep.mubr.bf16.mxu0 0
        %947 = vmatmul.mubr.bf16.gmra.mxu0 %v882
        %v948 = vpop.f32.mrf.mxu0
        %v949 = vadd.f32 %v857, %v948
        %v950 = vpop.f32.mrf.mxu0
        %v951 = vadd.f32 %v857, %v950
        %v952 = vpop.f32.mrf.mxu0
        %v953 = vadd.f32 %v862, %v952
        %v954 = vpop.f32.mrf.mxu0
        %v955 = vadd.f32 %v862, %v954
        %956 = vmatprep.mubr.bf16.mxu0 0
        %957 = vmatmul.mubr.bf16.gmra.mxu0 %v885
        %v958 = vpop.f32.mrf.mxu0
        %v959 = vadd.f32 %v867, %v958
        %v960 = vpop.f32.mrf.mxu0
        %v961 = vadd.f32 %v867, %v960
        %v962 = vpop.f32.mrf.mxu0
        %v963 = vadd.f32 %v872, %v962
        %v964 = vpop.f32.mrf.mxu0
        %v965 = vadd.f32 %v872, %v964
        %966 = vdwg.mxu0
        %967 = vst [vmem:[%s749] sm:$0xff] %v929
        %968 = vst [vmem:[%s749 + $0x8] sm:$0xff] %v931
        %969 = vst [vmem:[%s749 + $0x10] sm:$0xff] %v933
        %970 = vst [vmem:[%s749 + $0x18] sm:$0xff] %v935
        %971 = vst [vmem:[%s749 + $0x20] sm:$0xff] %v939
        %972 = vst [vmem:[%s749 + $0x28] sm:$0xff] %v941
        %973 = vst [vmem:[%s749 + $0x30] sm:$0xff] %v943
        %974 = vst [vmem:[%s749 + $0x38] sm:$0xff] %v945
        %975 = vst [vmem:[%s754] sm:$0xff] %v949
        %976 = vst [vmem:[%s754 + $0x8] sm:$0xff] %v951
        %977 = vst [vmem:[%s754 + $0x10] sm:$0xff] %v953
        %978 = vst [vmem:[%s754 + $0x18] sm:$0xff] %v955
        %979 = vst [vmem:[%s754 + $0x20] sm:$0xff] %v959
        %980 = vst [vmem:[%s754 + $0x28] sm:$0xff] %v961
        %981 = vst [vmem:[%s754 + $0x30] sm:$0xff] %v963
        %982 = vst [vmem:[%s754 + $0x38] sm:$0xff] %v965
        %v983 = vmul.f32 %v929, %v777
        %v984 = vmul.f32 %v931, %v778
        %v985 = vmul.f32 %v933, %v779
        %v986 = vmul.f32 %v935, %v780
        %v987 = vmul.f32 %v939, %v781
        %v988 = vmul.f32 %v941, %v782
        %v989 = vmul.f32 %v943, %v783
        %v990 = vmul.f32 %v945, %v784
        %v991 = vadd.f32 %v983, %v985
        %v992 = vadd.f32 %v991, %v987
        %v993 = vadd.f32 %v992, %v989
        %v994 = vrot.slane %v993, 4
        %v995 = vadd.f32 %v993, %v994
        %v996 = vrot.slane %v995, 2
        %v997 = vadd.f32 %v995, %v996
        %v998 = vrot.slane %v997, 1
        %v999 = vadd.f32 %v997, %v998
        %v1000 = vadd.f32 %v984, %v986
        %v1001 = vadd.f32 %v1000, %v988
        %v1002 = vadd.f32 %v1001, %v990
        %v1003 = vrot.slane %v1002, 4
        %v1004 = vadd.f32 %v1002, %v1003
        %v1005 = vrot.slane %v1004, 2
        %v1006 = vadd.f32 %v1004, %v1005
        %v1007 = vrot.slane %v1006, 1
        %v1008 = vadd.f32 %v1006, %v1007
        %v1009 = vmul.f32 %v929, %v785
        %v1010 = vmul.f32 %v931, %v786
        %v1011 = vmul.f32 %v933, %v787
        %v1012 = vmul.f32 %v935, %v788
        %v1013 = vmul.f32 %v939, %v789
        %v1014 = vmul.f32 %v941, %v790
        %v1015 = vmul.f32 %v943, %v791
        %v1016 = vmul.f32 %v945, %v792
        %v1017 = vadd.f32 %v1009, %v1011
        %v1018 = vadd.f32 %v1017, %v1013
        %v1019 = vadd.f32 %v1018, %v1015
        %v1020 = vrot.slane %v1019, 4
        %v1021 = vadd.f32 %v1019, %v1020
        %v1022 = vrot.slane %v1021, 2
        %v1023 = vadd.f32 %v1021, %v1022
        %v1024 = vrot.slane %v1023, 1
        %v1025 = vadd.f32 %v1023, %v1024
        %v1026 = vadd.f32 %v1010, %v1012
        %v1027 = vadd.f32 %v1026, %v1014
        %v1028 = vadd.f32 %v1027, %v1016
        %v1029 = vrot.slane %v1028, 4
        %v1030 = vadd.f32 %v1028, %v1029
        %v1031 = vrot.slane %v1030, 2
        %v1032 = vadd.f32 %v1030, %v1031
        %v1033 = vrot.slane %v1032, 1
        %v1034 = vadd.f32 %v1032, %v1033
        %v1035 = vmul.f32 %v929, %v793
        %v1036 = vmul.f32 %v931, %v794
        %v1037 = vmul.f32 %v933, %v795
        %v1038 = vmul.f32 %v935, %v796
        %v1039 = vmul.f32 %v939, %v797
        %v1040 = vmul.f32 %v941, %v798
        %v1041 = vmul.f32 %v943, %v799
        %v1042 = vmul.f32 %v945, %v800
        %v1043 = vadd.f32 %v1035, %v1037
        %v1044 = vadd.f32 %v1043, %v1039
        %v1045 = vadd.f32 %v1044, %v1041
        %v1046 = vrot.slane %v1045, 4
        %v1047 = vadd.f32 %v1045, %v1046
        %v1048 = vrot.slane %v1047, 2
        %v1049 = vadd.f32 %v1047, %v1048
        %v1050 = vrot.slane %v1049, 1
        %v1051 = vadd.f32 %v1049, %v1050
        %v1052 = vadd.f32 %v1036, %v1038
        %v1053 = vadd.f32 %v1052, %v1040
        %v1054 = vadd.f32 %v1053, %v1042
        %v1055 = vrot.slane %v1054, 4
        %v1056 = vadd.f32 %v1054, %v1055
        %v1057 = vrot.slane %v1056, 2
        %v1058 = vadd.f32 %v1056, %v1057
        %v1059 = vrot.slane %v1058, 1
        %v1060 = vadd.f32 %v1058, %v1059
        %v1061 = vmul.f32 %v929, %v801
        %v1062 = vmul.f32 %v931, %v802
        %v1063 = vmul.f32 %v933, %v803
        %v1064 = vmul.f32 %v935, %v804
        %v1065 = vmul.f32 %v939, %v805
        %v1066 = vmul.f32 %v941, %v806
        %v1067 = vmul.f32 %v943, %v807
        %v1068 = vmul.f32 %v945, %v808
        %v1069 = vadd.f32 %v1061, %v1063
        %v1070 = vadd.f32 %v1069, %v1065
        %v1071 = vadd.f32 %v1070, %v1067
        %v1072 = vrot.slane %v1071, 4
        %v1073 = vadd.f32 %v1071, %v1072
        %v1074 = vrot.slane %v1073, 2
        %v1075 = vadd.f32 %v1073, %v1074
        %v1076 = vrot.slane %v1075, 1
        %v1077 = vadd.f32 %v1075, %v1076
        %v1078 = vadd.f32 %v1062, %v1064
        %v1079 = vadd.f32 %v1078, %v1066
        %v1080 = vadd.f32 %v1079, %v1068
        %v1081 = vrot.slane %v1080, 4
        %v1082 = vadd.f32 %v1080, %v1081
        %v1083 = vrot.slane %v1082, 2
        %v1084 = vadd.f32 %v1082, %v1083
        %v1085 = vrot.slane %v1084, 1
        %v1086 = vadd.f32 %v1084, %v1085
        %vm1087 = vcmask 1040384
        %v1088 = vsel %vm1087, %v999, %v1025
        %v1089 = vsel %vm1087, %v1008, %v1034
        %v1090 = vsel %vm887, %v1088, %v1051
        %v1091 = vsel %vm887, %v1089, %v1060
        %vm1092 = vcmask 1042432
        %v1093 = vsel %vm1092, %v1090, %v1077
        %v1094 = vsel %vm1092, %v1091, %v1086
        %v1095 = vmul.f32 %v1093, 0.17677669
        %v1096 = vmul.f32 %v1094, 0.17677669
        %vm1097 = vcmask 1043456
        %v1098 = vsel %vm1097, %v1095, -inf
        %v1099 = vrot.slane %v1098, 4
        %v1100 = vmax.f32 %v1098, %v1099
        %v1101 = vrot.slane %v1100, 2
        %v1102 = vmax.f32 %v1100, %v1101
        %v1103 = vrot.slane %v1102, 1
        %v1104 = vmax.f32 %v1102, %v1103
        %v1105 = vsel %vm1097, %v1096, -inf
        %v1106 = vrot.slane %v1105, 4
        %v1107 = vmax.f32 %v1105, %v1106
        %v1108 = vrot.slane %v1107, 2
        %v1109 = vmax.f32 %v1107, %v1108
        %v1110 = vrot.slane %v1109, 1
        %v1111 = vmax.f32 %v1109, %v1110
        %v1112 = vsub.f32 %v1095, %v1104
        %v1113 = vsub.f32 %v1096, %v1111
        %v1114 = vmul.f32 %v1112, 1.442695
        %v1115 = vpow.pop %v1114
        %v1116 = vmul.f32 %v1113, 1.442695
        %v1117 = vpow.pop %v1116
        %v1118 = vsel %vm1097, %v1115, 0.0
        %v1119 = vrot.slane %v1118, 4
        %v1120 = vadd.f32 %v1118, %v1119
        %v1121 = vrot.slane %v1120, 2
        %v1122 = vadd.f32 %v1120, %v1121
        %v1123 = vrot.slane %v1122, 1
        %v1124 = vadd.f32 %v1122, %v1123
        %v1125 = vsel %vm1097, %v1117, 0.0
        %v1126 = vrot.slane %v1125, 4
        %v1127 = vadd.f32 %v1125, %v1126
        %v1128 = vrot.slane %v1127, 2
        %v1129 = vadd.f32 %v1127, %v1128
        %v1130 = vrot.slane %v1129, 1
        %v1131 = vadd.f32 %v1129, %v1130
        %v1132 = vrcp.pop %v1124
        %v1133 = vrcp.pop %v1131
        %v1134 = vmul.f32 %v1115, %v1132
        %v1135 = vmul.f32 %v1117, %v1133
        %v1136 = vpack.c.bf16 %v1134, %v1134
        %v1137 = vpack.c.bf16 %v1135, %v1135
        %v1140 = vcombine.low %v1136, %v1137
        %v1142 = vunpack.c.l.s4 1983009808
        %v1143 = vunpack.c.0.s8 %v1142
        %v1144 = vlaneseq
        %v1145 = vshrl.u32 %v1144, 7
        %v1146 = vsub.s32 %v1143, %v1145
        %v1147 = vrot.slane %v1140, %v1146
        %1149 = vst [vmem:[%s713] sm:$0xf] %v1147
        %v1150 = vlaneseq
        %v1151 = vshrl.u32 %v1150, 7
        %v1152 = vsub.s32 0, %v1151
        %v1153 = vrot.slane %v1134, %v1152
        %v1154 = vlaneseq
        %v1155 = vshrl.u32 %v1154, 7
        %v1156 = vsub.s32 0, %v1155
        %v1157 = vrot.slane %v1135, %v1156
        %v1158 = vmul.f32 %v1153, %v777
        %v1159 = vmul.f32 %v1157, %v778
        %v1160 = vmul.f32 %v1153, %v779
        %v1161 = vmul.f32 %v1157, %v780
        %v1162 = vmul.f32 %v1153, %v781
        %v1163 = vmul.f32 %v1157, %v782
        %v1164 = vmul.f32 %v1153, %v783
        %v1165 = vmul.f32 %v1157, %v784
        %v1166 = vlaneseq
        %v1167 = vshrl.u32 %v1166, 7
        %v1168 = vsub.s32 1, %v1167
        %v1169 = vrot.slane %v1134, %v1168
        %v1170 = vlaneseq
        %v1171 = vshrl.u32 %v1170, 7
        %v1172 = vsub.s32 1, %v1171
        %v1173 = vrot.slane %v1135, %v1172
        %v1174 = vmul.f32 %v1169, %v785
        %v1175 = vmul.f32 %v1173, %v786
        %v1176 = vmul.f32 %v1169, %v787
        %v1177 = vmul.f32 %v1173, %v788
        %v1178 = vmul.f32 %v1169, %v789
        %v1179 = vmul.f32 %v1173, %v790
        %v1180 = vmul.f32 %v1169, %v791
        %v1181 = vmul.f32 %v1173, %v792
        %v1182 = vadd.f32 %v1158, %v1174
        %v1183 = vadd.f32 %v1159, %v1175
        %v1184 = vadd.f32 %v1160, %v1176
        %v1185 = vadd.f32 %v1161, %v1177
        %v1186 = vadd.f32 %v1162, %v1178
        %v1187 = vadd.f32 %v1163, %v1179
        %v1188 = vadd.f32 %v1164, %v1180
        %v1189 = vadd.f32 %v1165, %v1181
        %v1190 = vlaneseq
        %v1191 = vshrl.u32 %v1190, 7
        %v1192 = vsub.s32 2, %v1191
        %v1193 = vrot.slane %v1134, %v1192
        %v1194 = vlaneseq
        %v1195 = vshrl.u32 %v1194, 7
        %v1196 = vsub.s32 2, %v1195
        %v1197 = vrot.slane %v1135, %v1196
        %v1198 = vmul.f32 %v1193, %v793
        %v1199 = vmul.f32 %v1197, %v794
        %v1200 = vmul.f32 %v1193, %v795
        %v1201 = vmul.f32 %v1197, %v796
        %v1202 = vmul.f32 %v1193, %v797
        %v1203 = vmul.f32 %v1197, %v798
        %v1204 = vmul.f32 %v1193, %v799
        %v1205 = vmul.f32 %v1197, %v800
        %v1206 = vadd.f32 %v1182, %v1198
        %v1207 = vadd.f32 %v1183, %v1199
        %v1208 = vadd.f32 %v1184, %v1200
        %v1209 = vadd.f32 %v1185, %v1201
        %v1210 = vadd.f32 %v1186, %v1202
        %v1211 = vadd.f32 %v1187, %v1203
        %v1212 = vadd.f32 %v1188, %v1204
        %v1213 = vadd.f32 %v1189, %v1205
        %v1214 = vlaneseq
        %v1215 = vshrl.u32 %v1214, 7
        %v1216 = vsub.s32 3, %v1215
        %v1217 = vrot.slane %v1134, %v1216
        %v1218 = vlaneseq
        %v1219 = vshrl.u32 %v1218, 7
        %v1220 = vsub.s32 3, %v1219
        %v1221 = vrot.slane %v1135, %v1220
        %v1222 = vmul.f32 %v1217, %v801
        %v1223 = vmul.f32 %v1221, %v802
        %v1224 = vmul.f32 %v1217, %v803
        %v1225 = vmul.f32 %v1221, %v804
        %v1226 = vmul.f32 %v1217, %v805
        %v1227 = vmul.f32 %v1221, %v806
        %v1228 = vmul.f32 %v1217, %v807
        %v1229 = vmul.f32 %v1221, %v808
        %v1230 = vadd.f32 %v1206, %v1222
        %v1231 = vadd.f32 %v1207, %v1223
        %v1232 = vadd.f32 %v1208, %v1224
        %v1233 = vadd.f32 %v1209, %v1225
        %v1234 = vadd.f32 %v1210, %v1226
        %v1235 = vadd.f32 %v1211, %v1227
        %v1236 = vadd.f32 %v1212, %v1228
        %v1237 = vadd.f32 %v1213, %v1229
        %v1238 = vld [vmem:[%s4] sm:$0xff]
        %v1239 = vld [vmem:[%s4 + $0x8] sm:$0xff]
        %v1240 = vld [vmem:[%s4 + $0x10] sm:$0xff]
        %v1241 = vld [vmem:[%s4 + $0x18] sm:$0xff]
        %v1242 = vpack.c.bf16 %v1239, %v1238
        %v1243 = vpack.c.bf16 %v1241, %v1240
        %v1244 = vpack.c.bf16 %v1232, %v1230
        %v1245 = vpack.c.bf16 %v1233, %v1231
        %v1246 = vpack.c.bf16 %v1236, %v1234
        %v1247 = vpack.c.bf16 %v1237, %v1235
        %v1248 = vld [vmem:[%s5] sm:$0xff]
        %v1249 = vld [vmem:[%s5 + $0x8] sm:$0xff]
        %v1250 = vld [vmem:[%s5 + $0x10] sm:$0xff]
        %v1251 = vld [vmem:[%s5 + $0x18] sm:$0xff]
        %1253 = vset.pattern.permute.xlu0 0
        %1254 = vperm.xlu0 %1253, %v1248
        %v1255 = vpop.permute.xlu0 %1254
        %1258 = vset.pattern.permute.xlu0 0
        %1259 = vperm.xlu0 %1258, %v1249
        %v1260 = vpop.permute.xlu0 %1259
        %1263 = vset.pattern.permute.xlu0 0
        %1264 = vperm.xlu0 %1263, %v1250
        %v1265 = vpop.permute.xlu0 %1264
        %1268 = vset.pattern.permute.xlu0 0
        %1269 = vperm.xlu0 %1268, %v1251
        %v1270 = vpop.permute.xlu0 %1269
        %vm1272 = vcmask 261120
        %v1274 = vsel %vm1272, %v1242, 0
        %v1277 = vsel %vm1272, %v1243, 0
        %1279 = vmatprep.subr.bf16.mxu0 0
        %1280 = vmatpush1.bf16.msra.mxu0 0
        %1281 = vmatprep.subr.bf16.mxu0 0
        %1282 = vmatpush1.bf16.msra.mxu0 0
        %1283 = vmatprep.subr.bf16.mxu0 0
        %1284 = vmatpush1.bf16.msra.mxu0 0
        %1285 = vmatprep.subr.bf16.mxu0 0
        %1286 = vmatpush1.bf16.msra.mxu0 0
        %1287 = vmatprep.subr.bf16.mxu0 0
        %1288 = vmatpush1.bf16.msra.mxu0 0
        %1289 = vmatprep.subr.bf16.mxu0 0
        %1290 = vmatpush1.bf16.msra.mxu0 0
        %1291 = vmatprep.subr.bf16.mxu0 %v1247
        %1292 = vmatpush1.bf16.msra.mxu0 %v1246
        %1293 = vmatprep.subr.bf16.mxu0 %v1245
        %1294 = vmatpush1.bf16.msra.mxu0 %v1244
        %1295 = vmatprep.subr.bf16.mxu0 0
        %1296 = vmatpush2.bf16.msra.mxu0 0
        %1297 = vmatprep.subr.bf16.mxu0 0
        %1298 = vmatpush2.bf16.msra.mxu0 0
        %1299 = vmatprep.subr.bf16.mxu0 0
        %1300 = vmatpush2.bf16.msra.mxu0 0
        %1301 = vmatprep.subr.bf16.mxu0 0
        %1302 = vmatpush2.bf16.msra.mxu0 0
        %1303 = vmatprep.subr.bf16.mxu0 0
        %1304 = vmatpush2.bf16.msra.mxu0 0
        %1305 = vmatprep.subr.bf16.mxu0 0
        %1306 = vmatpush2.bf16.msra.mxu0 0
        %1307 = vmatprep.subr.bf16.mxu0 0
        %1308 = vmatpush2.bf16.msra.mxu0 0
        %1309 = vmatprep.subr.bf16.mxu0 0
        %1310 = vmatpush2.bf16.msra.mxu0 0
        %1311 = vmatprep.mubr.bf16.mxu0 0
        %1312 = vmatmul.mubr.bf16.gmra.mxu0 %v1274
        %v1313 = vpop.f32.mrf.mxu0
        %v1314 = vadd.f32 %v1255, %v1313
        %v1315 = vpop.f32.mrf.mxu0
        %v1316 = vadd.f32 %v1255, %v1315
        %v1317 = vpop.f32.mrf.mxu0
        %v1318 = vadd.f32 %v1260, %v1317
        %v1319 = vpop.f32.mrf.mxu0
        %v1320 = vadd.f32 %v1260, %v1319
        %1321 = vmatprep.mubr.bf16.mxu0 0
        %1322 = vmatmul.mubr.bf16.gmra.mxu0 %v1277
        %v1323 = vpop.f32.mrf.mxu0
        %v1324 = vadd.f32 %v1265, %v1323
        %v1325 = vpop.f32.mrf.mxu0
        %v1326 = vadd.f32 %v1265, %v1325
        %v1327 = vpop.f32.mrf.mxu0
        %v1328 = vadd.f32 %v1270, %v1327
        %v1329 = vpop.f32.mrf.mxu0
        %v1330 = vadd.f32 %v1270, %v1329
        %1331 = vdwg.mxu0
        %1332 = vst [vmem:[%s759] sm:$0xff] %v1314
        %1333 = vst [vmem:[%s759 + $0x8] sm:$0xff] %v1316
        %1334 = vst [vmem:[%s759 + $0x10] sm:$0xff] %v1318
        %1335 = vst [vmem:[%s759 + $0x18] sm:$0xff] %v1320
        %1336 = vst [vmem:[%s759 + $0x20] sm:$0xff] %v1324
        %1337 = vst [vmem:[%s759 + $0x28] sm:$0xff] %v1326
        %1338 = vst [vmem:[%s759 + $0x30] sm:$0xff] %v1328
        %1339 = vst [vmem:[%s759 + $0x38] sm:$0xff] %v1330
        %v1340 = vpack.c.bf16 %v933, %v929
        %v1341 = vpack.c.bf16 %v935, %v931
        %v1342 = vpack.c.bf16 %v943, %v939
        %v1343 = vpack.c.bf16 %v945, %v941
        %1344 = vxpose.xlu0.c.b16.start [1/8] %v1340, 128
        %1345 = vxpose.xlu0.c.b16.cont [2/8] %v1342, 128
        %1346 = vxpose.xlu0.c.b16.cont [3/8] 0, 128
        %1347 = vxpose.xlu0.c.b16.cont [4/8] 0, 128
        %1348 = vxpose.xlu0.c.b16.cont [5/8] 0, 128
        %1349 = vxpose.xlu0.c.b16.cont [6/8] 0, 128
        %1350 = vxpose.xlu0.c.b16.cont [7/8] 0, 128
        %1351 = vxpose.xlu0.c.b16.end [8/8] 0, 128
        %v1352 = vpop.trf.xlu0
        %v1353 = vpop.trf.xlu0
        %v1354 = vpop.trf.xlu0
        %v1355 = vpop.trf.xlu0
        %v1356 = vpop.trf.xlu0
        %v1357 = vpop.trf.xlu0
        %v1358 = vpop.trf.xlu0
        %v1359 = vpop.trf.xlu0
        %1360 = vxpose.xlu0.c.b16.start [1/8] %v1341, 128
        %1361 = vxpose.xlu0.c.b16.cont [2/8] %v1343, 128
        %1362 = vxpose.xlu0.c.b16.cont [3/8] 0, 128
        %1363 = vxpose.xlu0.c.b16.cont [4/8] 0, 128
        %1364 = vxpose.xlu0.c.b16.cont [5/8] 0, 128
        %1365 = vxpose.xlu0.c.b16.cont [6/8] 0, 128
        %1366 = vxpose.xlu0.c.b16.cont [7/8] 0, 128
        %1367 = vxpose.xlu0.c.b16.end [8/8] 0, 128
        %v1368 = vpop.trf.xlu0
        %v1369 = vpop.trf.xlu0
        %v1370 = vpop.trf.xlu0
        %v1371 = vpop.trf.xlu0
        %v1372 = vpop.trf.xlu0
        %v1373 = vpop.trf.xlu0
        %v1374 = vpop.trf.xlu0
        %v1375 = vpop.trf.xlu0
        %v1377 = vsel %vm1272, %v1352, 0
        %v1380 = vsel %vm1272, %v1353, 0
        %v1383 = vsel %vm1272, %v1354, 0
        %v1386 = vsel %vm1272, %v1355, 0
        %v1389 = vsel %vm1272, %v1356, 0
        %v1392 = vsel %vm1272, %v1357, 0
        %v1395 = vsel %vm1272, %v1358, 0
        %v1398 = vsel %vm1272, %v1359, 0
        %v1401 = vsel %vm1272, %v1368, 0
        %v1404 = vsel %vm1272, %v1369, 0
        %v1407 = vsel %vm1272, %v1370, 0
        %v1410 = vsel %vm1272, %v1371, 0
        %v1413 = vsel %vm1272, %v1372, 0
        %v1416 = vsel %vm1272, %v1373, 0
        %v1419 = vsel %vm1272, %v1374, 0
        %v1422 = vsel %vm1272, %v1375, 0
        %1424 = vmatprep.subr.bf16.mxu0 0
        %1425 = vmatpush1.bf16.msra.mxu0 0
        %1426 = vmatprep.subr.bf16.mxu0 0
        %1427 = vmatpush1.bf16.msra.mxu0 0
        %1428 = vmatprep.subr.bf16.mxu0 0
        %1429 = vmatpush1.bf16.msra.mxu0 0
        %1430 = vmatprep.subr.bf16.mxu0 0
        %1431 = vmatpush1.bf16.msra.mxu0 0
        %1432 = vmatprep.subr.bf16.mxu0 0
        %1433 = vmatpush1.bf16.msra.mxu0 0
        %1434 = vmatprep.subr.bf16.mxu0 0
        %1435 = vmatpush1.bf16.msra.mxu0 0
        %1436 = vmatprep.subr.bf16.mxu0 %v1343
        %1437 = vmatpush1.bf16.msra.mxu0 %v1342
        %1438 = vmatprep.subr.bf16.mxu0 %v1341
        %1439 = vmatpush1.bf16.msra.mxu0 %v1340
        %1440 = vmatprep.subr.bf16.mxu0 0
        %1441 = vmatpush2.bf16.msra.mxu0 0
        %1442 = vmatprep.subr.bf16.mxu0 0
        %1443 = vmatpush2.bf16.msra.mxu0 0
        %1444 = vmatprep.subr.bf16.mxu0 0
        %1445 = vmatpush2.bf16.msra.mxu0 0
        %1446 = vmatprep.subr.bf16.mxu0 0
        %1447 = vmatpush2.bf16.msra.mxu0 0
        %1448 = vmatprep.subr.bf16.mxu0 0
        %1449 = vmatpush2.bf16.msra.mxu0 0
        %1450 = vmatprep.subr.bf16.mxu0 0
        %1451 = vmatpush2.bf16.msra.mxu0 0
        %1452 = vmatprep.subr.bf16.mxu0 0
        %1453 = vmatpush2.bf16.msra.mxu0 0
        %1454 = vmatprep.subr.bf16.mxu0 0
        %1455 = vmatpush2.bf16.msra.mxu0 0
        %1456 = vmatprep.mubr.bf16.mxu0 0
        %1457 = vmatmul.mubr.bf16.gmra.mxu0 %v1377
        %v1458 = vpop.f32.mrf.mxu0
        %v1459 = vadd.f32 0.0, %v1458
        %v1460 = vpop.f32.mrf.mxu0
        %v1461 = vadd.f32 0.0, %v1460
        %v1462 = vpop.f32.mrf.mxu0
        %v1463 = vadd.f32 0.0, %v1462
        %v1464 = vpop.f32.mrf.mxu0
        %v1465 = vadd.f32 0.0, %v1464
        %1466 = vmatprep.mubr.bf16.mxu0 0
        %1467 = vmatmul.mubr.bf16.gmra.mxu0 %v1380
        %v1468 = vpop.f32.mrf.mxu0
        %v1469 = vadd.f32 0.0, %v1468
        %v1470 = vpop.f32.mrf.mxu0
        %v1471 = vadd.f32 0.0, %v1470
        %v1472 = vpop.f32.mrf.mxu0
        %v1473 = vadd.f32 0.0, %v1472
        %v1474 = vpop.f32.mrf.mxu0
        %v1475 = vadd.f32 0.0, %v1474
        %1476 = vmatprep.mubr.bf16.mxu0 0
        %1477 = vmatmul.mubr.bf16.gmra.mxu0 %v1383
        %v1478 = vpop.f32.mrf.mxu0
        %v1479 = vadd.f32 0.0, %v1478
        %v1480 = vpop.f32.mrf.mxu0
        %v1481 = vadd.f32 0.0, %v1480
        %v1482 = vpop.f32.mrf.mxu0
        %v1483 = vadd.f32 0.0, %v1482
        %v1484 = vpop.f32.mrf.mxu0
        %v1485 = vadd.f32 0.0, %v1484
        %1486 = vmatprep.mubr.bf16.mxu0 0
        %1487 = vmatmul.mubr.bf16.gmra.mxu0 %v1386
        %v1488 = vpop.f32.mrf.mxu0
        %v1489 = vadd.f32 0.0, %v1488
        %v1490 = vpop.f32.mrf.mxu0
        %v1491 = vadd.f32 0.0, %v1490
        %v1492 = vpop.f32.mrf.mxu0
        %v1493 = vadd.f32 0.0, %v1492
        %v1494 = vpop.f32.mrf.mxu0
        %v1495 = vadd.f32 0.0, %v1494
        %1496 = vmatprep.mubr.bf16.mxu0 0
        %1497 = vmatmul.mubr.bf16.gmra.mxu0 %v1389
        %v1498 = vpop.f32.mrf.mxu0
        %v1499 = vadd.f32 0.0, %v1498
        %v1500 = vpop.f32.mrf.mxu0
        %v1501 = vadd.f32 0.0, %v1500
        %v1502 = vpop.f32.mrf.mxu0
        %v1503 = vadd.f32 0.0, %v1502
        %v1504 = vpop.f32.mrf.mxu0
        %v1505 = vadd.f32 0.0, %v1504
        %1506 = vmatprep.mubr.bf16.mxu0 0
        %1507 = vmatmul.mubr.bf16.gmra.mxu0 %v1392
        %v1508 = vpop.f32.mrf.mxu0
        %v1509 = vadd.f32 0.0, %v1508
        %v1510 = vpop.f32.mrf.mxu0
        %v1511 = vadd.f32 0.0, %v1510
        %v1512 = vpop.f32.mrf.mxu0
        %v1513 = vadd.f32 0.0, %v1512
        %v1514 = vpop.f32.mrf.mxu0
        %v1515 = vadd.f32 0.0, %v1514
        %1516 = vmatprep.mubr.bf16.mxu0 0
        %1517 = vmatmul.mubr.bf16.gmra.mxu0 %v1395
        %v1518 = vpop.f32.mrf.mxu0
        %v1519 = vadd.f32 0.0, %v1518
        %v1520 = vpop.f32.mrf.mxu0
        %v1521 = vadd.f32 0.0, %v1520
        %v1522 = vpop.f32.mrf.mxu0
        %v1523 = vadd.f32 0.0, %v1522
        %v1524 = vpop.f32.mrf.mxu0
        %v1525 = vadd.f32 0.0, %v1524
        %1526 = vmatprep.mubr.bf16.mxu0 0
        %1527 = vmatmul.mubr.bf16.gmra.mxu0 %v1398
        %v1528 = vpop.f32.mrf.mxu0
        %v1529 = vadd.f32 0.0, %v1528
        %v1530 = vpop.f32.mrf.mxu0
        %v1531 = vadd.f32 0.0, %v1530
        %v1532 = vpop.f32.mrf.mxu0
        %v1533 = vadd.f32 0.0, %v1532
        %v1534 = vpop.f32.mrf.mxu0
        %v1535 = vadd.f32 0.0, %v1534
        %1536 = vmatprep.mubr.bf16.mxu0 0
        %1537 = vmatmul.mubr.bf16.gmra.mxu0 %v1401
        %v1538 = vpop.f32.mrf.mxu0
        %v1539 = vadd.f32 0.0, %v1538
        %v1540 = vpop.f32.mrf.mxu0
        %v1541 = vadd.f32 0.0, %v1540
        %v1542 = vpop.f32.mrf.mxu0
        %v1543 = vadd.f32 0.0, %v1542
        %v1544 = vpop.f32.mrf.mxu0
        %v1545 = vadd.f32 0.0, %v1544
        %1546 = vmatprep.mubr.bf16.mxu0 0
        %1547 = vmatmul.mubr.bf16.gmra.mxu0 %v1404
        %v1548 = vpop.f32.mrf.mxu0
        %v1549 = vadd.f32 0.0, %v1548
        %v1550 = vpop.f32.mrf.mxu0
        %v1551 = vadd.f32 0.0, %v1550
        %v1552 = vpop.f32.mrf.mxu0
        %v1553 = vadd.f32 0.0, %v1552
        %v1554 = vpop.f32.mrf.mxu0
        %v1555 = vadd.f32 0.0, %v1554
        %1556 = vmatprep.mubr.bf16.mxu0 0
        %1557 = vmatmul.mubr.bf16.gmra.mxu0 %v1407
        %v1558 = vpop.f32.mrf.mxu0
        %v1559 = vadd.f32 0.0, %v1558
        %v1560 = vpop.f32.mrf.mxu0
        %v1561 = vadd.f32 0.0, %v1560
        %v1562 = vpop.f32.mrf.mxu0
        %v1563 = vadd.f32 0.0, %v1562
        %v1564 = vpop.f32.mrf.mxu0
        %v1565 = vadd.f32 0.0, %v1564
        %1566 = vmatprep.mubr.bf16.mxu0 0
        %1567 = vmatmul.mubr.bf16.gmra.mxu0 %v1410
        %v1568 = vpop.f32.mrf.mxu0
        %v1569 = vadd.f32 0.0, %v1568
        %v1570 = vpop.f32.mrf.mxu0
        %v1571 = vadd.f32 0.0, %v1570
        %v1572 = vpop.f32.mrf.mxu0
        %v1573 = vadd.f32 0.0, %v1572
        %v1574 = vpop.f32.mrf.mxu0
        %v1575 = vadd.f32 0.0, %v1574
        %1576 = vmatprep.mubr.bf16.mxu0 0
        %1577 = vmatmul.mubr.bf16.gmra.mxu0 %v1413
        %v1578 = vpop.f32.mrf.mxu0
        %v1579 = vadd.f32 0.0, %v1578
        %v1580 = vpop.f32.mrf.mxu0
        %v1581 = vadd.f32 0.0, %v1580
        %v1582 = vpop.f32.mrf.mxu0
        %v1583 = vadd.f32 0.0, %v1582
        %v1584 = vpop.f32.mrf.mxu0
        %v1585 = vadd.f32 0.0, %v1584
        %1586 = vmatprep.mubr.bf16.mxu0 0
        %1587 = vmatmul.mubr.bf16.gmra.mxu0 %v1416
        %v1588 = vpop.f32.mrf.mxu0
        %v1589 = vadd.f32 0.0, %v1588
        %v1590 = vpop.f32.mrf.mxu0
        %v1591 = vadd.f32 0.0, %v1590
        %v1592 = vpop.f32.mrf.mxu0
        %v1593 = vadd.f32 0.0, %v1592
        %v1594 = vpop.f32.mrf.mxu0
        %v1595 = vadd.f32 0.0, %v1594
        %1596 = vmatprep.mubr.bf16.mxu0 0
        %1597 = vmatmul.mubr.bf16.gmra.mxu0 %v1419
        %v1598 = vpop.f32.mrf.mxu0
        %v1599 = vadd.f32 0.0, %v1598
        %v1600 = vpop.f32.mrf.mxu0
        %v1601 = vadd.f32 0.0, %v1600
        %v1602 = vpop.f32.mrf.mxu0
        %v1603 = vadd.f32 0.0, %v1602
        %v1604 = vpop.f32.mrf.mxu0
        %v1605 = vadd.f32 0.0, %v1604
        %1606 = vmatprep.mubr.bf16.mxu0 0
        %1607 = vmatmul.mubr.bf16.gmra.mxu0 %v1422
        %v1608 = vpop.f32.mrf.mxu0
        %v1609 = vadd.f32 0.0, %v1608
        %v1610 = vpop.f32.mrf.mxu0
        %v1611 = vadd.f32 0.0, %v1610
        %v1612 = vpop.f32.mrf.mxu0
        %v1613 = vadd.f32 0.0, %v1612
        %v1614 = vpop.f32.mrf.mxu0
        %v1615 = vadd.f32 0.0, %v1614
        %1616 = vdwg.mxu0
        %v1617 = vmul.f32 %v1459, 0.17677669
        %v1618 = vmul.f32 %v1461, 0.17677669
        %v1619 = vmul.f32 %v1463, 0.17677669
        %v1620 = vmul.f32 %v1465, 0.17677669
        %v1621 = vmul.f32 %v1469, 0.17677669
        %v1622 = vmul.f32 %v1471, 0.17677669
        %v1623 = vmul.f32 %v1473, 0.17677669
        %v1624 = vmul.f32 %v1475, 0.17677669
        %v1625 = vmul.f32 %v1479, 0.17677669
        %v1626 = vmul.f32 %v1481, 0.17677669
        %v1627 = vmul.f32 %v1483, 0.17677669
        %v1628 = vmul.f32 %v1485, 0.17677669
        %v1629 = vmul.f32 %v1489, 0.17677669
        %v1630 = vmul.f32 %v1491, 0.17677669
        %v1631 = vmul.f32 %v1493, 0.17677669
        %v1632 = vmul.f32 %v1495, 0.17677669
        %v1633 = vmul.f32 %v1499, 0.17677669
        %v1634 = vmul.f32 %v1501, 0.17677669
        %v1635 = vmul.f32 %v1503, 0.17677669
        %v1636 = vmul.f32 %v1505, 0.17677669
        %v1637 = vmul.f32 %v1509, 0.17677669
        %v1638 = vmul.f32 %v1511, 0.17677669
        %v1639 = vmul.f32 %v1513, 0.17677669
        %v1640 = vmul.f32 %v1515, 0.17677669
        %v1641 = vmul.f32 %v1519, 0.17677669
        %v1642 = vmul.f32 %v1521, 0.17677669
        %v1643 = vmul.f32 %v1523, 0.17677669
        %v1644 = vmul.f32 %v1525, 0.17677669
        %v1645 = vmul.f32 %v1529, 0.17677669
        %v1646 = vmul.f32 %v1531, 0.17677669
        %v1647 = vmul.f32 %v1533, 0.17677669
        %v1648 = vmul.f32 %v1535, 0.17677669
        %v1649 = vmul.f32 %v1539, 0.17677669
        %v1650 = vmul.f32 %v1541, 0.17677669
        %v1651 = vmul.f32 %v1543, 0.17677669
        %v1652 = vmul.f32 %v1545, 0.17677669
        %v1653 = vmul.f32 %v1549, 0.17677669
        %v1654 = vmul.f32 %v1551, 0.17677669
        %v1655 = vmul.f32 %v1553, 0.17677669
        %v1656 = vmul.f32 %v1555, 0.17677669
        %v1657 = vmul.f32 %v1559, 0.17677669
        %v1658 = vmul.f32 %v1561, 0.17677669
        %v1659 = vmul.f32 %v1563, 0.17677669
        %v1660 = vmul.f32 %v1565, 0.17677669
        %v1661 = vmul.f32 %v1569, 0.17677669
        %v1662 = vmul.f32 %v1571, 0.17677669
        %v1663 = vmul.f32 %v1573, 0.17677669
        %v1664 = vmul.f32 %v1575, 0.17677669
        %v1665 = vmul.f32 %v1579, 0.17677669
        %v1666 = vmul.f32 %v1581, 0.17677669
        %v1667 = vmul.f32 %v1583, 0.17677669
        %v1668 = vmul.f32 %v1585, 0.17677669
        %v1669 = vmul.f32 %v1589, 0.17677669
        %v1670 = vmul.f32 %v1591, 0.17677669
        %v1671 = vmul.f32 %v1593, 0.17677669
        %v1672 = vmul.f32 %v1595, 0.17677669
        %v1673 = vmul.f32 %v1599, 0.17677669
        %v1674 = vmul.f32 %v1601, 0.17677669
        %v1675 = vmul.f32 %v1603, 0.17677669
        %v1676 = vmul.f32 %v1605, 0.17677669
        %v1677 = vmul.f32 %v1609, 0.17677669
        %v1678 = vmul.f32 %v1611, 0.17677669
        %v1679 = vmul.f32 %v1613, 0.17677669
        %v1680 = vmul.f32 %v1615, 0.17677669
        %v1681 = vmax.f32 %v1617, %v1618
        %1682 = vmax.xlane.f32.xlu0 %v1681
        %v1683 = vpop.xlane.xlu0 %1682
        %v1684 = vmax.f32 %v1619, %v1620
        %1685 = vmax.xlane.f32.xlu0 %v1684
        %v1686 = vpop.xlane.xlu0 %1685
        %v1687 = vmax.f32 %v1621, %v1622
        %1688 = vmax.xlane.f32.xlu0 %v1687
        %v1689 = vpop.xlane.xlu0 %1688
        %v1690 = vmax.f32 %v1623, %v1624
        %1691 = vmax.xlane.f32.xlu0 %v1690
        %v1692 = vpop.xlane.xlu0 %1691
        %v1693 = vmax.f32 %v1625, %v1626
        %1694 = vmax.xlane.f32.xlu0 %v1693
        %v1695 = vpop.xlane.xlu0 %1694
        %v1696 = vmax.f32 %v1627, %v1628
        %1697 = vmax.xlane.f32.xlu0 %v1696
        %v1698 = vpop.xlane.xlu0 %1697
        %v1699 = vmax.f32 %v1629, %v1630
        %1700 = vmax.xlane.f32.xlu0 %v1699
        %v1701 = vpop.xlane.xlu0 %1700
        %v1702 = vmax.f32 %v1631, %v1632
        %1703 = vmax.xlane.f32.xlu0 %v1702
        %v1704 = vpop.xlane.xlu0 %1703
        %v1705 = vmax.f32 %v1633, %v1634
        %1706 = vmax.xlane.f32.xlu0 %v1705
        %v1707 = vpop.xlane.xlu0 %1706
        %v1708 = vmax.f32 %v1635, %v1636
        %1709 = vmax.xlane.f32.xlu0 %v1708
        %v1710 = vpop.xlane.xlu0 %1709
        %v1711 = vmax.f32 %v1637, %v1638
        %1712 = vmax.xlane.f32.xlu0 %v1711
        %v1713 = vpop.xlane.xlu0 %1712
        %v1714 = vmax.f32 %v1639, %v1640
        %1715 = vmax.xlane.f32.xlu0 %v1714
        %v1716 = vpop.xlane.xlu0 %1715
        %v1717 = vmax.f32 %v1641, %v1642
        %1718 = vmax.xlane.f32.xlu0 %v1717
        %v1719 = vpop.xlane.xlu0 %1718
        %v1720 = vmax.f32 %v1643, %v1644
        %1721 = vmax.xlane.f32.xlu0 %v1720
        %v1722 = vpop.xlane.xlu0 %1721
        %v1723 = vmax.f32 %v1645, %v1646
        %1724 = vmax.xlane.f32.xlu0 %v1723
        %v1725 = vpop.xlane.xlu0 %1724
        %v1726 = vmax.f32 %v1647, %v1648
        %1727 = vmax.xlane.f32.xlu0 %v1726
        %v1728 = vpop.xlane.xlu0 %1727
        %v1729 = vmax.f32 %v1649, %v1650
        %1730 = vmax.xlane.f32.xlu0 %v1729
        %v1731 = vpop.xlane.xlu0 %1730
        %v1732 = vmax.f32 %v1651, %v1652
        %1733 = vmax.xlane.f32.xlu0 %v1732
        %v1734 = vpop.xlane.xlu0 %1733
        %v1735 = vmax.f32 %v1653, %v1654
        %1736 = vmax.xlane.f32.xlu0 %v1735
        %v1737 = vpop.xlane.xlu0 %1736
        %v1738 = vmax.f32 %v1655, %v1656
        %1739 = vmax.xlane.f32.xlu0 %v1738
        %v1740 = vpop.xlane.xlu0 %1739
        %v1741 = vmax.f32 %v1657, %v1658
        %1742 = vmax.xlane.f32.xlu0 %v1741
        %v1743 = vpop.xlane.xlu0 %1742
        %v1744 = vmax.f32 %v1659, %v1660
        %1745 = vmax.xlane.f32.xlu0 %v1744
        %v1746 = vpop.xlane.xlu0 %1745
        %v1747 = vmax.f32 %v1661, %v1662
        %1748 = vmax.xlane.f32.xlu0 %v1747
        %v1749 = vpop.xlane.xlu0 %1748
        %v1750 = vmax.f32 %v1663, %v1664
        %1751 = vmax.xlane.f32.xlu0 %v1750
        %v1752 = vpop.xlane.xlu0 %1751
        %v1753 = vmax.f32 %v1665, %v1666
        %1754 = vmax.xlane.f32.xlu0 %v1753
        %v1755 = vpop.xlane.xlu0 %1754
        %v1756 = vmax.f32 %v1667, %v1668
        %1757 = vmax.xlane.f32.xlu0 %v1756
        %v1758 = vpop.xlane.xlu0 %1757
        %v1759 = vmax.f32 %v1669, %v1670
        %1760 = vmax.xlane.f32.xlu0 %v1759
        %v1761 = vpop.xlane.xlu0 %1760
        %v1762 = vmax.f32 %v1671, %v1672
        %1763 = vmax.xlane.f32.xlu0 %v1762
        %v1764 = vpop.xlane.xlu0 %1763
        %v1765 = vmax.f32 %v1673, %v1674
        %1766 = vmax.xlane.f32.xlu0 %v1765
        %v1767 = vpop.xlane.xlu0 %1766
        %v1768 = vmax.f32 %v1675, %v1676
        %1769 = vmax.xlane.f32.xlu0 %v1768
        %v1770 = vpop.xlane.xlu0 %1769
        %v1771 = vmax.f32 %v1677, %v1678
        %1772 = vmax.xlane.f32.xlu0 %v1771
        %v1773 = vpop.xlane.xlu0 %1772
        %v1774 = vmax.f32 %v1679, %v1680
        %1775 = vmax.xlane.f32.xlu0 %v1774
        %v1776 = vpop.xlane.xlu0 %1775
        %v1777 = vsub.f32 %v1617, %v1683
        %v1778 = vsub.f32 %v1618, %v1683
        %v1779 = vsub.f32 %v1619, %v1686
        %v1780 = vsub.f32 %v1620, %v1686
        %v1781 = vsub.f32 %v1621, %v1689
        %v1782 = vsub.f32 %v1622, %v1689
        %v1783 = vsub.f32 %v1623, %v1692
        %v1784 = vsub.f32 %v1624, %v1692
        %v1785 = vsub.f32 %v1625, %v1695
        %v1786 = vsub.f32 %v1626, %v1695
        %v1787 = vsub.f32 %v1627, %v1698
        %v1788 = vsub.f32 %v1628, %v1698
        %v1789 = vsub.f32 %v1629, %v1701
        %v1790 = vsub.f32 %v1630, %v1701
        %v1791 = vsub.f32 %v1631, %v1704
        %v1792 = vsub.f32 %v1632, %v1704
        %v1793 = vsub.f32 %v1633, %v1707
        %v1794 = vsub.f32 %v1634, %v1707
        %v1795 = vsub.f32 %v1635, %v1710
        %v1796 = vsub.f32 %v1636, %v1710
        %v1797 = vsub.f32 %v1637, %v1713
        %v1798 = vsub.f32 %v1638, %v1713
        %v1799 = vsub.f32 %v1639, %v1716
        %v1800 = vsub.f32 %v1640, %v1716
        %v1801 = vsub.f32 %v1641, %v1719
        %v1802 = vsub.f32 %v1642, %v1719
        %v1803 = vsub.f32 %v1643, %v1722
        %v1804 = vsub.f32 %v1644, %v1722
        %v1805 = vsub.f32 %v1645, %v1725
        %v1806 = vsub.f32 %v1646, %v1725
        %v1807 = vsub.f32 %v1647, %v1728
        %v1808 = vsub.f32 %v1648, %v1728
        %v1809 = vsub.f32 %v1649, %v1731
        %v1810 = vsub.f32 %v1650, %v1731
        %v1811 = vsub.f32 %v1651, %v1734
        %v1812 = vsub.f32 %v1652, %v1734
        %v1813 = vsub.f32 %v1653, %v1737
        %v1814 = vsub.f32 %v1654, %v1737
        %v1815 = vsub.f32 %v1655, %v1740
        %v1816 = vsub.f32 %v1656, %v1740
        %v1817 = vsub.f32 %v1657, %v1743
        %v1818 = vsub.f32 %v1658, %v1743
        %v1819 = vsub.f32 %v1659, %v1746
        %v1820 = vsub.f32 %v1660, %v1746
        %v1821 = vsub.f32 %v1661, %v1749
        %v1822 = vsub.f32 %v1662, %v1749
        %v1823 = vsub.f32 %v1663, %v1752
        %v1824 = vsub.f32 %v1664, %v1752
        %v1825 = vsub.f32 %v1665, %v1755
        %v1826 = vsub.f32 %v1666, %v1755
        %v1827 = vsub.f32 %v1667, %v1758
        %v1828 = vsub.f32 %v1668, %v1758
        %v1829 = vsub.f32 %v1669, %v1761
        %v1830 = vsub.f32 %v1670, %v1761
        %v1831 = vsub.f32 %v1671, %v1764
        %v1832 = vsub.f32 %v1672, %v1764
        %v1833 = vsub.f32 %v1673, %v1767
        %v1834 = vsub.f32 %v1674, %v1767
        %v1835 = vsub.f32 %v1675, %v1770
        %v1836 = vsub.f32 %v1676, %v1770
        %v1837 = vsub.f32 %v1677, %v1773
        %v1838 = vsub.f32 %v1678, %v1773
        %v1839 = vsub.f32 %v1679, %v1776
        %v1840 = vsub.f32 %v1680, %v1776
        %v1841 = vmul.f32 %v1777, 1.442695
        %v1842 = vpow.pop %v1841
        %v1843 = vmul.f32 %v1778, 1.442695
        %v1844 = vpow.pop %v1843
        %v1845 = vmul.f32 %v1779, 1.442695
        %v1846 = vpow.pop %v1845
        %v1847 = vmul.f32 %v1780, 1.442695
        %v1848 = vpow.pop %v1847
        %v1849 = vmul.f32 %v1781, 1.442695
        %v1850 = vpow.pop %v1849
        %v1851 = vmul.f32 %v1782, 1.442695
        %v1852 = vpow.pop %v1851
        %v1853 = vmul.f32 %v1783, 1.442695
        %v1854 = vpow.pop %v1853
        %v1855 = vmul.f32 %v1784, 1.442695
        %v1856 = vpow.pop %v1855
        %v1857 = vmul.f32 %v1785, 1.442695
        %v1858 = vpow.pop %v1857
        %v1859 = vmul.f32 %v1786, 1.442695
        %v1860 = vpow.pop %v1859
        %v1861 = vmul.f32 %v1787, 1.442695
        %v1862 = vpow.pop %v1861
        %v1863 = vmul.f32 %v1788, 1.442695
        %v1864 = vpow.pop %v1863
        %v1865 = vmul.f32 %v1789, 1.442695
        %v1866 = vpow.pop %v1865
        %v1867 = vmul.f32 %v1790, 1.442695
        %v1868 = vpow.pop %v1867
        %v1869 = vmul.f32 %v1791, 1.442695
        %v1870 = vpow.pop %v1869
        %v1871 = vmul.f32 %v1792, 1.442695
        %v1872 = vpow.pop %v1871
        %v1873 = vmul.f32 %v1793, 1.442695
        %v1874 = vpow.pop %v1873
        %v1875 = vmul.f32 %v1794, 1.442695
        %v1876 = vpow.pop %v1875
        %v1877 = vmul.f32 %v1795, 1.442695
        %v1878 = vpow.pop %v1877
        %v1879 = vmul.f32 %v1796, 1.442695
        %v1880 = vpow.pop %v1879
        %v1881 = vmul.f32 %v1797, 1.442695
        %v1882 = vpow.pop %v1881
        %v1883 = vmul.f32 %v1798, 1.442695
        %v1884 = vpow.pop %v1883
        %v1885 = vmul.f32 %v1799, 1.442695
        %v1886 = vpow.pop %v1885
        %v1887 = vmul.f32 %v1800, 1.442695
        %v1888 = vpow.pop %v1887
        %v1889 = vmul.f32 %v1801, 1.442695
        %v1890 = vpow.pop %v1889
        %v1891 = vmul.f32 %v1802, 1.442695
        %v1892 = vpow.pop %v1891
        %v1893 = vmul.f32 %v1803, 1.442695
        %v1894 = vpow.pop %v1893
        %v1895 = vmul.f32 %v1804, 1.442695
        %v1896 = vpow.pop %v1895
        %v1897 = vmul.f32 %v1805, 1.442695
        %v1898 = vpow.pop %v1897
        %v1899 = vmul.f32 %v1806, 1.442695
        %v1900 = vpow.pop %v1899
        %v1901 = vmul.f32 %v1807, 1.442695
        %v1902 = vpow.pop %v1901
        %v1903 = vmul.f32 %v1808, 1.442695
        %v1904 = vpow.pop %v1903
        %v1905 = vmul.f32 %v1809, 1.442695
        %v1906 = vpow.pop %v1905
        %v1907 = vmul.f32 %v1810, 1.442695
        %v1908 = vpow.pop %v1907
        %v1909 = vmul.f32 %v1811, 1.442695
        %v1910 = vpow.pop %v1909
        %v1911 = vmul.f32 %v1812, 1.442695
        %v1912 = vpow.pop %v1911
        %v1913 = vmul.f32 %v1813, 1.442695
        %v1914 = vpow.pop %v1913
        %v1915 = vmul.f32 %v1814, 1.442695
        %v1916 = vpow.pop %v1915
        %v1917 = vmul.f32 %v1815, 1.442695
        %v1918 = vpow.pop %v1917
        %v1919 = vmul.f32 %v1816, 1.442695
        %v1920 = vpow.pop %v1919
        %v1921 = vmul.f32 %v1817, 1.442695
        %v1922 = vpow.pop %v1921
        %v1923 = vmul.f32 %v1818, 1.442695
        %v1924 = vpow.pop %v1923
        %v1925 = vmul.f32 %v1819, 1.442695
        %v1926 = vpow.pop %v1925
        %v1927 = vmul.f32 %v1820, 1.442695
        %v1928 = vpow.pop %v1927
        %v1929 = vmul.f32 %v1821, 1.442695
        %v1930 = vpow.pop %v1929
        %v1931 = vmul.f32 %v1822, 1.442695
        %v1932 = vpow.pop %v1931
        %v1933 = vmul.f32 %v1823, 1.442695
        %v1934 = vpow.pop %v1933
        %v1935 = vmul.f32 %v1824, 1.442695
        %v1936 = vpow.pop %v1935
        %v1937 = vmul.f32 %v1825, 1.442695
        %v1938 = vpow.pop %v1937
        %v1939 = vmul.f32 %v1826, 1.442695
        %v1940 = vpow.pop %v1939
        %v1941 = vmul.f32 %v1827, 1.442695
        %v1942 = vpow.pop %v1941
        %v1943 = vmul.f32 %v1828, 1.442695
        %v1944 = vpow.pop %v1943
        %v1945 = vmul.f32 %v1829, 1.442695
        %v1946 = vpow.pop %v1945
        %v1947 = vmul.f32 %v1830, 1.442695
        %v1948 = vpow.pop %v1947
        %v1949 = vmul.f32 %v1831, 1.442695
        %v1950 = vpow.pop %v1949
        %v1951 = vmul.f32 %v1832, 1.442695
        %v1952 = vpow.pop %v1951
        %v1953 = vmul.f32 %v1833, 1.442695
        %v1954 = vpow.pop %v1953
        %v1955 = vmul.f32 %v1834, 1.442695
        %v1956 = vpow.pop %v1955
        %v1957 = vmul.f32 %v1835, 1.442695
        %v1958 = vpow.pop %v1957
        %v1959 = vmul.f32 %v1836, 1.442695
        %v1960 = vpow.pop %v1959
        %v1961 = vmul.f32 %v1837, 1.442695
        %v1962 = vpow.pop %v1961
        %v1963 = vmul.f32 %v1838, 1.442695
        %v1964 = vpow.pop %v1963
        %v1965 = vmul.f32 %v1839, 1.442695
        %v1966 = vpow.pop %v1965
        %v1967 = vmul.f32 %v1840, 1.442695
        %v1968 = vpow.pop %v1967
        %v1969 = vadd.f32 %v1842, %v1844
        %1970 = vadd.xlane.f32.xlu0 %v1969
        %v1971 = vpop.xlane.xlu0 %1970
        %v1972 = vadd.f32 %v1846, %v1848
        %1973 = vadd.xlane.f32.xlu0 %v1972
        %v1974 = vpop.xlane.xlu0 %1973
        %v1975 = vadd.f32 %v1850, %v1852
        %1976 = vadd.xlane.f32.xlu0 %v1975
        %v1977 = vpop.xlane.xlu0 %1976
        %v1978 = vadd.f32 %v1854, %v1856
        %1979 = vadd.xlane.f32.xlu0 %v1978
        %v1980 = vpop.xlane.xlu0 %1979
        %v1981 = vadd.f32 %v1858, %v1860
        %1982 = vadd.xlane.f32.xlu0 %v1981
        %v1983 = vpop.xlane.xlu0 %1982
        %v1984 = vadd.f32 %v1862, %v1864
        %1985 = vadd.xlane.f32.xlu0 %v1984
        %v1986 = vpop.xlane.xlu0 %1985
        %v1987 = vadd.f32 %v1866, %v1868
        %1988 = vadd.xlane.f32.xlu0 %v1987
        %v1989 = vpop.xlane.xlu0 %1988
        %v1990 = vadd.f32 %v1870, %v1872
        %1991 = vadd.xlane.f32.xlu0 %v1990
        %v1992 = vpop.xlane.xlu0 %1991
        %v1993 = vadd.f32 %v1874, %v1876
        %1994 = vadd.xlane.f32.xlu0 %v1993
        %v1995 = vpop.xlane.xlu0 %1994
        %v1996 = vadd.f32 %v1878, %v1880
        %1997 = vadd.xlane.f32.xlu0 %v1996
        %v1998 = vpop.xlane.xlu0 %1997
        %v1999 = vadd.f32 %v1882, %v1884
        %2000 = vadd.xlane.f32.xlu0 %v1999
        %v2001 = vpop.xlane.xlu0 %2000
        %v2002 = vadd.f32 %v1886, %v1888
        %2003 = vadd.xlane.f32.xlu0 %v2002
        %v2004 = vpop.xlane.xlu0 %2003
        %v2005 = vadd.f32 %v1890, %v1892
        %2006 = vadd.xlane.f32.xlu0 %v2005
        %v2007 = vpop.xlane.xlu0 %2006
        %v2008 = vadd.f32 %v1894, %v1896
        %2009 = vadd.xlane.f32.xlu0 %v2008
        %v2010 = vpop.xlane.xlu0 %2009
        %v2011 = vadd.f32 %v1898, %v1900
        %2012 = vadd.xlane.f32.xlu0 %v2011
        %v2013 = vpop.xlane.xlu0 %2012
        %v2014 = vadd.f32 %v1902, %v1904
        %2015 = vadd.xlane.f32.xlu0 %v2014
        %v2016 = vpop.xlane.xlu0 %2015
        %v2017 = vadd.f32 %v1906, %v1908
        %2018 = vadd.xlane.f32.xlu0 %v2017
        %v2019 = vpop.xlane.xlu0 %2018
        %v2020 = vadd.f32 %v1910, %v1912
        %2021 = vadd.xlane.f32.xlu0 %v2020
        %v2022 = vpop.xlane.xlu0 %2021
        %v2023 = vadd.f32 %v1914, %v1916
        %2024 = vadd.xlane.f32.xlu0 %v2023
        %v2025 = vpop.xlane.xlu0 %2024
        %v2026 = vadd.f32 %v1918, %v1920
        %2027 = vadd.xlane.f32.xlu0 %v2026
        %v2028 = vpop.xlane.xlu0 %2027
        %v2029 = vadd.f32 %v1922, %v1924
        %2030 = vadd.xlane.f32.xlu0 %v2029
        %v2031 = vpop.xlane.xlu0 %2030
        %v2032 = vadd.f32 %v1926, %v1928
        %2033 = vadd.xlane.f32.xlu0 %v2032
        %v2034 = vpop.xlane.xlu0 %2033
        %v2035 = vadd.f32 %v1930, %v1932
        %2036 = vadd.xlane.f32.xlu0 %v2035
        %v2037 = vpop.xlane.xlu0 %2036
        %v2038 = vadd.f32 %v1934, %v1936
        %2039 = vadd.xlane.f32.xlu0 %v2038
        %v2040 = vpop.xlane.xlu0 %2039
        %v2041 = vadd.f32 %v1938, %v1940
        %2042 = vadd.xlane.f32.xlu0 %v2041
        %v2043 = vpop.xlane.xlu0 %2042
        %v2044 = vadd.f32 %v1942, %v1944
        %2045 = vadd.xlane.f32.xlu0 %v2044
        %v2046 = vpop.xlane.xlu0 %2045
        %v2047 = vadd.f32 %v1946, %v1948
        %2048 = vadd.xlane.f32.xlu0 %v2047
        %v2049 = vpop.xlane.xlu0 %2048
        %v2050 = vadd.f32 %v1950, %v1952
        %2051 = vadd.xlane.f32.xlu0 %v2050
        %v2052 = vpop.xlane.xlu0 %2051
        %v2053 = vadd.f32 %v1954, %v1956
        %2054 = vadd.xlane.f32.xlu0 %v2053
        %v2055 = vpop.xlane.xlu0 %2054
        %v2056 = vadd.f32 %v1958, %v1960
        %2057 = vadd.xlane.f32.xlu0 %v2056
        %v2058 = vpop.xlane.xlu0 %2057
        %v2059 = vadd.f32 %v1962, %v1964
        %2060 = vadd.xlane.f32.xlu0 %v2059
        %v2061 = vpop.xlane.xlu0 %2060
        %v2062 = vadd.f32 %v1966, %v1968
        %2063 = vadd.xlane.f32.xlu0 %v2062
        %v2064 = vpop.xlane.xlu0 %2063
        %v2065 = vrcp.pop %v1971
        %v2066 = vrcp.pop %v1974
        %v2067 = vrcp.pop %v1977
        %v2068 = vrcp.pop %v1980
        %v2069 = vrcp.pop %v1983
        %v2070 = vrcp.pop %v1986
        %v2071 = vrcp.pop %v1989
        %v2072 = vrcp.pop %v1992
        %v2073 = vrcp.pop %v1995
        %v2074 = vrcp.pop %v1998
        %v2075 = vrcp.pop %v2001
        %v2076 = vrcp.pop %v2004
        %v2077 = vrcp.pop %v2007
        %v2078 = vrcp.pop %v2010
        %v2079 = vrcp.pop %v2013
        %v2080 = vrcp.pop %v2016
        %v2081 = vrcp.pop %v2019
        %v2082 = vrcp.pop %v2022
        %v2083 = vrcp.pop %v2025
        %v2084 = vrcp.pop %v2028
        %v2085 = vrcp.pop %v2031
        %v2086 = vrcp.pop %v2034
        %v2087 = vrcp.pop %v2037
        %v2088 = vrcp.pop %v2040
        %v2089 = vrcp.pop %v2043
        %v2090 = vrcp.pop %v2046
        %v2091 = vrcp.pop %v2049
        %v2092 = vrcp.pop %v2052
        %v2093 = vrcp.pop %v2055
        %v2094 = vrcp.pop %v2058
        %v2095 = vrcp.pop %v2061
        %v2096 = vrcp.pop %v2064
        %v2097 = vmul.f32 %v1842, %v2065
        %v2098 = vmul.f32 %v1844, %v2065
        %v2099 = vmul.f32 %v1846, %v2066
        %v2100 = vmul.f32 %v1848, %v2066
        %v2101 = vmul.f32 %v1850, %v2067
        %v2102 = vmul.f32 %v1852, %v2067
        %v2103 = vmul.f32 %v1854, %v2068
        %v2104 = vmul.f32 %v1856, %v2068
        %v2105 = vmul.f32 %v1858, %v2069
        %v2106 = vmul.f32 %v1860, %v2069
        %v2107 = vmul.f32 %v1862, %v2070
        %v2108 = vmul.f32 %v1864, %v2070
        %v2109 = vmul.f32 %v1866, %v2071
        %v2110 = vmul.f32 %v1868, %v2071
        %v2111 = vmul.f32 %v1870, %v2072
        %v2112 = vmul.f32 %v1872, %v2072
        %v2113 = vmul.f32 %v1874, %v2073
        %v2114 = vmul.f32 %v1876, %v2073
        %v2115 = vmul.f32 %v1878, %v2074
        %v2116 = vmul.f32 %v1880, %v2074
        %v2117 = vmul.f32 %v1882, %v2075
        %v2118 = vmul.f32 %v1884, %v2075
        %v2119 = vmul.f32 %v1886, %v2076
        %v2120 = vmul.f32 %v1888, %v2076
        %v2121 = vmul.f32 %v1890, %v2077
        %v2122 = vmul.f32 %v1892, %v2077
        %v2123 = vmul.f32 %v1894, %v2078
        %v2124 = vmul.f32 %v1896, %v2078
        %v2125 = vmul.f32 %v1898, %v2079
        %v2126 = vmul.f32 %v1900, %v2079
        %v2127 = vmul.f32 %v1902, %v2080
        %v2128 = vmul.f32 %v1904, %v2080
        %v2129 = vmul.f32 %v1906, %v2081
        %v2130 = vmul.f32 %v1908, %v2081
        %v2131 = vmul.f32 %v1910, %v2082
        %v2132 = vmul.f32 %v1912, %v2082
        %v2133 = vmul.f32 %v1914, %v2083
        %v2134 = vmul.f32 %v1916, %v2083
        %v2135 = vmul.f32 %v1918, %v2084
        %v2136 = vmul.f32 %v1920, %v2084
        %v2137 = vmul.f32 %v1922, %v2085
        %v2138 = vmul.f32 %v1924, %v2085
        %v2139 = vmul.f32 %v1926, %v2086
        %v2140 = vmul.f32 %v1928, %v2086
        %v2141 = vmul.f32 %v1930, %v2087
        %v2142 = vmul.f32 %v1932, %v2087
        %v2143 = vmul.f32 %v1934, %v2088
        %v2144 = vmul.f32 %v1936, %v2088
        %v2145 = vmul.f32 %v1938, %v2089
        %v2146 = vmul.f32 %v1940, %v2089
        %v2147 = vmul.f32 %v1942, %v2090
        %v2148 = vmul.f32 %v1944, %v2090
        %v2149 = vmul.f32 %v1946, %v2091
        %v2150 = vmul.f32 %v1948, %v2091
        %v2151 = vmul.f32 %v1950, %v2092
        %v2152 = vmul.f32 %v1952, %v2092
        %v2153 = vmul.f32 %v1954, %v2093
        %v2154 = vmul.f32 %v1956, %v2093
        %v2155 = vmul.f32 %v1958, %v2094
        %v2156 = vmul.f32 %v1960, %v2094
        %v2157 = vmul.f32 %v1962, %v2095
        %v2158 = vmul.f32 %v1964, %v2095
        %v2159 = vmul.f32 %v1966, %v2096
        %v2160 = vmul.f32 %v1968, %v2096
        %v2161 = vpack.c.bf16 %v2099, %v2097
        %v2162 = vpack.c.bf16 %v2100, %v2098
        %v2163 = vpack.c.bf16 %v2103, %v2101
        %v2164 = vpack.c.bf16 %v2104, %v2102
        %v2165 = vpack.c.bf16 %v2107, %v2105
        %v2166 = vpack.c.bf16 %v2108, %v2106
        %v2167 = vpack.c.bf16 %v2111, %v2109
        %v2168 = vpack.c.bf16 %v2112, %v2110
        %v2169 = vpack.c.bf16 %v2115, %v2113
        %v2170 = vpack.c.bf16 %v2116, %v2114
        %v2171 = vpack.c.bf16 %v2119, %v2117
        %v2172 = vpack.c.bf16 %v2120, %v2118
        %v2173 = vpack.c.bf16 %v2123, %v2121
        %v2174 = vpack.c.bf16 %v2124, %v2122
        %v2175 = vpack.c.bf16 %v2127, %v2125
        %v2176 = vpack.c.bf16 %v2128, %v2126
        %v2177 = vpack.c.bf16 %v2131, %v2129
        %v2178 = vpack.c.bf16 %v2132, %v2130
        %v2179 = vpack.c.bf16 %v2135, %v2133
        %v2180 = vpack.c.bf16 %v2136, %v2134
        %v2181 = vpack.c.bf16 %v2139, %v2137
        %v2182 = vpack.c.bf16 %v2140, %v2138
        %v2183 = vpack.c.bf16 %v2143, %v2141
        %v2184 = vpack.c.bf16 %v2144, %v2142
        %v2185 = vpack.c.bf16 %v2147, %v2145
        %v2186 = vpack.c.bf16 %v2148, %v2146
        %v2187 = vpack.c.bf16 %v2151, %v2149
        %v2188 = vpack.c.bf16 %v2152, %v2150
        %v2189 = vpack.c.bf16 %v2155, %v2153
        %v2190 = vpack.c.bf16 %v2156, %v2154
        %v2191 = vpack.c.bf16 %v2159, %v2157
        %v2192 = vpack.c.bf16 %v2160, %v2158
        %2193 = vmatprep.subr.bf16.mxu0 %v2176
        %2194 = vmatpush1.bf16.xpose.msra.mxu0 %v2175
        %2195 = vmatprep.subr.bf16.mxu0 %v2174
        %2196 = vmatpush1.bf16.xpose.msra.mxu0 %v2173
        %2197 = vmatprep.subr.bf16.mxu0 %v2172
        %2198 = vmatpush1.bf16.xpose.msra.mxu0 %v2171
        %2199 = vmatprep.subr.bf16.mxu0 %v2170
        %2200 = vmatpush1.bf16.xpose.msra.mxu0 %v2169
        %2201 = vmatprep.subr.bf16.mxu0 %v2168
        %2202 = vmatpush1.bf16.xpose.msra.mxu0 %v2167
        %2203 = vmatprep.subr.bf16.mxu0 %v2166
        %2204 = vmatpush1.bf16.xpose.msra.mxu0 %v2165
        %2205 = vmatprep.subr.bf16.mxu0 %v2164
        %2206 = vmatpush1.bf16.xpose.msra.mxu0 %v2163
        %2207 = vmatprep.subr.bf16.mxu0 %v2162
        %2208 = vmatpush1.bf16.xpose.msra.mxu0 %v2161
        %2209 = vmatprep.subr.bf16.mxu0 %v2192
        %2210 = vmatpush2.bf16.xpose.msra.mxu0 %v2191
        %2211 = vmatprep.subr.bf16.mxu0 %v2190
        %2212 = vmatpush2.bf16.xpose.msra.mxu0 %v2189
        %2213 = vmatprep.subr.bf16.mxu0 %v2188
        %2214 = vmatpush2.bf16.xpose.msra.mxu0 %v2187
        %2215 = vmatprep.subr.bf16.mxu0 %v2186
        %2216 = vmatpush2.bf16.xpose.msra.mxu0 %v2185
        %2217 = vmatprep.subr.bf16.mxu0 %v2184
        %2218 = vmatpush2.bf16.xpose.msra.mxu0 %v2183
        %2219 = vmatprep.subr.bf16.mxu0 %v2182
        %2220 = vmatpush2.bf16.xpose.msra.mxu0 %v2181
        %2221 = vmatprep.subr.bf16.mxu0 %v2180
        %2222 = vmatpush2.bf16.xpose.msra.mxu0 %v2179
        %2223 = vmatprep.subr.bf16.mxu0 %v2178
        %2224 = vmatpush2.bf16.xpose.msra.mxu0 %v2177
        %2225 = vmatprep.mubr.bf16.mxu0 %v1341
        %2226 = vmatmul.mubr.bf16.gmra.mxu0 %v1340
        %v2227 = vpop.f32.mrf.mxu0
        %v2228 = vadd.f32 0.0, %v2227
        %v2229 = vpop.f32.mrf.mxu0
        %v2230 = vadd.f32 0.0, %v2229
        %v2231 = vpop.f32.mrf.mxu0
        %v2232 = vadd.f32 0.0, %v2231
        %v2233 = vpop.f32.mrf.mxu0
        %v2234 = vadd.f32 0.0, %v2233
        %2235 = vmatprep.mubr.bf16.mxu0 %v1343
        %2236 = vmatmul.mubr.bf16.gmra.mxu0 %v1342
        %v2237 = vpop.f32.mrf.mxu0
        %v2238 = vadd.f32 0.0, %v2237
        %v2239 = vpop.f32.mrf.mxu0
        %v2240 = vadd.f32 0.0, %v2239
        %v2241 = vpop.f32.mrf.mxu0
        %v2242 = vadd.f32 0.0, %v2241
        %v2243 = vpop.f32.mrf.mxu0
        %v2244 = vadd.f32 0.0, %v2243
        %2245 = vdwg.mxu0
        %v2278 = vunpack.c.l.b16 %v2161
        %v2279 = vunpack.c.l.b16 %v2162
        %v2280 = vunpack.c.h.b16 %v2161
        %v2281 = vunpack.c.h.b16 %v2162
        %v2282 = vunpack.c.l.b16 %v2163
        %v2283 = vunpack.c.l.b16 %v2164
        %v2284 = vunpack.c.h.b16 %v2163
        %v2285 = vunpack.c.h.b16 %v2164
        %v2286 = vunpack.c.l.b16 %v2165
        %v2287 = vunpack.c.l.b16 %v2166
        %v2288 = vunpack.c.h.b16 %v2165
        %v2289 = vunpack.c.h.b16 %v2166
        %v2290 = vunpack.c.l.b16 %v2167
        %v2291 = vunpack.c.l.b16 %v2168
        %v2292 = vunpack.c.h.b16 %v2167
        %v2293 = vunpack.c.h.b16 %v2168
        %v2294 = vunpack.c.l.b16 %v2169
        %v2295 = vunpack.c.l.b16 %v2170
        %v2296 = vunpack.c.h.b16 %v2169
        %v2297 = vunpack.c.h.b16 %v2170
        %v2298 = vunpack.c.l.b16 %v2171
        %v2299 = vunpack.c.l.b16 %v2172
        %v2300 = vunpack.c.h.b16 %v2171
        %v2301 = vunpack.c.h.b16 %v2172
        %v2302 = vunpack.c.l.b16 %v2173
        %v2303 = vunpack.c.l.b16 %v2174
        %v2304 = vunpack.c.h.b16 %v2173
        %v2305 = vunpack.c.h.b16 %v2174
        %v2306 = vunpack.c.l.b16 %v2175
        %v2307 = vunpack.c.l.b16 %v2176
        %v2308 = vunpack.c.h.b16 %v2175
        %v2309 = vunpack.c.h.b16 %v2176
        %v2310 = vunpack.c.l.b16 %v2177
        %v2311 = vunpack.c.l.b16 %v2178
        %v2312 = vunpack.c.h.b16 %v2177
        %v2313 = vunpack.c.h.b16 %v2178
        %v2314 = vunpack.c.l.b16 %v2179
        %v2315 = vunpack.c.l.b16 %v2180
        %v2316 = vunpack.c.h.b16 %v2179
        %v2317 = vunpack.c.h.b16 %v2180
        %v2318 = vunpack.c.l.b16 %v2181
        %v2319 = vunpack.c.l.b16 %v2182
        %v2320 = vunpack.c.h.b16 %v2181
        %v2321 = vunpack.c.h.b16 %v2182
        %v2322 = vunpack.c.l.b16 %v2183
        %v2323 = vunpack.c.l.b16 %v2184
        %v2324 = vunpack.c.h.b16 %v2183
        %v2325 = vunpack.c.h.b16 %v2184
        %v2326 = vunpack.c.l.b16 %v2185
        %v2327 = vunpack.c.l.b16 %v2186
        %v2328 = vunpack.c.h.b16 %v2185
        %v2329 = vunpack.c.h.b16 %v2186
        %v2330 = vunpack.c.l.b16 %v2187
        %v2331 = vunpack.c.l.b16 %v2188
        %v2332 = vunpack.c.h.b16 %v2187
        %v2333 = vunpack.c.h.b16 %v2188
        %v2334 = vunpack.c.l.b16 %v2189
        %v2335 = vunpack.c.l.b16 %v2190
        %v2336 = vunpack.c.h.b16 %v2189
        %v2337 = vunpack.c.h.b16 %v2190
        %v2338 = vunpack.c.l.b16 %v2191
        %v2339 = vunpack.c.l.b16 %v2192
        %v2340 = vunpack.c.h.b16 %v2191
        %v2341 = vunpack.c.h.b16 %v2192
        %v2342 = vpack.c.b16 %v2279, %v2278
        %v2343 = vpack.c.b16 %v2281, %v2280
        %v2344 = vpack.c.b16 %v2283, %v2282
        %v2345 = vpack.c.b16 %v2285, %v2284
        %v2346 = vpack.c.b16 %v2287, %v2286
        %v2347 = vpack.c.b16 %v2289, %v2288
        %v2348 = vpack.c.b16 %v2291, %v2290
        %v2349 = vpack.c.b16 %v2293, %v2292
        %v2350 = vpack.c.b16 %v2295, %v2294
        %v2351 = vpack.c.b16 %v2297, %v2296
        %v2352 = vpack.c.b16 %v2299, %v2298
        %v2353 = vpack.c.b16 %v2301, %v2300
        %v2354 = vpack.c.b16 %v2303, %v2302
        %v2355 = vpack.c.b16 %v2305, %v2304
        %v2356 = vpack.c.b16 %v2307, %v2306
        %v2357 = vpack.c.b16 %v2309, %v2308
        %v2358 = vpack.c.b16 %v2311, %v2310
        %v2359 = vpack.c.b16 %v2313, %v2312
        %v2360 = vpack.c.b16 %v2315, %v2314
        %v2361 = vpack.c.b16 %v2317, %v2316
        %v2362 = vpack.c.b16 %v2319, %v2318
        %v2363 = vpack.c.b16 %v2321, %v2320
        %v2364 = vpack.c.b16 %v2323, %v2322
        %v2365 = vpack.c.b16 %v2325, %v2324
        %v2366 = vpack.c.b16 %v2327, %v2326
        %v2367 = vpack.c.b16 %v2329, %v2328
        %v2368 = vpack.c.b16 %v2331, %v2330
        %v2369 = vpack.c.b16 %v2333, %v2332
        %v2370 = vpack.c.b16 %v2335, %v2334
        %v2371 = vpack.c.b16 %v2337, %v2336
        %v2372 = vpack.c.b16 %v2339, %v2338
        %v2373 = vpack.c.b16 %v2341, %v2340
        %2406 = vst [vmem:[%s720] sm:$0xff] %v2342
        %2407 = vst [vmem:[%s720 + $0x8] sm:$0xff] %v2343
        %2408 = vst [vmem:[%s720 + $0x10] sm:$0xff] %v2344
        %2409 = vst [vmem:[%s720 + $0x18] sm:$0xff] %v2345
        %2410 = vst [vmem:[%s720 + $0x20] sm:$0xff] %v2346
        %2411 = vst [vmem:[%s720 + $0x28] sm:$0xff] %v2347
        %2412 = vst [vmem:[%s720 + $0x30] sm:$0xff] %v2348
        %2413 = vst [vmem:[%s720 + $0x38] sm:$0xff] %v2349
        %2414 = vst [vmem:[%s720 + $0x40] sm:$0xff] %v2350
        %2415 = vst [vmem:[%s720 + $0x48] sm:$0xff] %v2351
        %2416 = vst [vmem:[%s720 + $0x50] sm:$0xff] %v2352
        %2417 = vst [vmem:[%s720 + $0x58] sm:$0xff] %v2353
        %2418 = vst [vmem:[%s720 + $0x60] sm:$0xff] %v2354
        %2419 = vst [vmem:[%s720 + $0x68] sm:$0xff] %v2355
        %2420 = vst [vmem:[%s720 + $0x70] sm:$0xff] %v2356
        %2421 = vst [vmem:[%s720 + $0x78] sm:$0xff] %v2357
        %2422 = vst [vmem:[%s720 + $0x80] sm:$0xff] %v2358
        %2423 = vst [vmem:[%s720 + $0x88] sm:$0xff] %v2359
        %2424 = vst [vmem:[%s720 + $0x90] sm:$0xff] %v2360
        %2425 = vst [vmem:[%s720 + $0x98] sm:$0xff] %v2361
        %2426 = vst [vmem:[%s720 + $0xa0] sm:$0xff] %v2362
        %2427 = vst [vmem:[%s720 + $0xa8] sm:$0xff] %v2363
        %2428 = vst [vmem:[%s720 + $0xb0] sm:$0xff] %v2364
        %2429 = vst [vmem:[%s720 + $0xb8] sm:$0xff] %v2365
        %2430 = vst [vmem:[%s720 + $0xc0] sm:$0xff] %v2366
        %2431 = vst [vmem:[%s720 + $0xc8] sm:$0xff] %v2367
        %2432 = vst [vmem:[%s720 + $0xd0] sm:$0xff] %v2368
        %2433 = vst [vmem:[%s720 + $0xd8] sm:$0xff] %v2369
        %2434 = vst [vmem:[%s720 + $0xe0] sm:$0xff] %v2370
        %2435 = vst [vmem:[%s720 + $0xe8] sm:$0xff] %v2371
        %2436 = vst [vmem:[%s720 + $0xf0] sm:$0xff] %v2372
        %2437 = vst [vmem:[%s720 + $0xf8] sm:$0xff] %v2373
        %v2438 = vld [vmem:[%s6] sm:$0xff]
        %v2439 = vld [vmem:[%s6 + $0x8] sm:$0xff]
        %v2440 = vld [vmem:[%s6 + $0x10] sm:$0xff]
        %v2441 = vld [vmem:[%s6 + $0x18] sm:$0xff]
        %v2442 = vpack.c.bf16 %v2439, %v2438
        %v2443 = vpack.c.bf16 %v2441, %v2440
        %v2444 = vpack.c.bf16 %v2232, %v2228
        %v2445 = vpack.c.bf16 %v2234, %v2230
        %v2446 = vpack.c.bf16 %v2242, %v2238
        %v2447 = vpack.c.bf16 %v2244, %v2240
        %v2448 = vld [vmem:[%s7] sm:$0xff]
        %v2449 = vld [vmem:[%s7 + $0x8] sm:$0xff]
        %v2450 = vld [vmem:[%s7 + $0x10] sm:$0xff]
        %v2451 = vld [vmem:[%s7 + $0x18] sm:$0xff]
        %2453 = vset.pattern.permute.xlu0 0
        %2454 = vperm.xlu0 %2453, %v2448
        %v2455 = vpop.permute.xlu0 %2454
        %2458 = vset.pattern.permute.xlu0 0
        %2459 = vperm.xlu0 %2458, %v2449
        %v2460 = vpop.permute.xlu0 %2459
        %2463 = vset.pattern.permute.xlu0 0
        %2464 = vperm.xlu0 %2463, %v2450
        %v2465 = vpop.permute.xlu0 %2464
        %2468 = vset.pattern.permute.xlu0 0
        %2469 = vperm.xlu0 %2468, %v2451
        %v2470 = vpop.permute.xlu0 %2469
        %v2473 = vsel %vm1272, %v2442, 0
        %v2476 = vsel %vm1272, %v2443, 0
        %2478 = vmatprep.subr.bf16.mxu0 0
        %2479 = vmatpush1.bf16.msra.mxu0 0
        %2480 = vmatprep.subr.bf16.mxu0 0
        %2481 = vmatpush1.bf16.msra.mxu0 0
        %2482 = vmatprep.subr.bf16.mxu0 0
        %2483 = vmatpush1.bf16.msra.mxu0 0
        %2484 = vmatprep.subr.bf16.mxu0 0
        %2485 = vmatpush1.bf16.msra.mxu0 0
        %2486 = vmatprep.subr.bf16.mxu0 0
        %2487 = vmatpush1.bf16.msra.mxu0 0
        %2488 = vmatprep.subr.bf16.mxu0 0
        %2489 = vmatpush1.bf16.msra.mxu0 0
        %2490 = vmatprep.subr.bf16.mxu0 %v2447
        %2491 = vmatpush1.bf16.msra.mxu0 %v2446
        %2492 = vmatprep.subr.bf16.mxu0 %v2445
        %2493 = vmatpush1.bf16.msra.mxu0 %v2444
        %2494 = vmatprep.subr.bf16.mxu0 0
        %2495 = vmatpush2.bf16.msra.mxu0 0
        %2496 = vmatprep.subr.bf16.mxu0 0
        %2497 = vmatpush2.bf16.msra.mxu0 0
        %2498 = vmatprep.subr.bf16.mxu0 0
        %2499 = vmatpush2.bf16.msra.mxu0 0
        %2500 = vmatprep.subr.bf16.mxu0 0
        %2501 = vmatpush2.bf16.msra.mxu0 0
        %2502 = vmatprep.subr.bf16.mxu0 0
        %2503 = vmatpush2.bf16.msra.mxu0 0
        %2504 = vmatprep.subr.bf16.mxu0 0
        %2505 = vmatpush2.bf16.msra.mxu0 0
        %2506 = vmatprep.subr.bf16.mxu0 0
        %2507 = vmatpush2.bf16.msra.mxu0 0
        %2508 = vmatprep.subr.bf16.mxu0 0
        %2509 = vmatpush2.bf16.msra.mxu0 0
        %2510 = vmatprep.mubr.bf16.mxu0 0
        %2511 = vmatmul.mubr.bf16.gmra.mxu0 %v2473
        %v2512 = vpop.f32.mrf.mxu0
        %v2513 = vadd.f32 %v2455, %v2512
        %v2514 = vpop.f32.mrf.mxu0
        %v2515 = vadd.f32 %v2455, %v2514
        %v2516 = vpop.f32.mrf.mxu0
        %v2517 = vadd.f32 %v2460, %v2516
        %v2518 = vpop.f32.mrf.mxu0
        %v2519 = vadd.f32 %v2460, %v2518
        %2520 = vmatprep.mubr.bf16.mxu0 0
        %2521 = vmatmul.mubr.bf16.gmra.mxu0 %v2476
        %v2522 = vpop.f32.mrf.mxu0
        %v2523 = vadd.f32 %v2465, %v2522
        %v2524 = vpop.f32.mrf.mxu0
        %v2525 = vadd.f32 %v2465, %v2524
        %v2526 = vpop.f32.mrf.mxu0
        %v2527 = vadd.f32 %v2470, %v2526
        %v2528 = vpop.f32.mrf.mxu0
        %v2529 = vadd.f32 %v2470, %v2528
        %2530 = vdwg.mxu0
        %2531 = vst [vmem:[%s764] sm:$0xff] %v2513
        %2532 = vst [vmem:[%s764 + $0x8] sm:$0xff] %v2515
        %2533 = vst [vmem:[%s764 + $0x10] sm:$0xff] %v2517
        %2534 = vst [vmem:[%s764 + $0x18] sm:$0xff] %v2519
        %2535 = vst [vmem:[%s764 + $0x20] sm:$0xff] %v2523
        %2536 = vst [vmem:[%s764 + $0x28] sm:$0xff] %v2525
        %2537 = vst [vmem:[%s764 + $0x30] sm:$0xff] %v2527
        %2538 = vst [vmem:[%s764 + $0x38] sm:$0xff] %v2529
        %v2539 = vpack.c.bf16 %v1318, %v1314
        %v2540 = vpack.c.bf16 %v1320, %v1316
        %v2541 = vpack.c.bf16 %v1328, %v1324
        %v2542 = vpack.c.bf16 %v1330, %v1326
        %v2543 = vpack.c.bf16 %v2517, %v2513
        %v2544 = vpack.c.bf16 %v2519, %v2515
        %v2545 = vpack.c.bf16 %v2527, %v2523
        %v2546 = vpack.c.bf16 %v2529, %v2525
        %2547 = vxpose.xlu0.c.b16.start [1/8] %v2539, 128
        %2548 = vxpose.xlu0.c.b16.cont [2/8] %v2541, 128
        %2549 = vxpose.xlu0.c.b16.cont [3/8] 0, 128
        %2550 = vxpose.xlu0.c.b16.cont [4/8] 0, 128
        %2551 = vxpose.xlu0.c.b16.cont [5/8] 0, 128
        %2552 = vxpose.xlu0.c.b16.cont [6/8] 0, 128
        %2553 = vxpose.xlu0.c.b16.cont [7/8] 0, 128
        %2554 = vxpose.xlu0.c.b16.end [8/8] 0, 128
        %v2555 = vpop.trf.xlu0
        %v2556 = vpop.trf.xlu0
        %v2557 = vpop.trf.xlu0
        %v2558 = vpop.trf.xlu0
        %v2559 = vpop.trf.xlu0
        %v2560 = vpop.trf.xlu0
        %v2561 = vpop.trf.xlu0
        %v2562 = vpop.trf.xlu0
        %2563 = vxpose.xlu0.c.b16.start [1/8] %v2540, 128
        %2564 = vxpose.xlu0.c.b16.cont [2/8] %v2542, 128
        %2565 = vxpose.xlu0.c.b16.cont [3/8] 0, 128
        %2566 = vxpose.xlu0.c.b16.cont [4/8] 0, 128
        %2567 = vxpose.xlu0.c.b16.cont [5/8] 0, 128
        %2568 = vxpose.xlu0.c.b16.cont [6/8] 0, 128
        %2569 = vxpose.xlu0.c.b16.cont [7/8] 0, 128
        %2570 = vxpose.xlu0.c.b16.end [8/8] 0, 128
        %v2571 = vpop.trf.xlu0
        %v2572 = vpop.trf.xlu0
        %v2573 = vpop.trf.xlu0
        %v2574 = vpop.trf.xlu0
        %v2575 = vpop.trf.xlu0
        %v2576 = vpop.trf.xlu0
        %v2577 = vpop.trf.xlu0
        %v2578 = vpop.trf.xlu0
        %v2580 = vsel %vm1272, %v2555, 0
        %v2583 = vsel %vm1272, %v2556, 0
        %v2586 = vsel %vm1272, %v2557, 0
        %v2589 = vsel %vm1272, %v2558, 0
        %v2592 = vsel %vm1272, %v2559, 0
        %v2595 = vsel %vm1272, %v2560, 0
        %v2598 = vsel %vm1272, %v2561, 0
        %v2601 = vsel %vm1272, %v2562, 0
        %v2604 = vsel %vm1272, %v2571, 0
        %v2607 = vsel %vm1272, %v2572, 0
        %v2610 = vsel %vm1272, %v2573, 0
        %v2613 = vsel %vm1272, %v2574, 0
        %v2616 = vsel %vm1272, %v2575, 0
        %v2619 = vsel %vm1272, %v2576, 0
        %v2622 = vsel %vm1272, %v2577, 0
        %v2625 = vsel %vm1272, %v2578, 0
        %2627 = vmatprep.subr.bf16.mxu0 0
        %2628 = vmatpush1.bf16.msra.mxu0 0
        %2629 = vmatprep.subr.bf16.mxu0 0
        %2630 = vmatpush1.bf16.msra.mxu0 0
        %2631 = vmatprep.subr.bf16.mxu0 0
        %2632 = vmatpush1.bf16.msra.mxu0 0
        %2633 = vmatprep.subr.bf16.mxu0 0
        %2634 = vmatpush1.bf16.msra.mxu0 0
        %2635 = vmatprep.subr.bf16.mxu0 0
        %2636 = vmatpush1.bf16.msra.mxu0 0
        %2637 = vmatprep.subr.bf16.mxu0 0
        %2638 = vmatpush1.bf16.msra.mxu0 0
        %2639 = vmatprep.subr.bf16.mxu0 %v2546
        %2640 = vmatpush1.bf16.msra.mxu0 %v2545
        %2641 = vmatprep.subr.bf16.mxu0 %v2544
        %2642 = vmatpush1.bf16.msra.mxu0 %v2543
        %2643 = vmatprep.subr.bf16.mxu0 0
        %2644 = vmatpush2.bf16.msra.mxu0 0
        %2645 = vmatprep.subr.bf16.mxu0 0
        %2646 = vmatpush2.bf16.msra.mxu0 0
        %2647 = vmatprep.subr.bf16.mxu0 0
        %2648 = vmatpush2.bf16.msra.mxu0 0
        %2649 = vmatprep.subr.bf16.mxu0 0
        %2650 = vmatpush2.bf16.msra.mxu0 0
        %2651 = vmatprep.subr.bf16.mxu0 0
        %2652 = vmatpush2.bf16.msra.mxu0 0
        %2653 = vmatprep.subr.bf16.mxu0 0
        %2654 = vmatpush2.bf16.msra.mxu0 0
        %2655 = vmatprep.subr.bf16.mxu0 0
        %2656 = vmatpush2.bf16.msra.mxu0 0
        %2657 = vmatprep.subr.bf16.mxu0 0
        %2658 = vmatpush2.bf16.msra.mxu0 0
        %2659 = vmatprep.mubr.bf16.mxu0 0
        %2660 = vmatmul.mubr.bf16.gmra.mxu0 %v2580
        %v2661 = vpop.f32.mrf.mxu0
        %v2662 = vadd.f32 0.0, %v2661
        %v2663 = vpop.f32.mrf.mxu0
        %v2664 = vadd.f32 0.0, %v2663
        %v2665 = vpop.f32.mrf.mxu0
        %v2666 = vadd.f32 0.0, %v2665
        %v2667 = vpop.f32.mrf.mxu0
        %v2668 = vadd.f32 0.0, %v2667
        %2669 = vmatprep.mubr.bf16.mxu0 0
        %2670 = vmatmul.mubr.bf16.gmra.mxu0 %v2583
        %v2671 = vpop.f32.mrf.mxu0
        %v2672 = vadd.f32 0.0, %v2671
        %v2673 = vpop.f32.mrf.mxu0
        %v2674 = vadd.f32 0.0, %v2673
        %v2675 = vpop.f32.mrf.mxu0
        %v2676 = vadd.f32 0.0, %v2675
        %v2677 = vpop.f32.mrf.mxu0
        %v2678 = vadd.f32 0.0, %v2677
        %2679 = vmatprep.mubr.bf16.mxu0 0
        %2680 = vmatmul.mubr.bf16.gmra.mxu0 %v2586
        %v2681 = vpop.f32.mrf.mxu0
        %v2682 = vadd.f32 0.0, %v2681
        %v2683 = vpop.f32.mrf.mxu0
        %v2684 = vadd.f32 0.0, %v2683
        %v2685 = vpop.f32.mrf.mxu0
        %v2686 = vadd.f32 0.0, %v2685
        %v2687 = vpop.f32.mrf.mxu0
        %v2688 = vadd.f32 0.0, %v2687
        %2689 = vmatprep.mubr.bf16.mxu0 0
        %2690 = vmatmul.mubr.bf16.gmra.mxu0 %v2589
        %v2691 = vpop.f32.mrf.mxu0
        %v2692 = vadd.f32 0.0, %v2691
        %v2693 = vpop.f32.mrf.mxu0
        %v2694 = vadd.f32 0.0, %v2693
        %v2695 = vpop.f32.mrf.mxu0
        %v2696 = vadd.f32 0.0, %v2695
        %v2697 = vpop.f32.mrf.mxu0
        %v2698 = vadd.f32 0.0, %v2697
        %2699 = vmatprep.mubr.bf16.mxu0 0
        %2700 = vmatmul.mubr.bf16.gmra.mxu0 %v2592
        %v2701 = vpop.f32.mrf.mxu0
        %v2702 = vadd.f32 0.0, %v2701
        %v2703 = vpop.f32.mrf.mxu0
        %v2704 = vadd.f32 0.0, %v2703
        %v2705 = vpop.f32.mrf.mxu0
        %v2706 = vadd.f32 0.0, %v2705
        %v2707 = vpop.f32.mrf.mxu0
        %v2708 = vadd.f32 0.0, %v2707
        %2709 = vmatprep.mubr.bf16.mxu0 0
        %2710 = vmatmul.mubr.bf16.gmra.mxu0 %v2595
        %v2711 = vpop.f32.mrf.mxu0
        %v2712 = vadd.f32 0.0, %v2711
        %v2713 = vpop.f32.mrf.mxu0
        %v2714 = vadd.f32 0.0, %v2713
        %v2715 = vpop.f32.mrf.mxu0
        %v2716 = vadd.f32 0.0, %v2715
        %v2717 = vpop.f32.mrf.mxu0
        %v2718 = vadd.f32 0.0, %v2717
        %2719 = vmatprep.mubr.bf16.mxu0 0
        %2720 = vmatmul.mubr.bf16.gmra.mxu0 %v2598
        %v2721 = vpop.f32.mrf.mxu0
        %v2722 = vadd.f32 0.0, %v2721
        %v2723 = vpop.f32.mrf.mxu0
        %v2724 = vadd.f32 0.0, %v2723
        %v2725 = vpop.f32.mrf.mxu0
        %v2726 = vadd.f32 0.0, %v2725
        %v2727 = vpop.f32.mrf.mxu0
        %v2728 = vadd.f32 0.0, %v2727
        %2729 = vmatprep.mubr.bf16.mxu0 0
        %2730 = vmatmul.mubr.bf16.gmra.mxu0 %v2601
        %v2731 = vpop.f32.mrf.mxu0
        %v2732 = vadd.f32 0.0, %v2731
        %v2733 = vpop.f32.mrf.mxu0
        %v2734 = vadd.f32 0.0, %v2733
        %v2735 = vpop.f32.mrf.mxu0
        %v2736 = vadd.f32 0.0, %v2735
        %v2737 = vpop.f32.mrf.mxu0
        %v2738 = vadd.f32 0.0, %v2737
        %2739 = vmatprep.mubr.bf16.mxu0 0
        %2740 = vmatmul.mubr.bf16.gmra.mxu0 %v2604
        %v2741 = vpop.f32.mrf.mxu0
        %v2742 = vadd.f32 0.0, %v2741
        %v2743 = vpop.f32.mrf.mxu0
        %v2744 = vadd.f32 0.0, %v2743
        %v2745 = vpop.f32.mrf.mxu0
        %v2746 = vadd.f32 0.0, %v2745
        %v2747 = vpop.f32.mrf.mxu0
        %v2748 = vadd.f32 0.0, %v2747
        %2749 = vmatprep.mubr.bf16.mxu0 0
        %2750 = vmatmul.mubr.bf16.gmra.mxu0 %v2607
        %v2751 = vpop.f32.mrf.mxu0
        %v2752 = vadd.f32 0.0, %v2751
        %v2753 = vpop.f32.mrf.mxu0
        %v2754 = vadd.f32 0.0, %v2753
        %v2755 = vpop.f32.mrf.mxu0
        %v2756 = vadd.f32 0.0, %v2755
        %v2757 = vpop.f32.mrf.mxu0
        %v2758 = vadd.f32 0.0, %v2757
        %2759 = vmatprep.mubr.bf16.mxu0 0
        %2760 = vmatmul.mubr.bf16.gmra.mxu0 %v2610
        %v2761 = vpop.f32.mrf.mxu0
        %v2762 = vadd.f32 0.0, %v2761
        %v2763 = vpop.f32.mrf.mxu0
        %v2764 = vadd.f32 0.0, %v2763
        %v2765 = vpop.f32.mrf.mxu0
        %v2766 = vadd.f32 0.0, %v2765
        %v2767 = vpop.f32.mrf.mxu0
        %v2768 = vadd.f32 0.0, %v2767
        %2769 = vmatprep.mubr.bf16.mxu0 0
        %2770 = vmatmul.mubr.bf16.gmra.mxu0 %v2613
        %v2771 = vpop.f32.mrf.mxu0
        %v2772 = vadd.f32 0.0, %v2771
        %v2773 = vpop.f32.mrf.mxu0
        %v2774 = vadd.f32 0.0, %v2773
        %v2775 = vpop.f32.mrf.mxu0
        %v2776 = vadd.f32 0.0, %v2775
        %v2777 = vpop.f32.mrf.mxu0
        %v2778 = vadd.f32 0.0, %v2777
        %2779 = vmatprep.mubr.bf16.mxu0 0
        %2780 = vmatmul.mubr.bf16.gmra.mxu0 %v2616
        %v2781 = vpop.f32.mrf.mxu0
        %v2782 = vadd.f32 0.0, %v2781
        %v2783 = vpop.f32.mrf.mxu0
        %v2784 = vadd.f32 0.0, %v2783
        %v2785 = vpop.f32.mrf.mxu0
        %v2786 = vadd.f32 0.0, %v2785
        %v2787 = vpop.f32.mrf.mxu0
        %v2788 = vadd.f32 0.0, %v2787
        %2789 = vmatprep.mubr.bf16.mxu0 0
        %2790 = vmatmul.mubr.bf16.gmra.mxu0 %v2619
        %v2791 = vpop.f32.mrf.mxu0
        %v2792 = vadd.f32 0.0, %v2791
        %v2793 = vpop.f32.mrf.mxu0
        %v2794 = vadd.f32 0.0, %v2793
        %v2795 = vpop.f32.mrf.mxu0
        %v2796 = vadd.f32 0.0, %v2795
        %v2797 = vpop.f32.mrf.mxu0
        %v2798 = vadd.f32 0.0, %v2797
        %2799 = vmatprep.mubr.bf16.mxu0 0
        %2800 = vmatmul.mubr.bf16.gmra.mxu0 %v2622
        %v2801 = vpop.f32.mrf.mxu0
        %v2802 = vadd.f32 0.0, %v2801
        %v2803 = vpop.f32.mrf.mxu0
        %v2804 = vadd.f32 0.0, %v2803
        %v2805 = vpop.f32.mrf.mxu0
        %v2806 = vadd.f32 0.0, %v2805
        %v2807 = vpop.f32.mrf.mxu0
        %v2808 = vadd.f32 0.0, %v2807
        %2809 = vmatprep.mubr.bf16.mxu0 0
        %2810 = vmatmul.mubr.bf16.gmra.mxu0 %v2625
        %v2811 = vpop.f32.mrf.mxu0
        %v2812 = vadd.f32 0.0, %v2811
        %v2813 = vpop.f32.mrf.mxu0
        %v2814 = vadd.f32 0.0, %v2813
        %v2815 = vpop.f32.mrf.mxu0
        %v2816 = vadd.f32 0.0, %v2815
        %v2817 = vpop.f32.mrf.mxu0
        %v2818 = vadd.f32 0.0, %v2817
        %2819 = vdwg.mxu0
        %v2820 = vmul.f32 %v2662, 0.17677669
        %v2821 = vmul.f32 %v2664, 0.17677669
        %v2822 = vmul.f32 %v2666, 0.17677669
        %v2823 = vmul.f32 %v2668, 0.17677669
        %v2824 = vmul.f32 %v2672, 0.17677669
        %v2825 = vmul.f32 %v2674, 0.17677669
        %v2826 = vmul.f32 %v2676, 0.17677669
        %v2827 = vmul.f32 %v2678, 0.17677669
        %v2828 = vmul.f32 %v2682, 0.17677669
        %v2829 = vmul.f32 %v2684, 0.17677669
        %v2830 = vmul.f32 %v2686, 0.17677669
        %v2831 = vmul.f32 %v2688, 0.17677669
        %v2832 = vmul.f32 %v2692, 0.17677669
        %v2833 = vmul.f32 %v2694, 0.17677669
        %v2834 = vmul.f32 %v2696, 0.17677669
        %v2835 = vmul.f32 %v2698, 0.17677669
        %v2836 = vmul.f32 %v2702, 0.17677669
        %v2837 = vmul.f32 %v2704, 0.17677669
        %v2838 = vmul.f32 %v2706, 0.17677669
        %v2839 = vmul.f32 %v2708, 0.17677669
        %v2840 = vmul.f32 %v2712, 0.17677669
        %v2841 = vmul.f32 %v2714, 0.17677669
        %v2842 = vmul.f32 %v2716, 0.17677669
        %v2843 = vmul.f32 %v2718, 0.17677669
        %v2844 = vmul.f32 %v2722, 0.17677669
        %v2845 = vmul.f32 %v2724, 0.17677669
        %v2846 = vmul.f32 %v2726, 0.17677669
        %v2847 = vmul.f32 %v2728, 0.17677669
        %v2848 = vmul.f32 %v2732, 0.17677669
        %v2849 = vmul.f32 %v2734, 0.17677669
        %v2850 = vmul.f32 %v2736, 0.17677669
        %v2851 = vmul.f32 %v2738, 0.17677669
        %v2852 = vmul.f32 %v2742, 0.17677669
        %v2853 = vmul.f32 %v2744, 0.17677669
        %v2854 = vmul.f32 %v2746, 0.17677669
        %v2855 = vmul.f32 %v2748, 0.17677669
        %v2856 = vmul.f32 %v2752, 0.17677669
        %v2857 = vmul.f32 %v2754, 0.17677669
        %v2858 = vmul.f32 %v2756, 0.17677669
        %v2859 = vmul.f32 %v2758, 0.17677669
        %v2860 = vmul.f32 %v2762, 0.17677669
        %v2861 = vmul.f32 %v2764, 0.17677669
        %v2862 = vmul.f32 %v2766, 0.17677669
        %v2863 = vmul.f32 %v2768, 0.17677669
        %v2864 = vmul.f32 %v2772, 0.17677669
        %v2865 = vmul.f32 %v2774, 0.17677669
        %v2866 = vmul.f32 %v2776, 0.17677669
        %v2867 = vmul.f32 %v2778, 0.17677669
        %v2868 = vmul.f32 %v2782, 0.17677669
        %v2869 = vmul.f32 %v2784, 0.17677669
        %v2870 = vmul.f32 %v2786, 0.17677669
        %v2871 = vmul.f32 %v2788, 0.17677669
        %v2872 = vmul.f32 %v2792, 0.17677669
        %v2873 = vmul.f32 %v2794, 0.17677669
        %v2874 = vmul.f32 %v2796, 0.17677669
        %v2875 = vmul.f32 %v2798, 0.17677669
        %v2876 = vmul.f32 %v2802, 0.17677669
        %v2877 = vmul.f32 %v2804, 0.17677669
        %v2878 = vmul.f32 %v2806, 0.17677669
        %v2879 = vmul.f32 %v2808, 0.17677669
        %v2880 = vmul.f32 %v2812, 0.17677669
        %v2881 = vmul.f32 %v2814, 0.17677669
        %v2882 = vmul.f32 %v2816, 0.17677669
        %v2883 = vmul.f32 %v2818, 0.17677669
        %v2884 = vmax.f32 %v2820, %v2821
        %2885 = vmax.xlane.f32.xlu0 %v2884
        %v2886 = vpop.xlane.xlu0 %2885
        %v2887 = vmax.f32 %v2822, %v2823
        %2888 = vmax.xlane.f32.xlu0 %v2887
        %v2889 = vpop.xlane.xlu0 %2888
        %v2890 = vmax.f32 %v2824, %v2825
        %2891 = vmax.xlane.f32.xlu0 %v2890
        %v2892 = vpop.xlane.xlu0 %2891
        %v2893 = vmax.f32 %v2826, %v2827
        %2894 = vmax.xlane.f32.xlu0 %v2893
        %v2895 = vpop.xlane.xlu0 %2894
        %v2896 = vmax.f32 %v2828, %v2829
        %2897 = vmax.xlane.f32.xlu0 %v2896
        %v2898 = vpop.xlane.xlu0 %2897
        %v2899 = vmax.f32 %v2830, %v2831
        %2900 = vmax.xlane.f32.xlu0 %v2899
        %v2901 = vpop.xlane.xlu0 %2900
        %v2902 = vmax.f32 %v2832, %v2833
        %2903 = vmax.xlane.f32.xlu0 %v2902
        %v2904 = vpop.xlane.xlu0 %2903
        %v2905 = vmax.f32 %v2834, %v2835
        %2906 = vmax.xlane.f32.xlu0 %v2905
        %v2907 = vpop.xlane.xlu0 %2906
        %v2908 = vmax.f32 %v2836, %v2837
        %2909 = vmax.xlane.f32.xlu0 %v2908
        %v2910 = vpop.xlane.xlu0 %2909
        %v2911 = vmax.f32 %v2838, %v2839
        %2912 = vmax.xlane.f32.xlu0 %v2911
        %v2913 = vpop.xlane.xlu0 %2912
        %v2914 = vmax.f32 %v2840, %v2841
        %2915 = vmax.xlane.f32.xlu0 %v2914
        %v2916 = vpop.xlane.xlu0 %2915
        %v2917 = vmax.f32 %v2842, %v2843
        %2918 = vmax.xlane.f32.xlu0 %v2917
        %v2919 = vpop.xlane.xlu0 %2918
        %v2920 = vmax.f32 %v2844, %v2845
        %2921 = vmax.xlane.f32.xlu0 %v2920
        %v2922 = vpop.xlane.xlu0 %2921
        %v2923 = vmax.f32 %v2846, %v2847
        %2924 = vmax.xlane.f32.xlu0 %v2923
        %v2925 = vpop.xlane.xlu0 %2924
        %v2926 = vmax.f32 %v2848, %v2849
        %2927 = vmax.xlane.f32.xlu0 %v2926
        %v2928 = vpop.xlane.xlu0 %2927
        %v2929 = vmax.f32 %v2850, %v2851
        %2930 = vmax.xlane.f32.xlu0 %v2929
        %v2931 = vpop.xlane.xlu0 %2930
        %v2932 = vmax.f32 %v2852, %v2853
        %2933 = vmax.xlane.f32.xlu0 %v2932
        %v2934 = vpop.xlane.xlu0 %2933
        %v2935 = vmax.f32 %v2854, %v2855
        %2936 = vmax.xlane.f32.xlu0 %v2935
        %v2937 = vpop.xlane.xlu0 %2936
        %v2938 = vmax.f32 %v2856, %v2857
        %2939 = vmax.xlane.f32.xlu0 %v2938
        %v2940 = vpop.xlane.xlu0 %2939
        %v2941 = vmax.f32 %v2858, %v2859
        %2942 = vmax.xlane.f32.xlu0 %v2941
        %v2943 = vpop.xlane.xlu0 %2942
        %v2944 = vmax.f32 %v2860, %v2861
        %2945 = vmax.xlane.f32.xlu0 %v2944
        %v2946 = vpop.xlane.xlu0 %2945
        %v2947 = vmax.f32 %v2862, %v2863
        %2948 = vmax.xlane.f32.xlu0 %v2947
        %v2949 = vpop.xlane.xlu0 %2948
        %v2950 = vmax.f32 %v2864, %v2865
        %2951 = vmax.xlane.f32.xlu0 %v2950
        %v2952 = vpop.xlane.xlu0 %2951
        %v2953 = vmax.f32 %v2866, %v2867
        %2954 = vmax.xlane.f32.xlu0 %v2953
        %v2955 = vpop.xlane.xlu0 %2954
        %v2956 = vmax.f32 %v2868, %v2869
        %2957 = vmax.xlane.f32.xlu0 %v2956
        %v2958 = vpop.xlane.xlu0 %2957
        %v2959 = vmax.f32 %v2870, %v2871
        %2960 = vmax.xlane.f32.xlu0 %v2959
        %v2961 = vpop.xlane.xlu0 %2960
        %v2962 = vmax.f32 %v2872, %v2873
        %2963 = vmax.xlane.f32.xlu0 %v2962
        %v2964 = vpop.xlane.xlu0 %2963
        %v2965 = vmax.f32 %v2874, %v2875
        %2966 = vmax.xlane.f32.xlu0 %v2965
        %v2967 = vpop.xlane.xlu0 %2966
        %v2968 = vmax.f32 %v2876, %v2877
        %2969 = vmax.xlane.f32.xlu0 %v2968
        %v2970 = vpop.xlane.xlu0 %2969
        %v2971 = vmax.f32 %v2878, %v2879
        %2972 = vmax.xlane.f32.xlu0 %v2971
        %v2973 = vpop.xlane.xlu0 %2972
        %v2974 = vmax.f32 %v2880, %v2881
        %2975 = vmax.xlane.f32.xlu0 %v2974
        %v2976 = vpop.xlane.xlu0 %2975
        %v2977 = vmax.f32 %v2882, %v2883
        %2978 = vmax.xlane.f32.xlu0 %v2977
        %v2979 = vpop.xlane.xlu0 %2978
        %v2980 = vsub.f32 %v2820, %v2886
        %v2981 = vsub.f32 %v2821, %v2886
        %v2982 = vsub.f32 %v2822, %v2889
        %v2983 = vsub.f32 %v2823, %v2889
        %v2984 = vsub.f32 %v2824, %v2892
        %v2985 = vsub.f32 %v2825, %v2892
        %v2986 = vsub.f32 %v2826, %v2895
        %v2987 = vsub.f32 %v2827, %v2895
        %v2988 = vsub.f32 %v2828, %v2898
        %v2989 = vsub.f32 %v2829, %v2898
        %v2990 = vsub.f32 %v2830, %v2901
        %v2991 = vsub.f32 %v2831, %v2901
        %v2992 = vsub.f32 %v2832, %v2904
        %v2993 = vsub.f32 %v2833, %v2904
        %v2994 = vsub.f32 %v2834, %v2907
        %v2995 = vsub.f32 %v2835, %v2907
        %v2996 = vsub.f32 %v2836, %v2910
        %v2997 = vsub.f32 %v2837, %v2910
        %v2998 = vsub.f32 %v2838, %v2913
        %v2999 = vsub.f32 %v2839, %v2913
        %v3000 = vsub.f32 %v2840, %v2916
        %v3001 = vsub.f32 %v2841, %v2916
        %v3002 = vsub.f32 %v2842, %v2919
        %v3003 = vsub.f32 %v2843, %v2919
        %v3004 = vsub.f32 %v2844, %v2922
        %v3005 = vsub.f32 %v2845, %v2922
        %v3006 = vsub.f32 %v2846, %v2925
        %v3007 = vsub.f32 %v2847, %v2925
        %v3008 = vsub.f32 %v2848, %v2928
        %v3009 = vsub.f32 %v2849, %v2928
        %v3010 = vsub.f32 %v2850, %v2931
        %v3011 = vsub.f32 %v2851, %v2931
        %v3012 = vsub.f32 %v2852, %v2934
        %v3013 = vsub.f32 %v2853, %v2934
        %v3014 = vsub.f32 %v2854, %v2937
        %v3015 = vsub.f32 %v2855, %v2937
        %v3016 = vsub.f32 %v2856, %v2940
        %v3017 = vsub.f32 %v2857, %v2940
        %v3018 = vsub.f32 %v2858, %v2943
        %v3019 = vsub.f32 %v2859, %v2943
        %v3020 = vsub.f32 %v2860, %v2946
        %v3021 = vsub.f32 %v2861, %v2946
        %v3022 = vsub.f32 %v2862, %v2949
        %v3023 = vsub.f32 %v2863, %v2949
        %v3024 = vsub.f32 %v2864, %v2952
        %v3025 = vsub.f32 %v2865, %v2952
        %v3026 = vsub.f32 %v2866, %v2955
        %v3027 = vsub.f32 %v2867, %v2955
        %v3028 = vsub.f32 %v2868, %v2958
        %v3029 = vsub.f32 %v2869, %v2958
        %v3030 = vsub.f32 %v2870, %v2961
        %v3031 = vsub.f32 %v2871, %v2961
        %v3032 = vsub.f32 %v2872, %v2964
        %v3033 = vsub.f32 %v2873, %v2964
        %v3034 = vsub.f32 %v2874, %v2967
        %v3035 = vsub.f32 %v2875, %v2967
        %v3036 = vsub.f32 %v2876, %v2970
        %v3037 = vsub.f32 %v2877, %v2970
        %v3038 = vsub.f32 %v2878, %v2973
        %v3039 = vsub.f32 %v2879, %v2973
        %v3040 = vsub.f32 %v2880, %v2976
        %v3041 = vsub.f32 %v2881, %v2976
        %v3042 = vsub.f32 %v2882, %v2979
        %v3043 = vsub.f32 %v2883, %v2979
        %v3044 = vmul.f32 %v2980, 1.442695
        %v3045 = vpow.pop %v3044
        %v3046 = vmul.f32 %v2981, 1.442695
        %v3047 = vpow.pop %v3046
        %v3048 = vmul.f32 %v2982, 1.442695
        %v3049 = vpow.pop %v3048
        %v3050 = vmul.f32 %v2983, 1.442695
        %v3051 = vpow.pop %v3050
        %v3052 = vmul.f32 %v2984, 1.442695
        %v3053 = vpow.pop %v3052
        %v3054 = vmul.f32 %v2985, 1.442695
        %v3055 = vpow.pop %v3054
        %v3056 = vmul.f32 %v2986, 1.442695
        %v3057 = vpow.pop %v3056
        %v3058 = vmul.f32 %v2987, 1.442695
        %v3059 = vpow.pop %v3058
        %v3060 = vmul.f32 %v2988, 1.442695
        %v3061 = vpow.pop %v3060
        %v3062 = vmul.f32 %v2989, 1.442695
        %v3063 = vpow.pop %v3062
        %v3064 = vmul.f32 %v2990, 1.442695
        %v3065 = vpow.pop %v3064
        %v3066 = vmul.f32 %v2991, 1.442695
        %v3067 = vpow.pop %v3066
        %v3068 = vmul.f32 %v2992, 1.442695
        %v3069 = vpow.pop %v3068
        %v3070 = vmul.f32 %v2993, 1.442695
        %v3071 = vpow.pop %v3070
        %v3072 = vmul.f32 %v2994, 1.442695
        %v3073 = vpow.pop %v3072
        %v3074 = vmul.f32 %v2995, 1.442695
        %v3075 = vpow.pop %v3074
        %v3076 = vmul.f32 %v2996, 1.442695
        %v3077 = vpow.pop %v3076
        %v3078 = vmul.f32 %v2997, 1.442695
        %v3079 = vpow.pop %v3078
        %v3080 = vmul.f32 %v2998, 1.442695
        %v3081 = vpow.pop %v3080
        %v3082 = vmul.f32 %v2999, 1.442695
        %v3083 = vpow.pop %v3082
        %v3084 = vmul.f32 %v3000, 1.442695
        %v3085 = vpow.pop %v3084
        %v3086 = vmul.f32 %v3001, 1.442695
        %v3087 = vpow.pop %v3086
        %v3088 = vmul.f32 %v3002, 1.442695
        %v3089 = vpow.pop %v3088
        %v3090 = vmul.f32 %v3003, 1.442695
        %v3091 = vpow.pop %v3090
        %v3092 = vmul.f32 %v3004, 1.442695
        %v3093 = vpow.pop %v3092
        %v3094 = vmul.f32 %v3005, 1.442695
        %v3095 = vpow.pop %v3094
        %v3096 = vmul.f32 %v3006, 1.442695
        %v3097 = vpow.pop %v3096
        %v3098 = vmul.f32 %v3007, 1.442695
        %v3099 = vpow.pop %v3098
        %v3100 = vmul.f32 %v3008, 1.442695
        %v3101 = vpow.pop %v3100
        %v3102 = vmul.f32 %v3009, 1.442695
        %v3103 = vpow.pop %v3102
        %v3104 = vmul.f32 %v3010, 1.442695
        %v3105 = vpow.pop %v3104
        %v3106 = vmul.f32 %v3011, 1.442695
        %v3107 = vpow.pop %v3106
        %v3108 = vmul.f32 %v3012, 1.442695
        %v3109 = vpow.pop %v3108
        %v3110 = vmul.f32 %v3013, 1.442695
        %v3111 = vpow.pop %v3110
        %v3112 = vmul.f32 %v3014, 1.442695
        %v3113 = vpow.pop %v3112
        %v3114 = vmul.f32 %v3015, 1.442695
        %v3115 = vpow.pop %v3114
        %v3116 = vmul.f32 %v3016, 1.442695
        %v3117 = vpow.pop %v3116
        %v3118 = vmul.f32 %v3017, 1.442695
        %v3119 = vpow.pop %v3118
        %v3120 = vmul.f32 %v3018, 1.442695
        %v3121 = vpow.pop %v3120
        %v3122 = vmul.f32 %v3019, 1.442695
        %v3123 = vpow.pop %v3122
        %v3124 = vmul.f32 %v3020, 1.442695
        %v3125 = vpow.pop %v3124
        %v3126 = vmul.f32 %v3021, 1.442695
        %v3127 = vpow.pop %v3126
        %v3128 = vmul.f32 %v3022, 1.442695
        %v3129 = vpow.pop %v3128
        %v3130 = vmul.f32 %v3023, 1.442695
        %v3131 = vpow.pop %v3130
        %v3132 = vmul.f32 %v3024, 1.442695
        %v3133 = vpow.pop %v3132
        %v3134 = vmul.f32 %v3025, 1.442695
        %v3135 = vpow.pop %v3134
        %v3136 = vmul.f32 %v3026, 1.442695
        %v3137 = vpow.pop %v3136
        %v3138 = vmul.f32 %v3027, 1.442695
        %v3139 = vpow.pop %v3138
        %v3140 = vmul.f32 %v3028, 1.442695
        %v3141 = vpow.pop %v3140
        %v3142 = vmul.f32 %v3029, 1.442695
        %v3143 = vpow.pop %v3142
        %v3144 = vmul.f32 %v3030, 1.442695
        %v3145 = vpow.pop %v3144
        %v3146 = vmul.f32 %v3031, 1.442695
        %v3147 = vpow.pop %v3146
        %v3148 = vmul.f32 %v3032, 1.442695
        %v3149 = vpow.pop %v3148
        %v3150 = vmul.f32 %v3033, 1.442695
        %v3151 = vpow.pop %v3150
        %v3152 = vmul.f32 %v3034, 1.442695
        %v3153 = vpow.pop %v3152
        %v3154 = vmul.f32 %v3035, 1.442695
        %v3155 = vpow.pop %v3154
        %v3156 = vmul.f32 %v3036, 1.442695
        %v3157 = vpow.pop %v3156
        %v3158 = vmul.f32 %v3037, 1.442695
        %v3159 = vpow.pop %v3158
        %v3160 = vmul.f32 %v3038, 1.442695
        %v3161 = vpow.pop %v3160
        %v3162 = vmul.f32 %v3039, 1.442695
        %v3163 = vpow.pop %v3162
        %v3164 = vmul.f32 %v3040, 1.442695
        %v3165 = vpow.pop %v3164
        %v3166 = vmul.f32 %v3041, 1.442695
        %v3167 = vpow.pop %v3166
        %v3168 = vmul.f32 %v3042, 1.442695
        %v3169 = vpow.pop %v3168
        %v3170 = vmul.f32 %v3043, 1.442695
        %v3171 = vpow.pop %v3170
        %v3172 = vadd.f32 %v3045, %v3047
        %3173 = vadd.xlane.f32.xlu0 %v3172
        %v3174 = vpop.xlane.xlu0 %3173
        %v3175 = vadd.f32 %v3049, %v3051
        %3176 = vadd.xlane.f32.xlu0 %v3175
        %v3177 = vpop.xlane.xlu0 %3176
        %v3178 = vadd.f32 %v3053, %v3055
        %3179 = vadd.xlane.f32.xlu0 %v3178
        %v3180 = vpop.xlane.xlu0 %3179
        %v3181 = vadd.f32 %v3057, %v3059
        %3182 = vadd.xlane.f32.xlu0 %v3181
        %v3183 = vpop.xlane.xlu0 %3182
        %v3184 = vadd.f32 %v3061, %v3063
        %3185 = vadd.xlane.f32.xlu0 %v3184
        %v3186 = vpop.xlane.xlu0 %3185
        %v3187 = vadd.f32 %v3065, %v3067
        %3188 = vadd.xlane.f32.xlu0 %v3187
        %v3189 = vpop.xlane.xlu0 %3188
        %v3190 = vadd.f32 %v3069, %v3071
        %3191 = vadd.xlane.f32.xlu0 %v3190
        %v3192 = vpop.xlane.xlu0 %3191
        %v3193 = vadd.f32 %v3073, %v3075
        %3194 = vadd.xlane.f32.xlu0 %v3193
        %v3195 = vpop.xlane.xlu0 %3194
        %v3196 = vadd.f32 %v3077, %v3079
        %3197 = vadd.xlane.f32.xlu0 %v3196
        %v3198 = vpop.xlane.xlu0 %3197
        %v3199 = vadd.f32 %v3081, %v3083
        %3200 = vadd.xlane.f32.xlu0 %v3199
        %v3201 = vpop.xlane.xlu0 %3200
        %v3202 = vadd.f32 %v3085, %v3087
        %3203 = vadd.xlane.f32.xlu0 %v3202
        %v3204 = vpop.xlane.xlu0 %3203
        %v3205 = vadd.f32 %v3089, %v3091
        %3206 = vadd.xlane.f32.xlu0 %v3205
        %v3207 = vpop.xlane.xlu0 %3206
        %v3208 = vadd.f32 %v3093, %v3095
        %3209 = vadd.xlane.f32.xlu0 %v3208
        %v3210 = vpop.xlane.xlu0 %3209
        %v3211 = vadd.f32 %v3097, %v3099
        %3212 = vadd.xlane.f32.xlu0 %v3211
        %v3213 = vpop.xlane.xlu0 %3212
        %v3214 = vadd.f32 %v3101, %v3103
        %3215 = vadd.xlane.f32.xlu0 %v3214
        %v3216 = vpop.xlane.xlu0 %3215
        %v3217 = vadd.f32 %v3105, %v3107
        %3218 = vadd.xlane.f32.xlu0 %v3217
        %v3219 = vpop.xlane.xlu0 %3218
        %v3220 = vadd.f32 %v3109, %v3111
        %3221 = vadd.xlane.f32.xlu0 %v3220
        %v3222 = vpop.xlane.xlu0 %3221
        %v3223 = vadd.f32 %v3113, %v3115
        %3224 = vadd.xlane.f32.xlu0 %v3223
        %v3225 = vpop.xlane.xlu0 %3224
        %v3226 = vadd.f32 %v3117, %v3119
        %3227 = vadd.xlane.f32.xlu0 %v3226
        %v3228 = vpop.xlane.xlu0 %3227
        %v3229 = vadd.f32 %v3121, %v3123
        %3230 = vadd.xlane.f32.xlu0 %v3229
        %v3231 = vpop.xlane.xlu0 %3230
        %v3232 = vadd.f32 %v3125, %v3127
        %3233 = vadd.xlane.f32.xlu0 %v3232
        %v3234 = vpop.xlane.xlu0 %3233
        %v3235 = vadd.f32 %v3129, %v3131
        %3236 = vadd.xlane.f32.xlu0 %v3235
        %v3237 = vpop.xlane.xlu0 %3236
        %v3238 = vadd.f32 %v3133, %v3135
        %3239 = vadd.xlane.f32.xlu0 %v3238
        %v3240 = vpop.xlane.xlu0 %3239
        %v3241 = vadd.f32 %v3137, %v3139
        %3242 = vadd.xlane.f32.xlu0 %v3241
        %v3243 = vpop.xlane.xlu0 %3242
        %v3244 = vadd.f32 %v3141, %v3143
        %3245 = vadd.xlane.f32.xlu0 %v3244
        %v3246 = vpop.xlane.xlu0 %3245
        %v3247 = vadd.f32 %v3145, %v3147
        %3248 = vadd.xlane.f32.xlu0 %v3247
        %v3249 = vpop.xlane.xlu0 %3248
        %v3250 = vadd.f32 %v3149, %v3151
        %3251 = vadd.xlane.f32.xlu0 %v3250
        %v3252 = vpop.xlane.xlu0 %3251
        %v3253 = vadd.f32 %v3153, %v3155
        %3254 = vadd.xlane.f32.xlu0 %v3253
        %v3255 = vpop.xlane.xlu0 %3254
        %v3256 = vadd.f32 %v3157, %v3159
        %3257 = vadd.xlane.f32.xlu0 %v3256
        %v3258 = vpop.xlane.xlu0 %3257
        %v3259 = vadd.f32 %v3161, %v3163
        %3260 = vadd.xlane.f32.xlu0 %v3259
        %v3261 = vpop.xlane.xlu0 %3260
        %v3262 = vadd.f32 %v3165, %v3167
        %3263 = vadd.xlane.f32.xlu0 %v3262
        %v3264 = vpop.xlane.xlu0 %3263
        %v3265 = vadd.f32 %v3169, %v3171
        %3266 = vadd.xlane.f32.xlu0 %v3265
        %v3267 = vpop.xlane.xlu0 %3266
        %v3268 = vrcp.pop %v3174
        %v3269 = vrcp.pop %v3177
        %v3270 = vrcp.pop %v3180
        %v3271 = vrcp.pop %v3183
        %v3272 = vrcp.pop %v3186
        %v3273 = vrcp.pop %v3189
        %v3274 = vrcp.pop %v3192
        %v3275 = vrcp.pop %v3195
        %v3276 = vrcp.pop %v3198
        %v3277 = vrcp.pop %v3201
        %v3278 = vrcp.pop %v3204
        %v3279 = vrcp.pop %v3207
        %v3280 = vrcp.pop %v3210
        %v3281 = vrcp.pop %v3213
        %v3282 = vrcp.pop %v3216
        %v3283 = vrcp.pop %v3219
        %v3284 = vrcp.pop %v3222
        %v3285 = vrcp.pop %v3225
        %v3286 = vrcp.pop %v3228
        %v3287 = vrcp.pop %v3231
        %v3288 = vrcp.pop %v3234
        %v3289 = vrcp.pop %v3237
        %v3290 = vrcp.pop %v3240
        %v3291 = vrcp.pop %v3243
        %v3292 = vrcp.pop %v3246
        %v3293 = vrcp.pop %v3249
        %v3294 = vrcp.pop %v3252
        %v3295 = vrcp.pop %v3255
        %v3296 = vrcp.pop %v3258
        %v3297 = vrcp.pop %v3261
        %v3298 = vrcp.pop %v3264
        %v3299 = vrcp.pop %v3267
        %v3300 = vmul.f32 %v3045, %v3268
        %v3301 = vmul.f32 %v3047, %v3268
        %v3302 = vmul.f32 %v3049, %v3269
        %v3303 = vmul.f32 %v3051, %v3269
        %v3304 = vmul.f32 %v3053, %v3270
        %v3305 = vmul.f32 %v3055, %v3270
        %v3306 = vmul.f32 %v3057, %v3271
        %v3307 = vmul.f32 %v3059, %v3271
        %v3308 = vmul.f32 %v3061, %v3272
        %v3309 = vmul.f32 %v3063, %v3272
        %v3310 = vmul.f32 %v3065, %v3273
        %v3311 = vmul.f32 %v3067, %v3273
        %v3312 = vmul.f32 %v3069, %v3274
        %v3313 = vmul.f32 %v3071, %v3274
        %v3314 = vmul.f32 %v3073, %v3275
        %v3315 = vmul.f32 %v3075, %v3275
        %v3316 = vmul.f32 %v3077, %v3276
        %v3317 = vmul.f32 %v3079, %v3276
        %v3318 = vmul.f32 %v3081, %v3277
        %v3319 = vmul.f32 %v3083, %v3277
        %v3320 = vmul.f32 %v3085, %v3278
        %v3321 = vmul.f32 %v3087, %v3278
        %v3322 = vmul.f32 %v3089, %v3279
        %v3323 = vmul.f32 %v3091, %v3279
        %v3324 = vmul.f32 %v3093, %v3280
        %v3325 = vmul.f32 %v3095, %v3280
        %v3326 = vmul.f32 %v3097, %v3281
        %v3327 = vmul.f32 %v3099, %v3281
        %v3328 = vmul.f32 %v3101, %v3282
        %v3329 = vmul.f32 %v3103, %v3282
        %v3330 = vmul.f32 %v3105, %v3283
        %v3331 = vmul.f32 %v3107, %v3283
        %v3332 = vmul.f32 %v3109, %v3284
        %v3333 = vmul.f32 %v3111, %v3284
        %v3334 = vmul.f32 %v3113, %v3285
        %v3335 = vmul.f32 %v3115, %v3285
        %v3336 = vmul.f32 %v3117, %v3286
        %v3337 = vmul.f32 %v3119, %v3286
        %v3338 = vmul.f32 %v3121, %v3287
        %v3339 = vmul.f32 %v3123, %v3287
        %v3340 = vmul.f32 %v3125, %v3288
        %v3341 = vmul.f32 %v3127, %v3288
        %v3342 = vmul.f32 %v3129, %v3289
        %v3343 = vmul.f32 %v3131, %v3289
        %v3344 = vmul.f32 %v3133, %v3290
        %v3345 = vmul.f32 %v3135, %v3290
        %v3346 = vmul.f32 %v3137, %v3291
        %v3347 = vmul.f32 %v3139, %v3291
        %v3348 = vmul.f32 %v3141, %v3292
        %v3349 = vmul.f32 %v3143, %v3292
        %v3350 = vmul.f32 %v3145, %v3293
        %v3351 = vmul.f32 %v3147, %v3293
        %v3352 = vmul.f32 %v3149, %v3294
        %v3353 = vmul.f32 %v3151, %v3294
        %v3354 = vmul.f32 %v3153, %v3295
        %v3355 = vmul.f32 %v3155, %v3295
        %v3356 = vmul.f32 %v3157, %v3296
        %v3357 = vmul.f32 %v3159, %v3296
        %v3358 = vmul.f32 %v3161, %v3297
        %v3359 = vmul.f32 %v3163, %v3297
        %v3360 = vmul.f32 %v3165, %v3298
        %v3361 = vmul.f32 %v3167, %v3298
        %v3362 = vmul.f32 %v3169, %v3299
        %v3363 = vmul.f32 %v3171, %v3299
        %v3364 = vpack.c.bf16 %v3302, %v3300
        %v3365 = vpack.c.bf16 %v3303, %v3301
        %v3366 = vpack.c.bf16 %v3306, %v3304
        %v3367 = vpack.c.bf16 %v3307, %v3305
        %v3368 = vpack.c.bf16 %v3310, %v3308
        %v3369 = vpack.c.bf16 %v3311, %v3309
        %v3370 = vpack.c.bf16 %v3314, %v3312
        %v3371 = vpack.c.bf16 %v3315, %v3313
        %v3372 = vpack.c.bf16 %v3318, %v3316
        %v3373 = vpack.c.bf16 %v3319, %v3317
        %v3374 = vpack.c.bf16 %v3322, %v3320
        %v3375 = vpack.c.bf16 %v3323, %v3321
        %v3376 = vpack.c.bf16 %v3326, %v3324
        %v3377 = vpack.c.bf16 %v3327, %v3325
        %v3378 = vpack.c.bf16 %v3330, %v3328
        %v3379 = vpack.c.bf16 %v3331, %v3329
        %v3380 = vpack.c.bf16 %v3334, %v3332
        %v3381 = vpack.c.bf16 %v3335, %v3333
        %v3382 = vpack.c.bf16 %v3338, %v3336
        %v3383 = vpack.c.bf16 %v3339, %v3337
        %v3384 = vpack.c.bf16 %v3342, %v3340
        %v3385 = vpack.c.bf16 %v3343, %v3341
        %v3386 = vpack.c.bf16 %v3346, %v3344
        %v3387 = vpack.c.bf16 %v3347, %v3345
        %v3388 = vpack.c.bf16 %v3350, %v3348
        %v3389 = vpack.c.bf16 %v3351, %v3349
        %v3390 = vpack.c.bf16 %v3354, %v3352
        %v3391 = vpack.c.bf16 %v3355, %v3353
        %v3392 = vpack.c.bf16 %v3358, %v3356
        %v3393 = vpack.c.bf16 %v3359, %v3357
        %v3394 = vpack.c.bf16 %v3362, %v3360
        %v3395 = vpack.c.bf16 %v3363, %v3361
        %3396 = vmatprep.subr.bf16.mxu0 %v3379
        %3397 = vmatpush1.bf16.xpose.msra.mxu0 %v3378
        %3398 = vmatprep.subr.bf16.mxu0 %v3377
        %3399 = vmatpush1.bf16.xpose.msra.mxu0 %v3376
        %3400 = vmatprep.subr.bf16.mxu0 %v3375
        %3401 = vmatpush1.bf16.xpose.msra.mxu0 %v3374
        %3402 = vmatprep.subr.bf16.mxu0 %v3373
        %3403 = vmatpush1.bf16.xpose.msra.mxu0 %v3372
        %3404 = vmatprep.subr.bf16.mxu0 %v3371
        %3405 = vmatpush1.bf16.xpose.msra.mxu0 %v3370
        %3406 = vmatprep.subr.bf16.mxu0 %v3369
        %3407 = vmatpush1.bf16.xpose.msra.mxu0 %v3368
        %3408 = vmatprep.subr.bf16.mxu0 %v3367
        %3409 = vmatpush1.bf16.xpose.msra.mxu0 %v3366
        %3410 = vmatprep.subr.bf16.mxu0 %v3365
        %3411 = vmatpush1.bf16.xpose.msra.mxu0 %v3364
        %3412 = vmatprep.subr.bf16.mxu0 %v3395
        %3413 = vmatpush2.bf16.xpose.msra.mxu0 %v3394
        %3414 = vmatprep.subr.bf16.mxu0 %v3393
        %3415 = vmatpush2.bf16.xpose.msra.mxu0 %v3392
        %3416 = vmatprep.subr.bf16.mxu0 %v3391
        %3417 = vmatpush2.bf16.xpose.msra.mxu0 %v3390
        %3418 = vmatprep.subr.bf16.mxu0 %v3389
        %3419 = vmatpush2.bf16.xpose.msra.mxu0 %v3388
        %3420 = vmatprep.subr.bf16.mxu0 %v3387
        %3421 = vmatpush2.bf16.xpose.msra.mxu0 %v3386
        %3422 = vmatprep.subr.bf16.mxu0 %v3385
        %3423 = vmatpush2.bf16.xpose.msra.mxu0 %v3384
        %3424 = vmatprep.subr.bf16.mxu0 %v3383
        %3425 = vmatpush2.bf16.xpose.msra.mxu0 %v3382
        %3426 = vmatprep.subr.bf16.mxu0 %v3381
        %3427 = vmatpush2.bf16.xpose.msra.mxu0 %v3380
        %3428 = vmatprep.mubr.bf16.mxu0 %v2544
        %3429 = vmatmul.mubr.bf16.gmra.mxu0 %v2543
        %v3430 = vpop.f32.mrf.mxu0
        %v3431 = vadd.f32 0.0, %v3430
        %v3432 = vpop.f32.mrf.mxu0
        %v3433 = vadd.f32 0.0, %v3432
        %v3434 = vpop.f32.mrf.mxu0
        %v3435 = vadd.f32 0.0, %v3434
        %v3436 = vpop.f32.mrf.mxu0
        %v3437 = vadd.f32 0.0, %v3436
        %3438 = vmatprep.mubr.bf16.mxu0 %v2546
        %3439 = vmatmul.mubr.bf16.gmra.mxu0 %v2545
        %v3440 = vpop.f32.mrf.mxu0
        %v3441 = vadd.f32 0.0, %v3440
        %v3442 = vpop.f32.mrf.mxu0
        %v3443 = vadd.f32 0.0, %v3442
        %v3444 = vpop.f32.mrf.mxu0
        %v3445 = vadd.f32 0.0, %v3444
        %v3446 = vpop.f32.mrf.mxu0
        %v3447 = vadd.f32 0.0, %v3446
        %3448 = vdwg.mxu0
        %v3481 = vunpack.c.l.b16 %v3364
        %v3482 = vunpack.c.l.b16 %v3365
        %v3483 = vunpack.c.h.b16 %v3364
        %v3484 = vunpack.c.h.b16 %v3365
        %v3485 = vunpack.c.l.b16 %v3366
        %v3486 = vunpack.c.l.b16 %v3367
        %v3487 = vunpack.c.h.b16 %v3366
        %v3488 = vunpack.c.h.b16 %v3367
        %v3489 = vunpack.c.l.b16 %v3368
        %v3490 = vunpack.c.l.b16 %v3369
        %v3491 = vunpack.c.h.b16 %v3368
        %v3492 = vunpack.c.h.b16 %v3369
        %v3493 = vunpack.c.l.b16 %v3370
        %v3494 = vunpack.c.l.b16 %v3371
        %v3495 = vunpack.c.h.b16 %v3370
        %v3496 = vunpack.c.h.b16 %v3371
        %v3497 = vunpack.c.l.b16 %v3372
        %v3498 = vunpack.c.l.b16 %v3373
        %v3499 = vunpack.c.h.b16 %v3372
        %v3500 = vunpack.c.h.b16 %v3373
        %v3501 = vunpack.c.l.b16 %v3374
        %v3502 = vunpack.c.l.b16 %v3375
        %v3503 = vunpack.c.h.b16 %v3374
        %v3504 = vunpack.c.h.b16 %v3375
        %v3505 = vunpack.c.l.b16 %v3376
        %v3506 = vunpack.c.l.b16 %v3377
        %v3507 = vunpack.c.h.b16 %v3376
        %v3508 = vunpack.c.h.b16 %v3377
        %v3509 = vunpack.c.l.b16 %v3378
        %v3510 = vunpack.c.l.b16 %v3379
        %v3511 = vunpack.c.h.b16 %v3378
        %v3512 = vunpack.c.h.b16 %v3379
        %v3513 = vunpack.c.l.b16 %v3380
        %v3514 = vunpack.c.l.b16 %v3381
        %v3515 = vunpack.c.h.b16 %v3380
        %v3516 = vunpack.c.h.b16 %v3381
        %v3517 = vunpack.c.l.b16 %v3382
        %v3518 = vunpack.c.l.b16 %v3383
        %v3519 = vunpack.c.h.b16 %v3382
        %v3520 = vunpack.c.h.b16 %v3383
        %v3521 = vunpack.c.l.b16 %v3384
        %v3522 = vunpack.c.l.b16 %v3385
        %v3523 = vunpack.c.h.b16 %v3384
        %v3524 = vunpack.c.h.b16 %v3385
        %v3525 = vunpack.c.l.b16 %v3386
        %v3526 = vunpack.c.l.b16 %v3387
        %v3527 = vunpack.c.h.b16 %v3386
        %v3528 = vunpack.c.h.b16 %v3387
        %v3529 = vunpack.c.l.b16 %v3388
        %v3530 = vunpack.c.l.b16 %v3389
        %v3531 = vunpack.c.h.b16 %v3388
        %v3532 = vunpack.c.h.b16 %v3389
        %v3533 = vunpack.c.l.b16 %v3390
        %v3534 = vunpack.c.l.b16 %v3391
        %v3535 = vunpack.c.h.b16 %v3390
        %v3536 = vunpack.c.h.b16 %v3391
        %v3537 = vunpack.c.l.b16 %v3392
        %v3538 = vunpack.c.l.b16 %v3393
        %v3539 = vunpack.c.h.b16 %v3392
        %v3540 = vunpack.c.h.b16 %v3393
        %v3541 = vunpack.c.l.b16 %v3394
        %v3542 = vunpack.c.l.b16 %v3395
        %v3543 = vunpack.c.h.b16 %v3394
        %v3544 = vunpack.c.h.b16 %v3395
        %v3545 = vpack.c.b16 %v3482, %v3481
        %v3546 = vpack.c.b16 %v3484, %v3483
        %v3547 = vpack.c.b16 %v3486, %v3485
        %v3548 = vpack.c.b16 %v3488, %v3487
        %v3549 = vpack.c.b16 %v3490, %v3489
        %v3550 = vpack.c.b16 %v3492, %v3491
        %v3551 = vpack.c.b16 %v3494, %v3493
        %v3552 = vpack.c.b16 %v3496, %v3495
        %v3553 = vpack.c.b16 %v3498, %v3497
        %v3554 = vpack.c.b16 %v3500, %v3499
        %v3555 = vpack.c.b16 %v3502, %v3501
        %v3556 = vpack.c.b16 %v3504, %v3503
        %v3557 = vpack.c.b16 %v3506, %v3505
        %v3558 = vpack.c.b16 %v3508, %v3507
        %v3559 = vpack.c.b16 %v3510, %v3509
        %v3560 = vpack.c.b16 %v3512, %v3511
        %v3561 = vpack.c.b16 %v3514, %v3513
        %v3562 = vpack.c.b16 %v3516, %v3515
        %v3563 = vpack.c.b16 %v3518, %v3517
        %v3564 = vpack.c.b16 %v3520, %v3519
        %v3565 = vpack.c.b16 %v3522, %v3521
        %v3566 = vpack.c.b16 %v3524, %v3523
        %v3567 = vpack.c.b16 %v3526, %v3525
        %v3568 = vpack.c.b16 %v3528, %v3527
        %v3569 = vpack.c.b16 %v3530, %v3529
        %v3570 = vpack.c.b16 %v3532, %v3531
        %v3571 = vpack.c.b16 %v3534, %v3533
        %v3572 = vpack.c.b16 %v3536, %v3535
        %v3573 = vpack.c.b16 %v3538, %v3537
        %v3574 = vpack.c.b16 %v3540, %v3539
        %v3575 = vpack.c.b16 %v3542, %v3541
        %v3576 = vpack.c.b16 %v3544, %v3543
        %3609 = vst [vmem:[%s727] sm:$0xff] %v3545
        %3610 = vst [vmem:[%s727 + $0x8] sm:$0xff] %v3546
        %3611 = vst [vmem:[%s727 + $0x10] sm:$0xff] %v3547
        %3612 = vst [vmem:[%s727 + $0x18] sm:$0xff] %v3548
        %3613 = vst [vmem:[%s727 + $0x20] sm:$0xff] %v3549
        %3614 = vst [vmem:[%s727 + $0x28] sm:$0xff] %v3550
        %3615 = vst [vmem:[%s727 + $0x30] sm:$0xff] %v3551
        %3616 = vst [vmem:[%s727 + $0x38] sm:$0xff] %v3552
        %3617 = vst [vmem:[%s727 + $0x40] sm:$0xff] %v3553
        %3618 = vst [vmem:[%s727 + $0x48] sm:$0xff] %v3554
        %3619 = vst [vmem:[%s727 + $0x50] sm:$0xff] %v3555
        %3620 = vst [vmem:[%s727 + $0x58] sm:$0xff] %v3556
        %3621 = vst [vmem:[%s727 + $0x60] sm:$0xff] %v3557
        %3622 = vst [vmem:[%s727 + $0x68] sm:$0xff] %v3558
        %3623 = vst [vmem:[%s727 + $0x70] sm:$0xff] %v3559
        %3624 = vst [vmem:[%s727 + $0x78] sm:$0xff] %v3560
        %3625 = vst [vmem:[%s727 + $0x80] sm:$0xff] %v3561
        %3626 = vst [vmem:[%s727 + $0x88] sm:$0xff] %v3562
        %3627 = vst [vmem:[%s727 + $0x90] sm:$0xff] %v3563
        %3628 = vst [vmem:[%s727 + $0x98] sm:$0xff] %v3564
        %3629 = vst [vmem:[%s727 + $0xa0] sm:$0xff] %v3565
        %3630 = vst [vmem:[%s727 + $0xa8] sm:$0xff] %v3566
        %3631 = vst [vmem:[%s727 + $0xb0] sm:$0xff] %v3567
        %3632 = vst [vmem:[%s727 + $0xb8] sm:$0xff] %v3568
        %3633 = vst [vmem:[%s727 + $0xc0] sm:$0xff] %v3569
        %3634 = vst [vmem:[%s727 + $0xc8] sm:$0xff] %v3570
        %3635 = vst [vmem:[%s727 + $0xd0] sm:$0xff] %v3571
        %3636 = vst [vmem:[%s727 + $0xd8] sm:$0xff] %v3572
        %3637 = vst [vmem:[%s727 + $0xe0] sm:$0xff] %v3573
        %3638 = vst [vmem:[%s727 + $0xe8] sm:$0xff] %v3574
        %3639 = vst [vmem:[%s727 + $0xf0] sm:$0xff] %v3575
        %3640 = vst [vmem:[%s727 + $0xf8] sm:$0xff] %v3576
        %v3641 = vld [vmem:[%s8] sm:$0xff]
        %v3642 = vld [vmem:[%s8 + $0x8] sm:$0xff]
        %v3643 = vld [vmem:[%s8 + $0x10] sm:$0xff]
        %v3644 = vld [vmem:[%s8 + $0x18] sm:$0xff]
        %v3645 = vpack.c.bf16 %v3642, %v3641
        %v3646 = vpack.c.bf16 %v3644, %v3643
        %v3647 = vpack.c.bf16 %v3435, %v3431
        %v3648 = vpack.c.bf16 %v3437, %v3433
        %v3649 = vpack.c.bf16 %v3445, %v3441
        %v3650 = vpack.c.bf16 %v3447, %v3443
        %v3651 = vld [vmem:[%s9] sm:$0xff]
        %v3652 = vld [vmem:[%s9 + $0x8] sm:$0xff]
        %v3653 = vld [vmem:[%s9 + $0x10] sm:$0xff]
        %v3654 = vld [vmem:[%s9 + $0x18] sm:$0xff]
        %3656 = vset.pattern.permute.xlu0 0
        %3657 = vperm.xlu0 %3656, %v3651
        %v3658 = vpop.permute.xlu0 %3657
        %3661 = vset.pattern.permute.xlu0 0
        %3662 = vperm.xlu0 %3661, %v3652
        %v3663 = vpop.permute.xlu0 %3662
        %3666 = vset.pattern.permute.xlu0 0
        %3667 = vperm.xlu0 %3666, %v3653
        %v3668 = vpop.permute.xlu0 %3667
        %3671 = vset.pattern.permute.xlu0 0
        %3672 = vperm.xlu0 %3671, %v3654
        %v3673 = vpop.permute.xlu0 %3672
        %v3676 = vsel %vm1272, %v3645, 0
        %v3679 = vsel %vm1272, %v3646, 0
        %3681 = vmatprep.subr.bf16.mxu0 0
        %3682 = vmatpush1.bf16.msra.mxu0 0
        %3683 = vmatprep.subr.bf16.mxu0 0
        %3684 = vmatpush1.bf16.msra.mxu0 0
        %3685 = vmatprep.subr.bf16.mxu0 0
        %3686 = vmatpush1.bf16.msra.mxu0 0
        %3687 = vmatprep.subr.bf16.mxu0 0
        %3688 = vmatpush1.bf16.msra.mxu0 0
        %3689 = vmatprep.subr.bf16.mxu0 0
        %3690 = vmatpush1.bf16.msra.mxu0 0
        %3691 = vmatprep.subr.bf16.mxu0 0
        %3692 = vmatpush1.bf16.msra.mxu0 0
        %3693 = vmatprep.subr.bf16.mxu0 %v3650
        %3694 = vmatpush1.bf16.msra.mxu0 %v3649
        %3695 = vmatprep.subr.bf16.mxu0 %v3648
        %3696 = vmatpush1.bf16.msra.mxu0 %v3647
        %3697 = vmatprep.subr.bf16.mxu0 0
        %3698 = vmatpush2.bf16.msra.mxu0 0
        %3699 = vmatprep.subr.bf16.mxu0 0
        %3700 = vmatpush2.bf16.msra.mxu0 0
        %3701 = vmatprep.subr.bf16.mxu0 0
        %3702 = vmatpush2.bf16.msra.mxu0 0
        %3703 = vmatprep.subr.bf16.mxu0 0
        %3704 = vmatpush2.bf16.msra.mxu0 0
        %3705 = vmatprep.subr.bf16.mxu0 0
        %3706 = vmatpush2.bf16.msra.mxu0 0
        %3707 = vmatprep.subr.bf16.mxu0 0
        %3708 = vmatpush2.bf16.msra.mxu0 0
        %3709 = vmatprep.subr.bf16.mxu0 0
        %3710 = vmatpush2.bf16.msra.mxu0 0
        %3711 = vmatprep.subr.bf16.mxu0 0
        %3712 = vmatpush2.bf16.msra.mxu0 0
        %3713 = vmatprep.mubr.bf16.mxu0 0
        %3714 = vmatmul.mubr.bf16.gmra.mxu0 %v3676
        %v3715 = vpop.f32.mrf.mxu0
        %v3716 = vadd.f32 %v3658, %v3715
        %v3717 = vpop.f32.mrf.mxu0
        %v3718 = vadd.f32 %v3658, %v3717
        %v3719 = vpop.f32.mrf.mxu0
        %v3720 = vadd.f32 %v3663, %v3719
        %v3721 = vpop.f32.mrf.mxu0
        %v3722 = vadd.f32 %v3663, %v3721
        %3723 = vmatprep.mubr.bf16.mxu0 0
        %3724 = vmatmul.mubr.bf16.gmra.mxu0 %v3679
        %v3725 = vpop.f32.mrf.mxu0
        %v3726 = vadd.f32 %v3668, %v3725
        %v3727 = vpop.f32.mrf.mxu0
        %v3728 = vadd.f32 %v3668, %v3727
        %v3729 = vpop.f32.mrf.mxu0
        %v3730 = vadd.f32 %v3673, %v3729
        %v3731 = vpop.f32.mrf.mxu0
        %v3732 = vadd.f32 %v3673, %v3731
        %3733 = vdwg.mxu0
        %3734 = vst [vmem:[%s769] sm:$0xff] %v3716
        %3735 = vst [vmem:[%s769 + $0x8] sm:$0xff] %v3718
        %3736 = vst [vmem:[%s769 + $0x10] sm:$0xff] %v3720
        %3737 = vst [vmem:[%s769 + $0x18] sm:$0xff] %v3722
        %3738 = vst [vmem:[%s769 + $0x20] sm:$0xff] %v3726
        %3739 = vst [vmem:[%s769 + $0x28] sm:$0xff] %v3728
        %3740 = vst [vmem:[%s769 + $0x30] sm:$0xff] %v3730
        %3741 = vst [vmem:[%s769 + $0x38] sm:$0xff] %v3732
        %3742 = vxpose.xlu0.c.b16.start [1/8] %v2543, 128
        %3743 = vxpose.xlu0.c.b16.cont [2/8] %v2545, 128
        %3744 = vxpose.xlu0.c.b16.cont [3/8] 0, 128
        %3745 = vxpose.xlu0.c.b16.cont [4/8] 0, 128
        %3746 = vxpose.xlu0.c.b16.cont [5/8] 0, 128
        %3747 = vxpose.xlu0.c.b16.cont [6/8] 0, 128
        %3748 = vxpose.xlu0.c.b16.cont [7/8] 0, 128
        %3749 = vxpose.xlu0.c.b16.end [8/8] 0, 128
        %v3750 = vpop.trf.xlu0
        %v3751 = vpop.trf.xlu0
        %v3752 = vpop.trf.xlu0
        %v3753 = vpop.trf.xlu0
        %v3754 = vpop.trf.xlu0
        %v3755 = vpop.trf.xlu0
        %v3756 = vpop.trf.xlu0
        %v3757 = vpop.trf.xlu0
        %3758 = vxpose.xlu0.c.b16.start [1/8] %v2544, 128
        %3759 = vxpose.xlu0.c.b16.cont [2/8] %v2546, 128
        %3760 = vxpose.xlu0.c.b16.cont [3/8] 0, 128
        %3761 = vxpose.xlu0.c.b16.cont [4/8] 0, 128
        %3762 = vxpose.xlu0.c.b16.cont [5/8] 0, 128
        %3763 = vxpose.xlu0.c.b16.cont [6/8] 0, 128
        %3764 = vxpose.xlu0.c.b16.cont [7/8] 0, 128
        %3765 = vxpose.xlu0.c.b16.end [8/8] 0, 128
        %v3766 = vpop.trf.xlu0
        %v3767 = vpop.trf.xlu0
        %v3768 = vpop.trf.xlu0
        %v3769 = vpop.trf.xlu0
        %v3770 = vpop.trf.xlu0
        %v3771 = vpop.trf.xlu0
        %v3772 = vpop.trf.xlu0
        %v3773 = vpop.trf.xlu0
        %v3775 = vsel %vm1272, %v3750, 0
        %v3778 = vsel %vm1272, %v3751, 0
        %v3781 = vsel %vm1272, %v3752, 0
        %v3784 = vsel %vm1272, %v3753, 0
        %v3787 = vsel %vm1272, %v3754, 0
        %v3790 = vsel %vm1272, %v3755, 0
        %v3793 = vsel %vm1272, %v3756, 0
        %v3796 = vsel %vm1272, %v3757, 0
        %v3799 = vsel %vm1272, %v3766, 0
        %v3802 = vsel %vm1272, %v3767, 0
        %v3805 = vsel %vm1272, %v3768, 0
        %v3808 = vsel %vm1272, %v3769, 0
        %v3811 = vsel %vm1272, %v3770, 0
        %v3814 = vsel %vm1272, %v3771, 0
        %v3817 = vsel %vm1272, %v3772, 0
        %v3820 = vsel %vm1272, %v3773, 0
        %3822 = vmatprep.subr.bf16.mxu0 0
        %3823 = vmatpush1.bf16.msra.mxu0 0
        %3824 = vmatprep.subr.bf16.mxu0 0
        %3825 = vmatpush1.bf16.msra.mxu0 0
        %3826 = vmatprep.subr.bf16.mxu0 0
        %3827 = vmatpush1.bf16.msra.mxu0 0
        %3828 = vmatprep.subr.bf16.mxu0 0
        %3829 = vmatpush1.bf16.msra.mxu0 0
        %3830 = vmatprep.subr.bf16.mxu0 0
        %3831 = vmatpush1.bf16.msra.mxu0 0
        %3832 = vmatprep.subr.bf16.mxu0 0
        %3833 = vmatpush1.bf16.msra.mxu0 0
        %3834 = vmatprep.subr.bf16.mxu0 %v2542
        %3835 = vmatpush1.bf16.msra.mxu0 %v2541
        %3836 = vmatprep.subr.bf16.mxu0 %v2540
        %3837 = vmatpush1.bf16.msra.mxu0 %v2539
        %3838 = vmatprep.subr.bf16.mxu0 0
        %3839 = vmatpush2.bf16.msra.mxu0 0
        %3840 = vmatprep.subr.bf16.mxu0 0
        %3841 = vmatpush2.bf16.msra.mxu0 0
        %3842 = vmatprep.subr.bf16.mxu0 0
        %3843 = vmatpush2.bf16.msra.mxu0 0
        %3844 = vmatprep.subr.bf16.mxu0 0
        %3845 = vmatpush2.bf16.msra.mxu0 0
        %3846 = vmatprep.subr.bf16.mxu0 0
        %3847 = vmatpush2.bf16.msra.mxu0 0
        %3848 = vmatprep.subr.bf16.mxu0 0
        %3849 = vmatpush2.bf16.msra.mxu0 0
        %3850 = vmatprep.subr.bf16.mxu0 0
        %3851 = vmatpush2.bf16.msra.mxu0 0
        %3852 = vmatprep.subr.bf16.mxu0 0
        %3853 = vmatpush2.bf16.msra.mxu0 0
        %3854 = vmatprep.mubr.bf16.mxu0 0
        %3855 = vmatmul.mubr.bf16.gmra.mxu0 %v3775
        %v3856 = vpop.f32.mrf.mxu0
        %v3857 = vadd.f32 0.0, %v3856
        %v3858 = vpop.f32.mrf.mxu0
        %v3859 = vadd.f32 0.0, %v3858
        %v3860 = vpop.f32.mrf.mxu0
        %v3861 = vadd.f32 0.0, %v3860
        %v3862 = vpop.f32.mrf.mxu0
        %v3863 = vadd.f32 0.0, %v3862
        %3864 = vmatprep.mubr.bf16.mxu0 0
        %3865 = vmatmul.mubr.bf16.gmra.mxu0 %v3778
        %v3866 = vpop.f32.mrf.mxu0
        %v3867 = vadd.f32 0.0, %v3866
        %v3868 = vpop.f32.mrf.mxu0
        %v3869 = vadd.f32 0.0, %v3868
        %v3870 = vpop.f32.mrf.mxu0
        %v3871 = vadd.f32 0.0, %v3870
        %v3872 = vpop.f32.mrf.mxu0
        %v3873 = vadd.f32 0.0, %v3872
        %3874 = vmatprep.mubr.bf16.mxu0 0
        %3875 = vmatmul.mubr.bf16.gmra.mxu0 %v3781
        %v3876 = vpop.f32.mrf.mxu0
        %v3877 = vadd.f32 0.0, %v3876
        %v3878 = vpop.f32.mrf.mxu0
        %v3879 = vadd.f32 0.0, %v3878
        %v3880 = vpop.f32.mrf.mxu0
        %v3881 = vadd.f32 0.0, %v3880
        %v3882 = vpop.f32.mrf.mxu0
        %v3883 = vadd.f32 0.0, %v3882
        %3884 = vmatprep.mubr.bf16.mxu0 0
        %3885 = vmatmul.mubr.bf16.gmra.mxu0 %v3784
        %v3886 = vpop.f32.mrf.mxu0
        %v3887 = vadd.f32 0.0, %v3886
        %v3888 = vpop.f32.mrf.mxu0
        %v3889 = vadd.f32 0.0, %v3888
        %v3890 = vpop.f32.mrf.mxu0
        %v3891 = vadd.f32 0.0, %v3890
        %v3892 = vpop.f32.mrf.mxu0
        %v3893 = vadd.f32 0.0, %v3892
        %3894 = vmatprep.mubr.bf16.mxu0 0
        %3895 = vmatmul.mubr.bf16.gmra.mxu0 %v3787
        %v3896 = vpop.f32.mrf.mxu0
        %v3897 = vadd.f32 0.0, %v3896
        %v3898 = vpop.f32.mrf.mxu0
        %v3899 = vadd.f32 0.0, %v3898
        %v3900 = vpop.f32.mrf.mxu0
        %v3901 = vadd.f32 0.0, %v3900
        %v3902 = vpop.f32.mrf.mxu0
        %v3903 = vadd.f32 0.0, %v3902
        %3904 = vmatprep.mubr.bf16.mxu0 0
        %3905 = vmatmul.mubr.bf16.gmra.mxu0 %v3790
        %v3906 = vpop.f32.mrf.mxu0
        %v3907 = vadd.f32 0.0, %v3906
        %v3908 = vpop.f32.mrf.mxu0
        %v3909 = vadd.f32 0.0, %v3908
        %v3910 = vpop.f32.mrf.mxu0
        %v3911 = vadd.f32 0.0, %v3910
        %v3912 = vpop.f32.mrf.mxu0
        %v3913 = vadd.f32 0.0, %v3912
        %3914 = vmatprep.mubr.bf16.mxu0 0
        %3915 = vmatmul.mubr.bf16.gmra.mxu0 %v3793
        %v3916 = vpop.f32.mrf.mxu0
        %v3917 = vadd.f32 0.0, %v3916
        %v3918 = vpop.f32.mrf.mxu0
        %v3919 = vadd.f32 0.0, %v3918
        %v3920 = vpop.f32.mrf.mxu0
        %v3921 = vadd.f32 0.0, %v3920
        %v3922 = vpop.f32.mrf.mxu0
        %v3923 = vadd.f32 0.0, %v3922
        %3924 = vmatprep.mubr.bf16.mxu0 0
        %3925 = vmatmul.mubr.bf16.gmra.mxu0 %v3796
        %v3926 = vpop.f32.mrf.mxu0
        %v3927 = vadd.f32 0.0, %v3926
        %v3928 = vpop.f32.mrf.mxu0
        %v3929 = vadd.f32 0.0, %v3928
        %v3930 = vpop.f32.mrf.mxu0
        %v3931 = vadd.f32 0.0, %v3930
        %v3932 = vpop.f32.mrf.mxu0
        %v3933 = vadd.f32 0.0, %v3932
        %3934 = vmatprep.mubr.bf16.mxu0 0
        %3935 = vmatmul.mubr.bf16.gmra.mxu0 %v3799
        %v3936 = vpop.f32.mrf.mxu0
        %v3937 = vadd.f32 0.0, %v3936
        %v3938 = vpop.f32.mrf.mxu0
        %v3939 = vadd.f32 0.0, %v3938
        %v3940 = vpop.f32.mrf.mxu0
        %v3941 = vadd.f32 0.0, %v3940
        %v3942 = vpop.f32.mrf.mxu0
        %v3943 = vadd.f32 0.0, %v3942
        %3944 = vmatprep.mubr.bf16.mxu0 0
        %3945 = vmatmul.mubr.bf16.gmra.mxu0 %v3802
        %v3946 = vpop.f32.mrf.mxu0
        %v3947 = vadd.f32 0.0, %v3946
        %v3948 = vpop.f32.mrf.mxu0
        %v3949 = vadd.f32 0.0, %v3948
        %v3950 = vpop.f32.mrf.mxu0
        %v3951 = vadd.f32 0.0, %v3950
        %v3952 = vpop.f32.mrf.mxu0
        %v3953 = vadd.f32 0.0, %v3952
        %3954 = vmatprep.mubr.bf16.mxu0 0
        %3955 = vmatmul.mubr.bf16.gmra.mxu0 %v3805
        %v3956 = vpop.f32.mrf.mxu0
        %v3957 = vadd.f32 0.0, %v3956
        %v3958 = vpop.f32.mrf.mxu0
        %v3959 = vadd.f32 0.0, %v3958
        %v3960 = vpop.f32.mrf.mxu0
        %v3961 = vadd.f32 0.0, %v3960
        %v3962 = vpop.f32.mrf.mxu0
        %v3963 = vadd.f32 0.0, %v3962
        %3964 = vmatprep.mubr.bf16.mxu0 0
        %3965 = vmatmul.mubr.bf16.gmra.mxu0 %v3808
        %v3966 = vpop.f32.mrf.mxu0
        %v3967 = vadd.f32 0.0, %v3966
        %v3968 = vpop.f32.mrf.mxu0
        %v3969 = vadd.f32 0.0, %v3968
        %v3970 = vpop.f32.mrf.mxu0
        %v3971 = vadd.f32 0.0, %v3970
        %v3972 = vpop.f32.mrf.mxu0
        %v3973 = vadd.f32 0.0, %v3972
        %3974 = vmatprep.mubr.bf16.mxu0 0
        %3975 = vmatmul.mubr.bf16.gmra.mxu0 %v3811
        %v3976 = vpop.f32.mrf.mxu0
        %v3977 = vadd.f32 0.0, %v3976
        %v3978 = vpop.f32.mrf.mxu0
        %v3979 = vadd.f32 0.0, %v3978
        %v3980 = vpop.f32.mrf.mxu0
        %v3981 = vadd.f32 0.0, %v3980
        %v3982 = vpop.f32.mrf.mxu0
        %v3983 = vadd.f32 0.0, %v3982
        %3984 = vmatprep.mubr.bf16.mxu0 0
        %3985 = vmatmul.mubr.bf16.gmra.mxu0 %v3814
        %v3986 = vpop.f32.mrf.mxu0
        %v3987 = vadd.f32 0.0, %v3986
        %v3988 = vpop.f32.mrf.mxu0
        %v3989 = vadd.f32 0.0, %v3988
        %v3990 = vpop.f32.mrf.mxu0
        %v3991 = vadd.f32 0.0, %v3990
        %v3992 = vpop.f32.mrf.mxu0
        %v3993 = vadd.f32 0.0, %v3992
        %3994 = vmatprep.mubr.bf16.mxu0 0
        %3995 = vmatmul.mubr.bf16.gmra.mxu0 %v3817
        %v3996 = vpop.f32.mrf.mxu0
        %v3997 = vadd.f32 0.0, %v3996
        %v3998 = vpop.f32.mrf.mxu0
        %v3999 = vadd.f32 0.0, %v3998
        %v4000 = vpop.f32.mrf.mxu0
        %v4001 = vadd.f32 0.0, %v4000
        %v4002 = vpop.f32.mrf.mxu0
        %v4003 = vadd.f32 0.0, %v4002
        %4004 = vmatprep.mubr.bf16.mxu0 0
        %4005 = vmatmul.mubr.bf16.gmra.mxu0 %v3820
        %v4006 = vpop.f32.mrf.mxu0
        %v4007 = vadd.f32 0.0, %v4006
        %v4008 = vpop.f32.mrf.mxu0
        %v4009 = vadd.f32 0.0, %v4008
        %v4010 = vpop.f32.mrf.mxu0
        %v4011 = vadd.f32 0.0, %v4010
        %v4012 = vpop.f32.mrf.mxu0
        %v4013 = vadd.f32 0.0, %v4012
        %4014 = vdwg.mxu0
        %v4015 = vmul.f32 %v3857, 0.17677669
        %v4016 = vmul.f32 %v3859, 0.17677669
        %v4017 = vmul.f32 %v3861, 0.17677669
        %v4018 = vmul.f32 %v3863, 0.17677669
        %v4019 = vmul.f32 %v3867, 0.17677669
        %v4020 = vmul.f32 %v3869, 0.17677669
        %v4021 = vmul.f32 %v3871, 0.17677669
        %v4022 = vmul.f32 %v3873, 0.17677669
        %v4023 = vmul.f32 %v3877, 0.17677669
        %v4024 = vmul.f32 %v3879, 0.17677669
        %v4025 = vmul.f32 %v3881, 0.17677669
        %v4026 = vmul.f32 %v3883, 0.17677669
        %v4027 = vmul.f32 %v3887, 0.17677669
        %v4028 = vmul.f32 %v3889, 0.17677669
        %v4029 = vmul.f32 %v3891, 0.17677669
        %v4030 = vmul.f32 %v3893, 0.17677669
        %v4031 = vmul.f32 %v3897, 0.17677669
        %v4032 = vmul.f32 %v3899, 0.17677669
        %v4033 = vmul.f32 %v3901, 0.17677669
        %v4034 = vmul.f32 %v3903, 0.17677669
        %v4035 = vmul.f32 %v3907, 0.17677669
        %v4036 = vmul.f32 %v3909, 0.17677669
        %v4037 = vmul.f32 %v3911, 0.17677669
        %v4038 = vmul.f32 %v3913, 0.17677669
        %v4039 = vmul.f32 %v3917, 0.17677669
        %v4040 = vmul.f32 %v3919, 0.17677669
        %v4041 = vmul.f32 %v3921, 0.17677669
        %v4042 = vmul.f32 %v3923, 0.17677669
        %v4043 = vmul.f32 %v3927, 0.17677669
        %v4044 = vmul.f32 %v3929, 0.17677669
        %v4045 = vmul.f32 %v3931, 0.17677669
        %v4046 = vmul.f32 %v3933, 0.17677669
        %v4047 = vmul.f32 %v3937, 0.17677669
        %v4048 = vmul.f32 %v3939, 0.17677669
        %v4049 = vmul.f32 %v3941, 0.17677669
        %v4050 = vmul.f32 %v3943, 0.17677669
        %v4051 = vmul.f32 %v3947, 0.17677669
        %v4052 = vmul.f32 %v3949, 0.17677669
        %v4053 = vmul.f32 %v3951, 0.17677669
        %v4054 = vmul.f32 %v3953, 0.17677669
        %v4055 = vmul.f32 %v3957, 0.17677669
        %v4056 = vmul.f32 %v3959, 0.17677669
        %v4057 = vmul.f32 %v3961, 0.17677669
        %v4058 = vmul.f32 %v3963, 0.17677669
        %v4059 = vmul.f32 %v3967, 0.17677669
        %v4060 = vmul.f32 %v3969, 0.17677669
        %v4061 = vmul.f32 %v3971, 0.17677669
        %v4062 = vmul.f32 %v3973, 0.17677669
        %v4063 = vmul.f32 %v3977, 0.17677669
        %v4064 = vmul.f32 %v3979, 0.17677669
        %v4065 = vmul.f32 %v3981, 0.17677669
        %v4066 = vmul.f32 %v3983, 0.17677669
        %v4067 = vmul.f32 %v3987, 0.17677669
        %v4068 = vmul.f32 %v3989, 0.17677669
        %v4069 = vmul.f32 %v3991, 0.17677669
        %v4070 = vmul.f32 %v3993, 0.17677669
        %v4071 = vmul.f32 %v3997, 0.17677669
        %v4072 = vmul.f32 %v3999, 0.17677669
        %v4073 = vmul.f32 %v4001, 0.17677669
        %v4074 = vmul.f32 %v4003, 0.17677669
        %v4075 = vmul.f32 %v4007, 0.17677669
        %v4076 = vmul.f32 %v4009, 0.17677669
        %v4077 = vmul.f32 %v4011, 0.17677669
        %v4078 = vmul.f32 %v4013, 0.17677669
        %v4079 = vmax.f32 %v4015, %v4016
        %4080 = vmax.xlane.f32.xlu0 %v4079
        %v4081 = vpop.xlane.xlu0 %4080
        %v4082 = vmax.f32 %v4017, %v4018
        %4083 = vmax.xlane.f32.xlu0 %v4082
        %v4084 = vpop.xlane.xlu0 %4083
        %v4085 = vmax.f32 %v4019, %v4020
        %4086 = vmax.xlane.f32.xlu0 %v4085
        %v4087 = vpop.xlane.xlu0 %4086
        %v4088 = vmax.f32 %v4021, %v4022
        %4089 = vmax.xlane.f32.xlu0 %v4088
        %v4090 = vpop.xlane.xlu0 %4089
        %v4091 = vmax.f32 %v4023, %v4024
        %4092 = vmax.xlane.f32.xlu0 %v4091
        %v4093 = vpop.xlane.xlu0 %4092
        %v4094 = vmax.f32 %v4025, %v4026
        %4095 = vmax.xlane.f32.xlu0 %v4094
        %v4096 = vpop.xlane.xlu0 %4095
        %v4097 = vmax.f32 %v4027, %v4028
        %4098 = vmax.xlane.f32.xlu0 %v4097
        %v4099 = vpop.xlane.xlu0 %4098
        %v4100 = vmax.f32 %v4029, %v4030
        %4101 = vmax.xlane.f32.xlu0 %v4100
        %v4102 = vpop.xlane.xlu0 %4101
        %v4103 = vmax.f32 %v4031, %v4032
        %4104 = vmax.xlane.f32.xlu0 %v4103
        %v4105 = vpop.xlane.xlu0 %4104
        %v4106 = vmax.f32 %v4033, %v4034
        %4107 = vmax.xlane.f32.xlu0 %v4106
        %v4108 = vpop.xlane.xlu0 %4107
        %v4109 = vmax.f32 %v4035, %v4036
        %4110 = vmax.xlane.f32.xlu0 %v4109
        %v4111 = vpop.xlane.xlu0 %4110
        %v4112 = vmax.f32 %v4037, %v4038
        %4113 = vmax.xlane.f32.xlu0 %v4112
        %v4114 = vpop.xlane.xlu0 %4113
        %v4115 = vmax.f32 %v4039, %v4040
        %4116 = vmax.xlane.f32.xlu0 %v4115
        %v4117 = vpop.xlane.xlu0 %4116
        %v4118 = vmax.f32 %v4041, %v4042
        %4119 = vmax.xlane.f32.xlu0 %v4118
        %v4120 = vpop.xlane.xlu0 %4119
        %v4121 = vmax.f32 %v4043, %v4044
        %4122 = vmax.xlane.f32.xlu0 %v4121
        %v4123 = vpop.xlane.xlu0 %4122
        %v4124 = vmax.f32 %v4045, %v4046
        %4125 = vmax.xlane.f32.xlu0 %v4124
        %v4126 = vpop.xlane.xlu0 %4125
        %v4127 = vmax.f32 %v4047, %v4048
        %4128 = vmax.xlane.f32.xlu0 %v4127
        %v4129 = vpop.xlane.xlu0 %4128
        %v4130 = vmax.f32 %v4049, %v4050
        %4131 = vmax.xlane.f32.xlu0 %v4130
        %v4132 = vpop.xlane.xlu0 %4131
        %v4133 = vmax.f32 %v4051, %v4052
        %4134 = vmax.xlane.f32.xlu0 %v4133
        %v4135 = vpop.xlane.xlu0 %4134
        %v4136 = vmax.f32 %v4053, %v4054
        %4137 = vmax.xlane.f32.xlu0 %v4136
        %v4138 = vpop.xlane.xlu0 %4137
        %v4139 = vmax.f32 %v4055, %v4056
        %4140 = vmax.xlane.f32.xlu0 %v4139
        %v4141 = vpop.xlane.xlu0 %4140
        %v4142 = vmax.f32 %v4057, %v4058
        %4143 = vmax.xlane.f32.xlu0 %v4142
        %v4144 = vpop.xlane.xlu0 %4143
        %v4145 = vmax.f32 %v4059, %v4060
        %4146 = vmax.xlane.f32.xlu0 %v4145
        %v4147 = vpop.xlane.xlu0 %4146
        %v4148 = vmax.f32 %v4061, %v4062
        %4149 = vmax.xlane.f32.xlu0 %v4148
        %v4150 = vpop.xlane.xlu0 %4149
        %v4151 = vmax.f32 %v4063, %v4064
        %4152 = vmax.xlane.f32.xlu0 %v4151
        %v4153 = vpop.xlane.xlu0 %4152
        %v4154 = vmax.f32 %v4065, %v4066
        %4155 = vmax.xlane.f32.xlu0 %v4154
        %v4156 = vpop.xlane.xlu0 %4155
        %v4157 = vmax.f32 %v4067, %v4068
        %4158 = vmax.xlane.f32.xlu0 %v4157
        %v4159 = vpop.xlane.xlu0 %4158
        %v4160 = vmax.f32 %v4069, %v4070
        %4161 = vmax.xlane.f32.xlu0 %v4160
        %v4162 = vpop.xlane.xlu0 %4161
        %v4163 = vmax.f32 %v4071, %v4072
        %4164 = vmax.xlane.f32.xlu0 %v4163
        %v4165 = vpop.xlane.xlu0 %4164
        %v4166 = vmax.f32 %v4073, %v4074
        %4167 = vmax.xlane.f32.xlu0 %v4166
        %v4168 = vpop.xlane.xlu0 %4167
        %v4169 = vmax.f32 %v4075, %v4076
        %4170 = vmax.xlane.f32.xlu0 %v4169
        %v4171 = vpop.xlane.xlu0 %4170
        %v4172 = vmax.f32 %v4077, %v4078
        %4173 = vmax.xlane.f32.xlu0 %v4172
        %v4174 = vpop.xlane.xlu0 %4173
        %v4175 = vsub.f32 %v4015, %v4081
        %v4176 = vsub.f32 %v4016, %v4081
        %v4177 = vsub.f32 %v4017, %v4084
        %v4178 = vsub.f32 %v4018, %v4084
        %v4179 = vsub.f32 %v4019, %v4087
        %v4180 = vsub.f32 %v4020, %v4087
        %v4181 = vsub.f32 %v4021, %v4090
        %v4182 = vsub.f32 %v4022, %v4090
        %v4183 = vsub.f32 %v4023, %v4093
        %v4184 = vsub.f32 %v4024, %v4093
        %v4185 = vsub.f32 %v4025, %v4096
        %v4186 = vsub.f32 %v4026, %v4096
        %v4187 = vsub.f32 %v4027, %v4099
        %v4188 = vsub.f32 %v4028, %v4099
        %v4189 = vsub.f32 %v4029, %v4102
        %v4190 = vsub.f32 %v4030, %v4102
        %v4191 = vsub.f32 %v4031, %v4105
        %v4192 = vsub.f32 %v4032, %v4105
        %v4193 = vsub.f32 %v4033, %v4108
        %v4194 = vsub.f32 %v4034, %v4108
        %v4195 = vsub.f32 %v4035, %v4111
        %v4196 = vsub.f32 %v4036, %v4111
        %v4197 = vsub.f32 %v4037, %v4114
        %v4198 = vsub.f32 %v4038, %v4114
        %v4199 = vsub.f32 %v4039, %v4117
        %v4200 = vsub.f32 %v4040, %v4117
        %v4201 = vsub.f32 %v4041, %v4120
        %v4202 = vsub.f32 %v4042, %v4120
        %v4203 = vsub.f32 %v4043, %v4123
        %v4204 = vsub.f32 %v4044, %v4123
        %v4205 = vsub.f32 %v4045, %v4126
        %v4206 = vsub.f32 %v4046, %v4126
        %v4207 = vsub.f32 %v4047, %v4129
        %v4208 = vsub.f32 %v4048, %v4129
        %v4209 = vsub.f32 %v4049, %v4132
        %v4210 = vsub.f32 %v4050, %v4132
        %v4211 = vsub.f32 %v4051, %v4135
        %v4212 = vsub.f32 %v4052, %v4135
        %v4213 = vsub.f32 %v4053, %v4138
        %v4214 = vsub.f32 %v4054, %v4138
        %v4215 = vsub.f32 %v4055, %v4141
        %v4216 = vsub.f32 %v4056, %v4141
        %v4217 = vsub.f32 %v4057, %v4144
        %v4218 = vsub.f32 %v4058, %v4144
        %v4219 = vsub.f32 %v4059, %v4147
        %v4220 = vsub.f32 %v4060, %v4147
        %v4221 = vsub.f32 %v4061, %v4150
        %v4222 = vsub.f32 %v4062, %v4150
        %v4223 = vsub.f32 %v4063, %v4153
        %v4224 = vsub.f32 %v4064, %v4153
        %v4225 = vsub.f32 %v4065, %v4156
        %v4226 = vsub.f32 %v4066, %v4156
        %v4227 = vsub.f32 %v4067, %v4159
        %v4228 = vsub.f32 %v4068, %v4159
        %v4229 = vsub.f32 %v4069, %v4162
        %v4230 = vsub.f32 %v4070, %v4162
        %v4231 = vsub.f32 %v4071, %v4165
        %v4232 = vsub.f32 %v4072, %v4165
        %v4233 = vsub.f32 %v4073, %v4168
        %v4234 = vsub.f32 %v4074, %v4168
        %v4235 = vsub.f32 %v4075, %v4171
        %v4236 = vsub.f32 %v4076, %v4171
        %v4237 = vsub.f32 %v4077, %v4174
        %v4238 = vsub.f32 %v4078, %v4174
        %v4239 = vmul.f32 %v4175, 1.442695
        %v4240 = vpow.pop %v4239
        %v4241 = vmul.f32 %v4176, 1.442695
        %v4242 = vpow.pop %v4241
        %v4243 = vmul.f32 %v4177, 1.442695
        %v4244 = vpow.pop %v4243
        %v4245 = vmul.f32 %v4178, 1.442695
        %v4246 = vpow.pop %v4245
        %v4247 = vmul.f32 %v4179, 1.442695
        %v4248 = vpow.pop %v4247
        %v4249 = vmul.f32 %v4180, 1.442695
        %v4250 = vpow.pop %v4249
        %v4251 = vmul.f32 %v4181, 1.442695
        %v4252 = vpow.pop %v4251
        %v4253 = vmul.f32 %v4182, 1.442695
        %v4254 = vpow.pop %v4253
        %v4255 = vmul.f32 %v4183, 1.442695
        %v4256 = vpow.pop %v4255
        %v4257 = vmul.f32 %v4184, 1.442695
        %v4258 = vpow.pop %v4257
        %v4259 = vmul.f32 %v4185, 1.442695
        %v4260 = vpow.pop %v4259
        %v4261 = vmul.f32 %v4186, 1.442695
        %v4262 = vpow.pop %v4261
        %v4263 = vmul.f32 %v4187, 1.442695
        %v4264 = vpow.pop %v4263
        %v4265 = vmul.f32 %v4188, 1.442695
        %v4266 = vpow.pop %v4265
        %v4267 = vmul.f32 %v4189, 1.442695
        %v4268 = vpow.pop %v4267
        %v4269 = vmul.f32 %v4190, 1.442695
        %v4270 = vpow.pop %v4269
        %v4271 = vmul.f32 %v4191, 1.442695
        %v4272 = vpow.pop %v4271
        %v4273 = vmul.f32 %v4192, 1.442695
        %v4274 = vpow.pop %v4273
        %v4275 = vmul.f32 %v4193, 1.442695
        %v4276 = vpow.pop %v4275
        %v4277 = vmul.f32 %v4194, 1.442695
        %v4278 = vpow.pop %v4277
        %v4279 = vmul.f32 %v4195, 1.442695
        %v4280 = vpow.pop %v4279
        %v4281 = vmul.f32 %v4196, 1.442695
        %v4282 = vpow.pop %v4281
        %v4283 = vmul.f32 %v4197, 1.442695
        %v4284 = vpow.pop %v4283
        %v4285 = vmul.f32 %v4198, 1.442695
        %v4286 = vpow.pop %v4285
        %v4287 = vmul.f32 %v4199, 1.442695
        %v4288 = vpow.pop %v4287
        %v4289 = vmul.f32 %v4200, 1.442695
        %v4290 = vpow.pop %v4289
        %v4291 = vmul.f32 %v4201, 1.442695
        %v4292 = vpow.pop %v4291
        %v4293 = vmul.f32 %v4202, 1.442695
        %v4294 = vpow.pop %v4293
        %v4295 = vmul.f32 %v4203, 1.442695
        %v4296 = vpow.pop %v4295
        %v4297 = vmul.f32 %v4204, 1.442695
        %v4298 = vpow.pop %v4297
        %v4299 = vmul.f32 %v4205, 1.442695
        %v4300 = vpow.pop %v4299
        %v4301 = vmul.f32 %v4206, 1.442695
        %v4302 = vpow.pop %v4301
        %v4303 = vmul.f32 %v4207, 1.442695
        %v4304 = vpow.pop %v4303
        %v4305 = vmul.f32 %v4208, 1.442695
        %v4306 = vpow.pop %v4305
        %v4307 = vmul.f32 %v4209, 1.442695
        %v4308 = vpow.pop %v4307
        %v4309 = vmul.f32 %v4210, 1.442695
        %v4310 = vpow.pop %v4309
        %v4311 = vmul.f32 %v4211, 1.442695
        %v4312 = vpow.pop %v4311
        %v4313 = vmul.f32 %v4212, 1.442695
        %v4314 = vpow.pop %v4313
        %v4315 = vmul.f32 %v4213, 1.442695
        %v4316 = vpow.pop %v4315
        %v4317 = vmul.f32 %v4214, 1.442695
        %v4318 = vpow.pop %v4317
        %v4319 = vmul.f32 %v4215, 1.442695
        %v4320 = vpow.pop %v4319
        %v4321 = vmul.f32 %v4216, 1.442695
        %v4322 = vpow.pop %v4321
        %v4323 = vmul.f32 %v4217, 1.442695
        %v4324 = vpow.pop %v4323
        %v4325 = vmul.f32 %v4218, 1.442695
        %v4326 = vpow.pop %v4325
        %v4327 = vmul.f32 %v4219, 1.442695
        %v4328 = vpow.pop %v4327
        %v4329 = vmul.f32 %v4220, 1.442695
        %v4330 = vpow.pop %v4329
        %v4331 = vmul.f32 %v4221, 1.442695
        %v4332 = vpow.pop %v4331
        %v4333 = vmul.f32 %v4222, 1.442695
        %v4334 = vpow.pop %v4333
        %v4335 = vmul.f32 %v4223, 1.442695
        %v4336 = vpow.pop %v4335
        %v4337 = vmul.f32 %v4224, 1.442695
        %v4338 = vpow.pop %v4337
        %v4339 = vmul.f32 %v4225, 1.442695
        %v4340 = vpow.pop %v4339
        %v4341 = vmul.f32 %v4226, 1.442695
        %v4342 = vpow.pop %v4341
        %v4343 = vmul.f32 %v4227, 1.442695
        %v4344 = vpow.pop %v4343
        %v4345 = vmul.f32 %v4228, 1.442695
        %v4346 = vpow.pop %v4345
        %v4347 = vmul.f32 %v4229, 1.442695
        %v4348 = vpow.pop %v4347
        %v4349 = vmul.f32 %v4230, 1.442695
        %v4350 = vpow.pop %v4349
        %v4351 = vmul.f32 %v4231, 1.442695
        %v4352 = vpow.pop %v4351
        %v4353 = vmul.f32 %v4232, 1.442695
        %v4354 = vpow.pop %v4353
        %v4355 = vmul.f32 %v4233, 1.442695
        %v4356 = vpow.pop %v4355
        %v4357 = vmul.f32 %v4234, 1.442695
        %v4358 = vpow.pop %v4357
        %v4359 = vmul.f32 %v4235, 1.442695
        %v4360 = vpow.pop %v4359
        %v4361 = vmul.f32 %v4236, 1.442695
        %v4362 = vpow.pop %v4361
        %v4363 = vmul.f32 %v4237, 1.442695
        %v4364 = vpow.pop %v4363
        %v4365 = vmul.f32 %v4238, 1.442695
        %v4366 = vpow.pop %v4365
        %v4367 = vadd.f32 %v4240, %v4242
        %4368 = vadd.xlane.f32.xlu0 %v4367
        %v4369 = vpop.xlane.xlu0 %4368
        %v4370 = vadd.f32 %v4244, %v4246
        %4371 = vadd.xlane.f32.xlu0 %v4370
        %v4372 = vpop.xlane.xlu0 %4371
        %v4373 = vadd.f32 %v4248, %v4250
        %4374 = vadd.xlane.f32.xlu0 %v4373
        %v4375 = vpop.xlane.xlu0 %4374
        %v4376 = vadd.f32 %v4252, %v4254
        %4377 = vadd.xlane.f32.xlu0 %v4376
        %v4378 = vpop.xlane.xlu0 %4377
        %v4379 = vadd.f32 %v4256, %v4258
        %4380 = vadd.xlane.f32.xlu0 %v4379
        %v4381 = vpop.xlane.xlu0 %4380
        %v4382 = vadd.f32 %v4260, %v4262
        %4383 = vadd.xlane.f32.xlu0 %v4382
        %v4384 = vpop.xlane.xlu0 %4383
        %v4385 = vadd.f32 %v4264, %v4266
        %4386 = vadd.xlane.f32.xlu0 %v4385
        %v4387 = vpop.xlane.xlu0 %4386
        %v4388 = vadd.f32 %v4268, %v4270
        %4389 = vadd.xlane.f32.xlu0 %v4388
        %v4390 = vpop.xlane.xlu0 %4389
        %v4391 = vadd.f32 %v4272, %v4274
        %4392 = vadd.xlane.f32.xlu0 %v4391
        %v4393 = vpop.xlane.xlu0 %4392
        %v4394 = vadd.f32 %v4276, %v4278
        %4395 = vadd.xlane.f32.xlu0 %v4394
        %v4396 = vpop.xlane.xlu0 %4395
        %v4397 = vadd.f32 %v4280, %v4282
        %4398 = vadd.xlane.f32.xlu0 %v4397
        %v4399 = vpop.xlane.xlu0 %4398
        %v4400 = vadd.f32 %v4284, %v4286
        %4401 = vadd.xlane.f32.xlu0 %v4400
        %v4402 = vpop.xlane.xlu0 %4401
        %v4403 = vadd.f32 %v4288, %v4290
        %4404 = vadd.xlane.f32.xlu0 %v4403
        %v4405 = vpop.xlane.xlu0 %4404
        %v4406 = vadd.f32 %v4292, %v4294
        %4407 = vadd.xlane.f32.xlu0 %v4406
        %v4408 = vpop.xlane.xlu0 %4407
        %v4409 = vadd.f32 %v4296, %v4298
        %4410 = vadd.xlane.f32.xlu0 %v4409
        %v4411 = vpop.xlane.xlu0 %4410
        %v4412 = vadd.f32 %v4300, %v4302
        %4413 = vadd.xlane.f32.xlu0 %v4412
        %v4414 = vpop.xlane.xlu0 %4413
        %v4415 = vadd.f32 %v4304, %v4306
        %4416 = vadd.xlane.f32.xlu0 %v4415
        %v4417 = vpop.xlane.xlu0 %4416
        %v4418 = vadd.f32 %v4308, %v4310
        %4419 = vadd.xlane.f32.xlu0 %v4418
        %v4420 = vpop.xlane.xlu0 %4419
        %v4421 = vadd.f32 %v4312, %v4314
        %4422 = vadd.xlane.f32.xlu0 %v4421
        %v4423 = vpop.xlane.xlu0 %4422
        %v4424 = vadd.f32 %v4316, %v4318
        %4425 = vadd.xlane.f32.xlu0 %v4424
        %v4426 = vpop.xlane.xlu0 %4425
        %v4427 = vadd.f32 %v4320, %v4322
        %4428 = vadd.xlane.f32.xlu0 %v4427
        %v4429 = vpop.xlane.xlu0 %4428
        %v4430 = vadd.f32 %v4324, %v4326
        %4431 = vadd.xlane.f32.xlu0 %v4430
        %v4432 = vpop.xlane.xlu0 %4431
        %v4433 = vadd.f32 %v4328, %v4330
        %4434 = vadd.xlane.f32.xlu0 %v4433
        %v4435 = vpop.xlane.xlu0 %4434
        %v4436 = vadd.f32 %v4332, %v4334
        %4437 = vadd.xlane.f32.xlu0 %v4436
        %v4438 = vpop.xlane.xlu0 %4437
        %v4439 = vadd.f32 %v4336, %v4338
        %4440 = vadd.xlane.f32.xlu0 %v4439
        %v4441 = vpop.xlane.xlu0 %4440
        %v4442 = vadd.f32 %v4340, %v4342
        %4443 = vadd.xlane.f32.xlu0 %v4442
        %v4444 = vpop.xlane.xlu0 %4443
        %v4445 = vadd.f32 %v4344, %v4346
        %4446 = vadd.xlane.f32.xlu0 %v4445
        %v4447 = vpop.xlane.xlu0 %4446
        %v4448 = vadd.f32 %v4348, %v4350
        %4449 = vadd.xlane.f32.xlu0 %v4448
        %v4450 = vpop.xlane.xlu0 %4449
        %v4451 = vadd.f32 %v4352, %v4354
        %4452 = vadd.xlane.f32.xlu0 %v4451
        %v4453 = vpop.xlane.xlu0 %4452
        %v4454 = vadd.f32 %v4356, %v4358
        %4455 = vadd.xlane.f32.xlu0 %v4454
        %v4456 = vpop.xlane.xlu0 %4455
        %v4457 = vadd.f32 %v4360, %v4362
        %4458 = vadd.xlane.f32.xlu0 %v4457
        %v4459 = vpop.xlane.xlu0 %4458
        %v4460 = vadd.f32 %v4364, %v4366
        %4461 = vadd.xlane.f32.xlu0 %v4460
        %v4462 = vpop.xlane.xlu0 %4461
        %v4463 = vrcp.pop %v4369
        %v4464 = vrcp.pop %v4372
        %v4465 = vrcp.pop %v4375
        %v4466 = vrcp.pop %v4378
        %v4467 = vrcp.pop %v4381
        %v4468 = vrcp.pop %v4384
        %v4469 = vrcp.pop %v4387
        %v4470 = vrcp.pop %v4390
        %v4471 = vrcp.pop %v4393
        %v4472 = vrcp.pop %v4396
        %v4473 = vrcp.pop %v4399
        %v4474 = vrcp.pop %v4402
        %v4475 = vrcp.pop %v4405
        %v4476 = vrcp.pop %v4408
        %v4477 = vrcp.pop %v4411
        %v4478 = vrcp.pop %v4414
        %v4479 = vrcp.pop %v4417
        %v4480 = vrcp.pop %v4420
        %v4481 = vrcp.pop %v4423
        %v4482 = vrcp.pop %v4426
        %v4483 = vrcp.pop %v4429
        %v4484 = vrcp.pop %v4432
        %v4485 = vrcp.pop %v4435
        %v4486 = vrcp.pop %v4438
        %v4487 = vrcp.pop %v4441
        %v4488 = vrcp.pop %v4444
        %v4489 = vrcp.pop %v4447
        %v4490 = vrcp.pop %v4450
        %v4491 = vrcp.pop %v4453
        %v4492 = vrcp.pop %v4456
        %v4493 = vrcp.pop %v4459
        %v4494 = vrcp.pop %v4462
        %v4495 = vmul.f32 %v4240, %v4463
        %v4496 = vmul.f32 %v4242, %v4463
        %v4497 = vmul.f32 %v4244, %v4464
        %v4498 = vmul.f32 %v4246, %v4464
        %v4499 = vmul.f32 %v4248, %v4465
        %v4500 = vmul.f32 %v4250, %v4465
        %v4501 = vmul.f32 %v4252, %v4466
        %v4502 = vmul.f32 %v4254, %v4466
        %v4503 = vmul.f32 %v4256, %v4467
        %v4504 = vmul.f32 %v4258, %v4467
        %v4505 = vmul.f32 %v4260, %v4468
        %v4506 = vmul.f32 %v4262, %v4468
        %v4507 = vmul.f32 %v4264, %v4469
        %v4508 = vmul.f32 %v4266, %v4469
        %v4509 = vmul.f32 %v4268, %v4470
        %v4510 = vmul.f32 %v4270, %v4470
        %v4511 = vmul.f32 %v4272, %v4471
        %v4512 = vmul.f32 %v4274, %v4471
        %v4513 = vmul.f32 %v4276, %v4472
        %v4514 = vmul.f32 %v4278, %v4472
        %v4515 = vmul.f32 %v4280, %v4473
        %v4516 = vmul.f32 %v4282, %v4473
        %v4517 = vmul.f32 %v4284, %v4474
        %v4518 = vmul.f32 %v4286, %v4474
        %v4519 = vmul.f32 %v4288, %v4475
        %v4520 = vmul.f32 %v4290, %v4475
        %v4521 = vmul.f32 %v4292, %v4476
        %v4522 = vmul.f32 %v4294, %v4476
        %v4523 = vmul.f32 %v4296, %v4477
        %v4524 = vmul.f32 %v4298, %v4477
        %v4525 = vmul.f32 %v4300, %v4478
        %v4526 = vmul.f32 %v4302, %v4478
        %v4527 = vmul.f32 %v4304, %v4479
        %v4528 = vmul.f32 %v4306, %v4479
        %v4529 = vmul.f32 %v4308, %v4480
        %v4530 = vmul.f32 %v4310, %v4480
        %v4531 = vmul.f32 %v4312, %v4481
        %v4532 = vmul.f32 %v4314, %v4481
        %v4533 = vmul.f32 %v4316, %v4482
        %v4534 = vmul.f32 %v4318, %v4482
        %v4535 = vmul.f32 %v4320, %v4483
        %v4536 = vmul.f32 %v4322, %v4483
        %v4537 = vmul.f32 %v4324, %v4484
        %v4538 = vmul.f32 %v4326, %v4484
        %v4539 = vmul.f32 %v4328, %v4485
        %v4540 = vmul.f32 %v4330, %v4485
        %v4541 = vmul.f32 %v4332, %v4486
        %v4542 = vmul.f32 %v4334, %v4486
        %v4543 = vmul.f32 %v4336, %v4487
        %v4544 = vmul.f32 %v4338, %v4487
        %v4545 = vmul.f32 %v4340, %v4488
        %v4546 = vmul.f32 %v4342, %v4488
        %v4547 = vmul.f32 %v4344, %v4489
        %v4548 = vmul.f32 %v4346, %v4489
        %v4549 = vmul.f32 %v4348, %v4490
        %v4550 = vmul.f32 %v4350, %v4490
        %v4551 = vmul.f32 %v4352, %v4491
        %v4552 = vmul.f32 %v4354, %v4491
        %v4553 = vmul.f32 %v4356, %v4492
        %v4554 = vmul.f32 %v4358, %v4492
        %v4555 = vmul.f32 %v4360, %v4493
        %v4556 = vmul.f32 %v4362, %v4493
        %v4557 = vmul.f32 %v4364, %v4494
        %v4558 = vmul.f32 %v4366, %v4494
        %v4559 = vpack.c.bf16 %v4497, %v4495
        %v4560 = vpack.c.bf16 %v4498, %v4496
        %v4561 = vpack.c.bf16 %v4501, %v4499
        %v4562 = vpack.c.bf16 %v4502, %v4500
        %v4563 = vpack.c.bf16 %v4505, %v4503
        %v4564 = vpack.c.bf16 %v4506, %v4504
        %v4565 = vpack.c.bf16 %v4509, %v4507
        %v4566 = vpack.c.bf16 %v4510, %v4508
        %v4567 = vpack.c.bf16 %v4513, %v4511
        %v4568 = vpack.c.bf16 %v4514, %v4512
        %v4569 = vpack.c.bf16 %v4517, %v4515
        %v4570 = vpack.c.bf16 %v4518, %v4516
        %v4571 = vpack.c.bf16 %v4521, %v4519
        %v4572 = vpack.c.bf16 %v4522, %v4520
        %v4573 = vpack.c.bf16 %v4525, %v4523
        %v4574 = vpack.c.bf16 %v4526, %v4524
        %v4575 = vpack.c.bf16 %v4529, %v4527
        %v4576 = vpack.c.bf16 %v4530, %v4528
        %v4577 = vpack.c.bf16 %v4533, %v4531
        %v4578 = vpack.c.bf16 %v4534, %v4532
        %v4579 = vpack.c.bf16 %v4537, %v4535
        %v4580 = vpack.c.bf16 %v4538, %v4536
        %v4581 = vpack.c.bf16 %v4541, %v4539
        %v4582 = vpack.c.bf16 %v4542, %v4540
        %v4583 = vpack.c.bf16 %v4545, %v4543
        %v4584 = vpack.c.bf16 %v4546, %v4544
        %v4585 = vpack.c.bf16 %v4549, %v4547
        %v4586 = vpack.c.bf16 %v4550, %v4548
        %v4587 = vpack.c.bf16 %v4553, %v4551
        %v4588 = vpack.c.bf16 %v4554, %v4552
        %v4589 = vpack.c.bf16 %v4557, %v4555
        %v4590 = vpack.c.bf16 %v4558, %v4556
        %4591 = vmatprep.subr.bf16.mxu0 %v4574
        %4592 = vmatpush1.bf16.xpose.msra.mxu0 %v4573
        %4593 = vmatprep.subr.bf16.mxu0 %v4572
        %4594 = vmatpush1.bf16.xpose.msra.mxu0 %v4571
        %4595 = vmatprep.subr.bf16.mxu0 %v4570
        %4596 = vmatpush1.bf16.xpose.msra.mxu0 %v4569
        %4597 = vmatprep.subr.bf16.mxu0 %v4568
        %4598 = vmatpush1.bf16.xpose.msra.mxu0 %v4567
        %4599 = vmatprep.subr.bf16.mxu0 %v4566
        %4600 = vmatpush1.bf16.xpose.msra.mxu0 %v4565
        %4601 = vmatprep.subr.bf16.mxu0 %v4564
        %4602 = vmatpush1.bf16.xpose.msra.mxu0 %v4563
        %4603 = vmatprep.subr.bf16.mxu0 %v4562
        %4604 = vmatpush1.bf16.xpose.msra.mxu0 %v4561
        %4605 = vmatprep.subr.bf16.mxu0 %v4560
        %4606 = vmatpush1.bf16.xpose.msra.mxu0 %v4559
        %4607 = vmatprep.subr.bf16.mxu0 %v4590
        %4608 = vmatpush2.bf16.xpose.msra.mxu0 %v4589
        %4609 = vmatprep.subr.bf16.mxu0 %v4588
        %4610 = vmatpush2.bf16.xpose.msra.mxu0 %v4587
        %4611 = vmatprep.subr.bf16.mxu0 %v4586
        %4612 = vmatpush2.bf16.xpose.msra.mxu0 %v4585
        %4613 = vmatprep.subr.bf16.mxu0 %v4584
        %4614 = vmatpush2.bf16.xpose.msra.mxu0 %v4583
        %4615 = vmatprep.subr.bf16.mxu0 %v4582
        %4616 = vmatpush2.bf16.xpose.msra.mxu0 %v4581
        %4617 = vmatprep.subr.bf16.mxu0 %v4580
        %4618 = vmatpush2.bf16.xpose.msra.mxu0 %v4579
        %4619 = vmatprep.subr.bf16.mxu0 %v4578
        %4620 = vmatpush2.bf16.xpose.msra.mxu0 %v4577
        %4621 = vmatprep.subr.bf16.mxu0 %v4576
        %4622 = vmatpush2.bf16.xpose.msra.mxu0 %v4575
        %4623 = vmatprep.mubr.bf16.mxu0 %v2540
        %4624 = vmatmul.mubr.bf16.gmra.mxu0 %v2539
        %v4625 = vpop.f32.mrf.mxu0
        %v4626 = vadd.f32 0.0, %v4625
        %v4627 = vpop.f32.mrf.mxu0
        %v4628 = vadd.f32 0.0, %v4627
        %v4629 = vpop.f32.mrf.mxu0
        %v4630 = vadd.f32 0.0, %v4629
        %v4631 = vpop.f32.mrf.mxu0
        %v4632 = vadd.f32 0.0, %v4631
        %4633 = vmatprep.mubr.bf16.mxu0 %v2542
        %4634 = vmatmul.mubr.bf16.gmra.mxu0 %v2541
        %v4635 = vpop.f32.mrf.mxu0
        %v4636 = vadd.f32 0.0, %v4635
        %v4637 = vpop.f32.mrf.mxu0
        %v4638 = vadd.f32 0.0, %v4637
        %v4639 = vpop.f32.mrf.mxu0
        %v4640 = vadd.f32 0.0, %v4639
        %v4641 = vpop.f32.mrf.mxu0
        %v4642 = vadd.f32 0.0, %v4641
        %4643 = vdwg.mxu0
        %v4676 = vunpack.c.l.b16 %v4559
        %v4677 = vunpack.c.l.b16 %v4560
        %v4678 = vunpack.c.h.b16 %v4559
        %v4679 = vunpack.c.h.b16 %v4560
        %v4680 = vunpack.c.l.b16 %v4561
        %v4681 = vunpack.c.l.b16 %v4562
        %v4682 = vunpack.c.h.b16 %v4561
        %v4683 = vunpack.c.h.b16 %v4562
        %v4684 = vunpack.c.l.b16 %v4563
        %v4685 = vunpack.c.l.b16 %v4564
        %v4686 = vunpack.c.h.b16 %v4563
        %v4687 = vunpack.c.h.b16 %v4564
        %v4688 = vunpack.c.l.b16 %v4565
        %v4689 = vunpack.c.l.b16 %v4566
        %v4690 = vunpack.c.h.b16 %v4565
        %v4691 = vunpack.c.h.b16 %v4566
        %v4692 = vunpack.c.l.b16 %v4567
        %v4693 = vunpack.c.l.b16 %v4568
        %v4694 = vunpack.c.h.b16 %v4567
        %v4695 = vunpack.c.h.b16 %v4568
        %v4696 = vunpack.c.l.b16 %v4569
        %v4697 = vunpack.c.l.b16 %v4570
        %v4698 = vunpack.c.h.b16 %v4569
        %v4699 = vunpack.c.h.b16 %v4570
        %v4700 = vunpack.c.l.b16 %v4571
        %v4701 = vunpack.c.l.b16 %v4572
        %v4702 = vunpack.c.h.b16 %v4571
        %v4703 = vunpack.c.h.b16 %v4572
        %v4704 = vunpack.c.l.b16 %v4573
        %v4705 = vunpack.c.l.b16 %v4574
        %v4706 = vunpack.c.h.b16 %v4573
        %v4707 = vunpack.c.h.b16 %v4574
        %v4708 = vunpack.c.l.b16 %v4575
        %v4709 = vunpack.c.l.b16 %v4576
        %v4710 = vunpack.c.h.b16 %v4575
        %v4711 = vunpack.c.h.b16 %v4576
        %v4712 = vunpack.c.l.b16 %v4577
        %v4713 = vunpack.c.l.b16 %v4578
        %v4714 = vunpack.c.h.b16 %v4577
        %v4715 = vunpack.c.h.b16 %v4578
        %v4716 = vunpack.c.l.b16 %v4579
        %v4717 = vunpack.c.l.b16 %v4580
        %v4718 = vunpack.c.h.b16 %v4579
        %v4719 = vunpack.c.h.b16 %v4580
        %v4720 = vunpack.c.l.b16 %v4581
        %v4721 = vunpack.c.l.b16 %v4582
        %v4722 = vunpack.c.h.b16 %v4581
        %v4723 = vunpack.c.h.b16 %v4582
        %v4724 = vunpack.c.l.b16 %v4583
        %v4725 = vunpack.c.l.b16 %v4584
        %v4726 = vunpack.c.h.b16 %v4583
        %v4727 = vunpack.c.h.b16 %v4584
        %v4728 = vunpack.c.l.b16 %v4585
        %v4729 = vunpack.c.l.b16 %v4586
        %v4730 = vunpack.c.h.b16 %v4585
        %v4731 = vunpack.c.h.b16 %v4586
        %v4732 = vunpack.c.l.b16 %v4587
        %v4733 = vunpack.c.l.b16 %v4588
        %v4734 = vunpack.c.h.b16 %v4587
        %v4735 = vunpack.c.h.b16 %v4588
        %v4736 = vunpack.c.l.b16 %v4589
        %v4737 = vunpack.c.l.b16 %v4590
        %v4738 = vunpack.c.h.b16 %v4589
        %v4739 = vunpack.c.h.b16 %v4590
        %v4740 = vpack.c.b16 %v4677, %v4676
        %v4741 = vpack.c.b16 %v4679, %v4678
        %v4742 = vpack.c.b16 %v4681, %v4680
        %v4743 = vpack.c.b16 %v4683, %v4682
        %v4744 = vpack.c.b16 %v4685, %v4684
        %v4745 = vpack.c.b16 %v4687, %v4686
        %v4746 = vpack.c.b16 %v4689, %v4688
        %v4747 = vpack.c.b16 %v4691, %v4690
        %v4748 = vpack.c.b16 %v4693, %v4692
        %v4749 = vpack.c.b16 %v4695, %v4694
        %v4750 = vpack.c.b16 %v4697, %v4696
        %v4751 = vpack.c.b16 %v4699, %v4698
        %v4752 = vpack.c.b16 %v4701, %v4700
        %v4753 = vpack.c.b16 %v4703, %v4702
        %v4754 = vpack.c.b16 %v4705, %v4704
        %v4755 = vpack.c.b16 %v4707, %v4706
        %v4756 = vpack.c.b16 %v4709, %v4708
        %v4757 = vpack.c.b16 %v4711, %v4710
        %v4758 = vpack.c.b16 %v4713, %v4712
        %v4759 = vpack.c.b16 %v4715, %v4714
        %v4760 = vpack.c.b16 %v4717, %v4716
        %v4761 = vpack.c.b16 %v4719, %v4718
        %v4762 = vpack.c.b16 %v4721, %v4720
        %v4763 = vpack.c.b16 %v4723, %v4722
        %v4764 = vpack.c.b16 %v4725, %v4724
        %v4765 = vpack.c.b16 %v4727, %v4726
        %v4766 = vpack.c.b16 %v4729, %v4728
        %v4767 = vpack.c.b16 %v4731, %v4730
        %v4768 = vpack.c.b16 %v4733, %v4732
        %v4769 = vpack.c.b16 %v4735, %v4734
        %v4770 = vpack.c.b16 %v4737, %v4736
        %v4771 = vpack.c.b16 %v4739, %v4738
        %4804 = vst [vmem:[%s734] sm:$0xff] %v4740
        %4805 = vst [vmem:[%s734 + $0x8] sm:$0xff] %v4741
        %4806 = vst [vmem:[%s734 + $0x10] sm:$0xff] %v4742
        %4807 = vst [vmem:[%s734 + $0x18] sm:$0xff] %v4743
        %4808 = vst [vmem:[%s734 + $0x20] sm:$0xff] %v4744
        %4809 = vst [vmem:[%s734 + $0x28] sm:$0xff] %v4745
        %4810 = vst [vmem:[%s734 + $0x30] sm:$0xff] %v4746
        %4811 = vst [vmem:[%s734 + $0x38] sm:$0xff] %v4747
        %4812 = vst [vmem:[%s734 + $0x40] sm:$0xff] %v4748
        %4813 = vst [vmem:[%s734 + $0x48] sm:$0xff] %v4749
        %4814 = vst [vmem:[%s734 + $0x50] sm:$0xff] %v4750
        %4815 = vst [vmem:[%s734 + $0x58] sm:$0xff] %v4751
        %4816 = vst [vmem:[%s734 + $0x60] sm:$0xff] %v4752
        %4817 = vst [vmem:[%s734 + $0x68] sm:$0xff] %v4753
        %4818 = vst [vmem:[%s734 + $0x70] sm:$0xff] %v4754
        %4819 = vst [vmem:[%s734 + $0x78] sm:$0xff] %v4755
        %4820 = vst [vmem:[%s734 + $0x80] sm:$0xff] %v4756
        %4821 = vst [vmem:[%s734 + $0x88] sm:$0xff] %v4757
        %4822 = vst [vmem:[%s734 + $0x90] sm:$0xff] %v4758
        %4823 = vst [vmem:[%s734 + $0x98] sm:$0xff] %v4759
        %4824 = vst [vmem:[%s734 + $0xa0] sm:$0xff] %v4760
        %4825 = vst [vmem:[%s734 + $0xa8] sm:$0xff] %v4761
        %4826 = vst [vmem:[%s734 + $0xb0] sm:$0xff] %v4762
        %4827 = vst [vmem:[%s734 + $0xb8] sm:$0xff] %v4763
        %4828 = vst [vmem:[%s734 + $0xc0] sm:$0xff] %v4764
        %4829 = vst [vmem:[%s734 + $0xc8] sm:$0xff] %v4765
        %4830 = vst [vmem:[%s734 + $0xd0] sm:$0xff] %v4766
        %4831 = vst [vmem:[%s734 + $0xd8] sm:$0xff] %v4767
        %4832 = vst [vmem:[%s734 + $0xe0] sm:$0xff] %v4768
        %4833 = vst [vmem:[%s734 + $0xe8] sm:$0xff] %v4769
        %4834 = vst [vmem:[%s734 + $0xf0] sm:$0xff] %v4770
        %4835 = vst [vmem:[%s734 + $0xf8] sm:$0xff] %v4771
        %v4836 = vld [vmem:[%s10] sm:$0xff]
        %v4837 = vld [vmem:[%s10 + $0x8] sm:$0xff]
        %v4838 = vld [vmem:[%s10 + $0x10] sm:$0xff]
        %v4839 = vld [vmem:[%s10 + $0x18] sm:$0xff]
        %v4840 = vpack.c.bf16 %v4837, %v4836
        %v4841 = vpack.c.bf16 %v4839, %v4838
        %v4842 = vpack.c.bf16 %v4630, %v4626
        %v4843 = vpack.c.bf16 %v4632, %v4628
        %v4844 = vpack.c.bf16 %v4640, %v4636
        %v4845 = vpack.c.bf16 %v4642, %v4638
        %v4846 = vld [vmem:[%s11] sm:$0xff]
        %v4847 = vld [vmem:[%s11 + $0x8] sm:$0xff]
        %v4848 = vld [vmem:[%s11 + $0x10] sm:$0xff]
        %v4849 = vld [vmem:[%s11 + $0x18] sm:$0xff]
        %4851 = vset.pattern.permute.xlu0 0
        %4852 = vperm.xlu0 %4851, %v4846
        %v4853 = vpop.permute.xlu0 %4852
        %4856 = vset.pattern.permute.xlu0 0
        %4857 = vperm.xlu0 %4856, %v4847
        %v4858 = vpop.permute.xlu0 %4857
        %4861 = vset.pattern.permute.xlu0 0
        %4862 = vperm.xlu0 %4861, %v4848
        %v4863 = vpop.permute.xlu0 %4862
        %4866 = vset.pattern.permute.xlu0 0
        %4867 = vperm.xlu0 %4866, %v4849
        %v4868 = vpop.permute.xlu0 %4867
        %v4871 = vsel %vm1272, %v4840, 0
        %v4874 = vsel %vm1272, %v4841, 0
        %4876 = vmatprep.subr.bf16.mxu0 0
        %4877 = vmatpush1.bf16.msra.mxu0 0
        %4878 = vmatprep.subr.bf16.mxu0 0
        %4879 = vmatpush1.bf16.msra.mxu0 0
        %4880 = vmatprep.subr.bf16.mxu0 0
        %4881 = vmatpush1.bf16.msra.mxu0 0
        %4882 = vmatprep.subr.bf16.mxu0 0
        %4883 = vmatpush1.bf16.msra.mxu0 0
        %4884 = vmatprep.subr.bf16.mxu0 0
        %4885 = vmatpush1.bf16.msra.mxu0 0
        %4886 = vmatprep.subr.bf16.mxu0 0
        %4887 = vmatpush1.bf16.msra.mxu0 0
        %4888 = vmatprep.subr.bf16.mxu0 %v4845
        %4889 = vmatpush1.bf16.msra.mxu0 %v4844
        %4890 = vmatprep.subr.bf16.mxu0 %v4843
        %4891 = vmatpush1.bf16.msra.mxu0 %v4842
        %4892 = vmatprep.subr.bf16.mxu0 0
        %4893 = vmatpush2.bf16.msra.mxu0 0
        %4894 = vmatprep.subr.bf16.mxu0 0
        %4895 = vmatpush2.bf16.msra.mxu0 0
        %4896 = vmatprep.subr.bf16.mxu0 0
        %4897 = vmatpush2.bf16.msra.mxu0 0
        %4898 = vmatprep.subr.bf16.mxu0 0
        %4899 = vmatpush2.bf16.msra.mxu0 0
        %4900 = vmatprep.subr.bf16.mxu0 0
        %4901 = vmatpush2.bf16.msra.mxu0 0
        %4902 = vmatprep.subr.bf16.mxu0 0
        %4903 = vmatpush2.bf16.msra.mxu0 0
        %4904 = vmatprep.subr.bf16.mxu0 0
        %4905 = vmatpush2.bf16.msra.mxu0 0
        %4906 = vmatprep.subr.bf16.mxu0 0
        %4907 = vmatpush2.bf16.msra.mxu0 0
        %4908 = vmatprep.mubr.bf16.mxu0 0
        %4909 = vmatmul.mubr.bf16.gmra.mxu0 %v4871
        %v4910 = vpop.f32.mrf.mxu0
        %v4911 = vadd.f32 %v4853, %v4910
        %v4912 = vpop.f32.mrf.mxu0
        %v4913 = vadd.f32 %v4853, %v4912
        %v4914 = vpop.f32.mrf.mxu0
        %v4915 = vadd.f32 %v4858, %v4914
        %v4916 = vpop.f32.mrf.mxu0
        %v4917 = vadd.f32 %v4858, %v4916
        %4918 = vmatprep.mubr.bf16.mxu0 0
        %4919 = vmatmul.mubr.bf16.gmra.mxu0 %v4874
        %v4920 = vpop.f32.mrf.mxu0
        %v4921 = vadd.f32 %v4863, %v4920
        %v4922 = vpop.f32.mrf.mxu0
        %v4923 = vadd.f32 %v4863, %v4922
        %v4924 = vpop.f32.mrf.mxu0
        %v4925 = vadd.f32 %v4868, %v4924
        %v4926 = vpop.f32.mrf.mxu0
        %v4927 = vadd.f32 %v4868, %v4926
        %4928 = vdwg.mxu0
        %4929 = vst [vmem:[%s774] sm:$0xff] %v4911
        %4930 = vst [vmem:[%s774 + $0x8] sm:$0xff] %v4913
        %4931 = vst [vmem:[%s774 + $0x10] sm:$0xff] %v4915
        %4932 = vst [vmem:[%s774 + $0x18] sm:$0xff] %v4917
        %4933 = vst [vmem:[%s774 + $0x20] sm:$0xff] %v4921
        %4934 = vst [vmem:[%s774 + $0x28] sm:$0xff] %v4923
        %4935 = vst [vmem:[%s774 + $0x30] sm:$0xff] %v4925
        %4936 = vst [vmem:[%s774 + $0x38] sm:$0xff] %v4927
        %p4937 = scmp.lt.s32.totalorder %s42, 1
        %s4938 = scalar_select %p4937, %s42, 1
        %s4939 = smul.addr %s4938, 8
        %s4940 = smul.addr %s4939, 8
        %s4941 = scalar_lea.vmem %s12, %s4940
        %p4942 = scmp.lt.s32.totalorder %s42, 1
        %s4943 = scalar_select %p4942, %s42, 1
        %s4944 = smul.addr %s4943, 8
        %s4945 = smul.addr %s4944, 8
        %s4946 = scalar_lea.vmem %s13, %s4945
        %p4947 = scmp.lt.s32.totalorder %s42, 1
        %s4948 = scalar_select %p4947, %s42, 1
        %s4949 = smul.addr %s4948, 8
        %s4950 = smul.addr %s4949, 8
        %s4951 = scalar_lea.vmem %s14, %s4950
        %p4952 = scmp.lt.s32.totalorder %s42, 1
        %s4953 = scalar_select %p4952, %s42, 1
        %s4954 = smul.addr %s4953, 8
        %s4955 = smul.addr %s4954, 8
        %s4956 = scalar_lea.vmem %s15, %s4955
        %p4957 = scmp.lt.s32.totalorder %s42, 1
        %s4958 = scalar_select %p4957, %s42, 1
        %s4959 = smul.addr %s4958, 8
        %s4960 = smul.addr %s4959, 8
        %s4961 = scalar_lea.vmem %s16, %s4960
        %p4962 = scmp.lt.s32.totalorder %s42, 1
        %s4963 = scalar_select %p4962, %s42, 1
        %s4964 = smul.addr %s4963, 8
        %s4965 = smul.addr %s4964, 8
        %s4966 = scalar_lea.vmem %s17, %s4965
        %s4967 = sand.u32 %s468, 1
        %s4968 = scalar_lea.sflag [#allocation3], %s4967
        %s4969 = sand.u32 %s468, 1
        %s4970 = smul.addr %s4969, 4
        %s4971 = scalar_lea.vmem [#allocation2], %s4970
        %s4972 = sand.u32 %s42, 1
        %s4973 = scalar_lea.sflag [#allocation5], %s4972
        %s4974 = sand.u32 %s494, 1
        %s4975 = smul.addr %s4974, 256
        %s4976 = scalar_lea.vmem [#allocation4], %s4975
        %s4977 = sand.u32 %s42, 1
        %s4978 = scalar_lea.sflag [#allocation5], %s4977
        %s4979 = sand.u32 %s520, 1
        %s4980 = smul.addr %s4979, 256
        %s4981 = scalar_lea.vmem [#allocation6], %s4980
        %s4982 = sand.u32 %s546, 1
        %s4983 = scalar_lea.sflag [#allocation8], %s4982
        %s4984 = sand.u32 %s546, 1
        %s4985 = smul.addr %s4984, 256
        %s4986 = scalar_lea.vmem [#allocation7], %s4985
        // Predicated region
        $region69: #{self_corr_attention_forward.1} parent=67 // pred_check
          %p4987 = pneg %p322
        $region70: #{self_corr_attention_forward.1} parent=67 // pred_check_branch
          %4989 = sbr.rel (%p4987) target = $region72
        $region71: #{self_corr_attention_forward.1} parent=67 // pred_region
          _
        $region72: #{self_corr_attention_forward.1} parent=67 // pred_fallthru
          _
        // Predicated region
        $region73: #{self_corr_attention_forward.1} parent=67 // pred_check
          %p4990 = pneg %p348
        $region74: #{self_corr_attention_forward.1} parent=67 // pred_check_branch
          %4992 = sbr.rel (%p4990) target = $region76
        $region75: #{self_corr_attention_forward.1} parent=67 // pred_region
          _
        $region76: #{self_corr_attention_forward.1} parent=67 // pred_fallthru
          _
        // Predicated region
        $region77: #{self_corr_attention_forward.1} parent=67 // pred_check
          %p4993 = pneg %p374
        $region78: #{self_corr_attention_forward.1} parent=67 // pred_check_branch
          %4995 = sbr.rel (%p4993) target = $region80
        $region79: #{self_corr_attention_forward.1} parent=67 // pred_region
          _
        $region80: #{self_corr_attention_forward.1} parent=67 // pred_fallthru
          _
        // Predicated region
        $region81: #{self_corr_attention_forward.1} parent=67 // pred_check
          %p4996 = pneg %p400
        $region82: #{self_corr_attention_forward.1} parent=67 // pred_check_branch
          %4998 = sbr.rel (%p4996) target = $region84
        $region83: #{self_corr_attention_forward.1} parent=67 // pred_region
          _
        $region84: #{self_corr_attention_forward.1} parent=67 // pred_fallthru
          _
        // Predicated region
        $region85: #{self_corr_attention_forward.1} parent=67 // pred_check
          %p4999 = pneg %p426
        $region86: #{self_corr_attention_forward.1} parent=67 // pred_check_branch
          %5001 = sbr.rel (%p4999) target = $region88
        $region87: #{self_corr_attention_forward.1} parent=67 // pred_region
          _
        $region88: #{self_corr_attention_forward.1} parent=67 // pred_fallthru
          _
        // Predicated region
        $region89: #{self_corr_attention_forward.1} parent=67 // pred_check
          %p5002 = pneg %p452
        $region90: #{self_corr_attention_forward.1} parent=67 // pred_check_branch
          %5004 = sbr.rel (%p5002) target = $region92
        $region91: #{self_corr_attention_forward.1} parent=67 // pred_region
          _
        $region92: #{self_corr_attention_forward.1} parent=67 // pred_fallthru
          _
        // Predicated region
        $region93: #{self_corr_attention_forward.1} parent=67 // pred_check
          %p5005 = pneg %p478
        $region94: #{self_corr_attention_forward.1} parent=67 // pred_check_branch
          %5007 = sbr.rel (%p5005) target = $region96
        $region95: #{self_corr_attention_forward.1} parent=67 // pred_region
          %s5009 = ssub.s32 64, 64
          %5010 = vsyncadd %s4968, %s5009
          %s5011 = smul.addr %s42, 2
          %s5012 = smul.addr %s5011, 32
          %s5013 = scalar_lea.hbm %s18, %s5012
          %s5015 = sshll.u32 %s4971, 4
          %s5016 = int_to_ptr.vmem [resolvable:$true] %s5015
          %5018 = dma.vmem_to_hbm [thread:$0]  %s5016, 64, %s5013, %s4968
        $region96: #{self_corr_attention_forward.1} parent=67 // pred_fallthru
          _
        // Predicated region
        $region97: #{self_corr_attention_forward.1} parent=67 // pred_check
          %p5019 = pneg %p504
        $region98: #{self_corr_attention_forward.1} parent=67 // pred_check_branch
          %5021 = sbr.rel (%p5019) target = $region100
        $region99: #{self_corr_attention_forward.1} parent=67 // pred_region
          %s5023 = ssub.s32 4096, 4096
          %5024 = vsyncadd %s4973, %s5023
          %s5025 = smul.addr %s42, 64
          %s5026 = smul.addr %s5025, 64
          %s5027 = scalar_lea.hbm %s19, %s5026
          %s5028 = sshll.u32 %s4976, 4
          %s5029 = int_to_ptr.vmem [resolvable:$true] %s5028
          %5034 = dma.vmem_to_hbm [thread:$0]  %s5029, 4096, %s5027, %s4973, 128, 128, 8
        $region100: #{self_corr_attention_forward.1} parent=67 // pred_fallthru
          _
        // Predicated region
        $region101: #{self_corr_attention_forward.1} parent=67 // pred_check
          %p5035 = pneg %p530
        $region102: #{self_corr_attention_forward.1} parent=67 // pred_check_branch
          %5037 = sbr.rel (%p5035) target = $region104
        $region103: #{self_corr_attention_forward.1} parent=67 // pred_region
          %s5039 = ssub.s32 4096, 4096
          %5040 = vsyncadd %s4978, %s5039
          %s5041 = smul.addr %s42, 64
          %s5042 = smul.addr %s5041, 64
          %s5043 = scalar_lea.hbm %s20, %s5042
          %s5044 = sshll.u32 %s4981, 4
          %s5045 = int_to_ptr.vmem [resolvable:$true] %s5044
          %5050 = dma.vmem_to_hbm [thread:$0]  %s5045, 4096, %s5043, %s4978, 128, 128, 8
        $region104: #{self_corr_attention_forward.1} parent=67 // pred_fallthru
          _
        // Predicated region
        $region105: #{self_corr_attention_forward.1} parent=67 // pred_check
          %p5051 = pneg %p556
        $region106: #{self_corr_attention_forward.1} parent=67 // pred_check_branch
          %5053 = sbr.rel (%p5051) target = $region108
        $region107: #{self_corr_attention_forward.1} parent=67 // pred_region
          %s5055 = ssub.s32 4096, 4096
          %5056 = vsyncadd %s4983, %s5055
          %s5057 = smul.addr %s42, 64
          %s5058 = smul.addr %s5057, 64
          %s5059 = scalar_lea.hbm %s21, %s5058
          %s5060 = sshll.u32 %s4986, 4
          %s5061 = int_to_ptr.vmem [resolvable:$true] %s5060
          %5066 = dma.vmem_to_hbm [thread:$0]  %s5061, 4096, %s5059, %s4983, 128, 128, 8
        $region108: #{self_corr_attention_forward.1} parent=67 // pred_fallthru
          _
      $region68: #{self_corr_attention_forward.1} parent=5 // pred_fallthru
        _
      %p5067 = scmp.le.s32.totalorder 2, %s37
      // Predicated region
      $region109: #{self_corr_attention_forward.1} parent=5 // pred_check
        %p5068 = pneg %p5067
      $region110: #{self_corr_attention_forward.1} parent=5 // pred_check_branch
        %5070 = sbr.rel (%p5068) target = $region112
      $region111: #{self_corr_attention_forward.1} parent=5 // pred_region
        %s5071 = ssub.s32 %s37, 2
        // Predicated region
        $region113: #{self_corr_attention_forward.1} parent=111 // pred_check
          %p5072 = pneg %p328
        $region114: #{self_corr_attention_forward.1} parent=111 // pred_check_branch
          %5074 = sbr.rel (%p5072) target = $region116
        $region115: #{self_corr_attention_forward.1} parent=111 // pred_region
          %p5075 = scmp.lt.s32.totalorder %s43, 1
          %s5076 = scalar_select %p5075, %s43, 1
          %s5077 = smul.addr %s5076, 8
          %s5078 = smul.addr %s5077, 8
          %s5079 = scalar_lea.vmem %s12, %s5078
        $region116: #{self_corr_attention_forward.1} parent=111 // pred_fallthru
          _
        // Predicated region
        $region117: #{self_corr_attention_forward.1} parent=111 // pred_check
          %p5080 = pneg %p354
        $region118: #{self_corr_attention_forward.1} parent=111 // pred_check_branch
          %5082 = sbr.rel (%p5080) target = $region120
        $region119: #{self_corr_attention_forward.1} parent=111 // pred_region
          %p5083 = scmp.lt.s32.totalorder %s43, 1
          %s5084 = scalar_select %p5083, %s43, 1
          %s5085 = smul.addr %s5084, 8
          %s5086 = smul.addr %s5085, 8
          %s5087 = scalar_lea.vmem %s13, %s5086
        $region120: #{self_corr_attention_forward.1} parent=111 // pred_fallthru
          _
        // Predicated region
        $region121: #{self_corr_attention_forward.1} parent=111 // pred_check
          %p5088 = pneg %p380
        $region122: #{self_corr_attention_forward.1} parent=111 // pred_check_branch
          %5090 = sbr.rel (%p5088) target = $region124
        $region123: #{self_corr_attention_forward.1} parent=111 // pred_region
          %p5091 = scmp.lt.s32.totalorder %s43, 1
          %s5092 = scalar_select %p5091, %s43, 1
          %s5093 = smul.addr %s5092, 8
          %s5094 = smul.addr %s5093, 8
          %s5095 = scalar_lea.vmem %s14, %s5094
        $region124: #{self_corr_attention_forward.1} parent=111 // pred_fallthru
          _
        // Predicated region
        $region125: #{self_corr_attention_forward.1} parent=111 // pred_check
          %p5096 = pneg %p406
        $region126: #{self_corr_attention_forward.1} parent=111 // pred_check_branch
          %5098 = sbr.rel (%p5096) target = $region128
        $region127: #{self_corr_attention_forward.1} parent=111 // pred_region
          %p5099 = scmp.lt.s32.totalorder %s43, 1
          %s5100 = scalar_select %p5099, %s43, 1
          %s5101 = smul.addr %s5100, 8
          %s5102 = smul.addr %s5101, 8
          %s5103 = scalar_lea.vmem %s15, %s5102
        $region128: #{self_corr_attention_forward.1} parent=111 // pred_fallthru
          _
        // Predicated region
        $region129: #{self_corr_attention_forward.1} parent=111 // pred_check
          %p5104 = pneg %p432
        $region130: #{self_corr_attention_forward.1} parent=111 // pred_check_branch
          %5106 = sbr.rel (%p5104) target = $region132
        $region131: #{self_corr_attention_forward.1} parent=111 // pred_region
          %p5107 = scmp.lt.s32.totalorder %s43, 1
          %s5108 = scalar_select %p5107, %s43, 1
          %s5109 = smul.addr %s5108, 8
          %s5110 = smul.addr %s5109, 8
          %s5111 = scalar_lea.vmem %s16, %s5110
        $region132: #{self_corr_attention_forward.1} parent=111 // pred_fallthru
          _
        // Predicated region
        $region133: #{self_corr_attention_forward.1} parent=111 // pred_check
          %p5112 = pneg %p458
        $region134: #{self_corr_attention_forward.1} parent=111 // pred_check_branch
          %5114 = sbr.rel (%p5112) target = $region136
        $region135: #{self_corr_attention_forward.1} parent=111 // pred_region
          %p5115 = scmp.lt.s32.totalorder %s43, 1
          %s5116 = scalar_select %p5115, %s43, 1
          %s5117 = smul.addr %s5116, 8
          %s5118 = smul.addr %s5117, 8
          %s5119 = scalar_lea.vmem %s17, %s5118
        $region136: #{self_corr_attention_forward.1} parent=111 // pred_fallthru
          _
        // Predicated region
        $region137: #{self_corr_attention_forward.1} parent=111 // pred_check
          %p5120 = pneg %p484
        $region138: #{self_corr_attention_forward.1} parent=111 // pred_check_branch
          %5122 = sbr.rel (%p5120) target = $region140
        $region139: #{self_corr_attention_forward.1} parent=111 // pred_region
          %s5123 = sand.u32 %s469, 1
          %s5124 = scalar_lea.sflag [#allocation3], %s5123
          %s5125 = sand.u32 %s469, 1
          %s5126 = smul.addr %s5125, 4
          %s5127 = scalar_lea.vmem [#allocation2], %s5126
          %5128 = dma.done %s5124, 64
        $region140: #{self_corr_attention_forward.1} parent=111 // pred_fallthru
          _
        // Predicated region
        $region141: #{self_corr_attention_forward.1} parent=111 // pred_check
          %p5129 = pneg %p510
        $region142: #{self_corr_attention_forward.1} parent=111 // pred_check_branch
          %5131 = sbr.rel (%p5129) target = $region144
        $region143: #{self_corr_attention_forward.1} parent=111 // pred_region
          %s5132 = sand.u32 %s43, 1
          %s5133 = scalar_lea.sflag [#allocation5], %s5132
          %s5134 = sand.u32 %s495, 1
          %s5135 = smul.addr %s5134, 256
          %s5136 = scalar_lea.vmem [#allocation4], %s5135
          %5137 = dma.done %s5133, 4096
        $region144: #{self_corr_attention_forward.1} parent=111 // pred_fallthru
          _
        // Predicated region
        $region145: #{self_corr_attention_forward.1} parent=111 // pred_check
          %p5138 = pneg %p536
        $region146: #{self_corr_attention_forward.1} parent=111 // pred_check_branch
          %5140 = sbr.rel (%p5138) target = $region148
        $region147: #{self_corr_attention_forward.1} parent=111 // pred_region
          %s5141 = sand.u32 %s43, 1
          %s5142 = scalar_lea.sflag [#allocation5], %s5141
          %s5143 = sand.u32 %s521, 1
          %s5144 = smul.addr %s5143, 256
          %s5145 = scalar_lea.vmem [#allocation6], %s5144
          %5146 = dma.done %s5142, 4096
        $region148: #{self_corr_attention_forward.1} parent=111 // pred_fallthru
          _
        // Predicated region
        $region149: #{self_corr_attention_forward.1} parent=111 // pred_check
          %p5147 = pneg %p562
        $region150: #{self_corr_attention_forward.1} parent=111 // pred_check_branch
          %5149 = sbr.rel (%p5147) target = $region152
        $region151: #{self_corr_attention_forward.1} parent=111 // pred_region
          %s5150 = sand.u32 %s547, 1
          %s5151 = scalar_lea.sflag [#allocation8], %s5150
          %s5152 = sand.u32 %s547, 1
          %s5153 = smul.addr %s5152, 256
          %s5154 = scalar_lea.vmem [#allocation7], %s5153
          %5155 = dma.done %s5151, 4096
        $region152: #{self_corr_attention_forward.1} parent=111 // pred_fallthru
          _
      $region112: #{self_corr_attention_forward.1} parent=5 // pred_fallthru
        _
    $region6: #{self_corr_attention_forward.1} parent=1 // loop_footer
      %s41 = sadd.s32 1, %s37
    $region7: #{self_corr_attention_forward.1} parent=1 // loop_footer_branch
      %36 = sbr.rel target = $region3
    $region8: #{self_corr_attention_forward.1} parent=1 // loop_exit
      _
    %5156 = vsyncpa [#allocation3], 1
    %s5157 = scalar_lea.sflag [#allocation3], 1
    %5158 = vsyncpa %s5157, 1
    %5159 = vsyncpa [#allocation5], 1
    %s5160 = scalar_lea.sflag [#allocation5], 1
    %5161 = vsyncpa %s5160, 1
    %5162 = vsyncpa [#allocation8], 1
    %s5163 = scalar_lea.sflag [#allocation8], 1
    %5164 = vsyncpa %s5163, 1

</llo_original>
